<compile_context>
chip_gen: v5e
topology: v5e:2x2
jax: 0.10.0
libtpu: 0.0.40
codegen_flags: <defaults>
</compile_context>

<pallas_src>
import jax
import jax.numpy as jnp
from jax.experimental import pallas as pl
from jax.experimental.pallas import tpu as pltpu

# Globals `n_feat` / `output_dim` are undefined in the original script; small values chosen.
N_FEAT = 64
N_NODES = 500
OUTPUT_DIM = 2
BATCH = 8
BN_EPS = 1e-5

# Lane-dense padded sizes (input features are NOT padded: 64 is a legal full last dim).
N_NODES_PAD = 512    # 500 -> 512  (4x128 lanes)
OUT_PAD = 128        # 2   -> 128  (lane-dense unmasked stores; wrapper slices [:, :2])

CAP_BM = 1024        # max batch tile (amortizes ~0.35us per-grid-step overhead)
MIN_SPLIT = 512      # if rounded batch >= this, force >= 2 grid steps (2 TC sharding)


def _cdiv(a, b):
    return -(-a // b)


def _round_up(v, m):
    return _cdiv(v, m) * m


def _choose_tiling(b):
    """Pick (bm, b_pad): large tiles, minimal pad waste, >=2 tiles when enough work."""
    b8 = _round_up(max(b, 8), 8)
    n_tiles = max(2 if b8 >= MIN_SPLIT else 1, _cdiv(b8, CAP_BM))
    bm = _round_up(_cdiv(b8, n_tiles), 8)
    b_pad = bm * _cdiv(b8, bm)
    return bm, b_pad


def _mlp_kernel(x_ref, w1_ref, wmid_ref, b_ref, w6_ref, o_ref):
    """Whole 6-layer MLP on one batch tile. BN affines are pre-folded into the Linears.

    x_ref:    (bm, 64)       f32
    w1_ref:   (64, 512)      bf16
    wmid_ref: (4, 512, 512)  bf16   (hidden layers 2..5)
    b_ref:    (6, 512)       f32    (rows 0..4 hidden biases, row 5 = output bias in [:128])
    w6_ref:   (512, 128)     bf16
    o_ref:    (bm, 128)      f32
    """

    def dense_relu(h_bf16, w, bias_row):
        # MXU matmul (bf16 x bf16 -> f32 accumulate) + bias + ReLU, then bf16 activations.
        z = jnp.dot(h_bf16, w, preferred_element_type=jnp.float32) + bias_row
        return jnp.maximum(z, 0.0).astype(jnp.bfloat16)

    h = dense_relu(x_ref[...].astype(jnp.bfloat16), w1_ref[...], b_ref[0:1, :])
    for li in range(4):                                   # static unroll: layers 2..5
        h = dense_relu(h, wmid_ref[li], b_ref[li + 1:li + 2, :])

    # Output layer: Linear -> Sigmoid (padded lanes hold sigmoid(0)=0.5, discarded).
    z = (jnp.dot(h, w6_ref[...], preferred_element_type=jnp.float32)
         + b_ref[5:6, :OUT_PAD])
    o_ref[...] = jax.nn.sigmoid(z).astype(o_ref.dtype)


@jax.jit
def network_forward(x, params):
    """x: (B, N_FEAT) f32; params: (w1, wmid, bh, w6) folded/padded (see fold_and_pad)."""
    w1, wmid, bh, w6 = params
    b, f = x.shape
    bm, b_pad = _choose_tiling(b)

    # Zero-pad batch rows only when needed (padded rows are discarded by the wrapper).
    xp = x if b_pad == b else jnp.zeros((b_pad, f), x.dtype).at[:b].set(x)

    flops = 2 * b_pad * (N_FEAT * N_NODES_PAD
                         + 4 * N_NODES_PAD * N_NODES_PAD
                         + N_NODES_PAD * OUT_PAD)
    bytes_accessed = (b_pad * f * 4            # x
                      + w1.size * 2 + wmid.size * 2 + w6.size * 2   # bf16 weights
                      + bh.size * 4            # f32 biases
                      + b_pad * OUT_PAD * 4)   # output

    out = pl.pallas_call(
        _mlp_kernel,
        out_shape=jax.ShapeDtypeStruct((b_pad, OUT_PAD), jnp.float32),
        grid=(b_pad // bm,),
        in_specs=[
            pl.BlockSpec((bm, f), lambda i: (i, 0)),
            # Whole-array blocks with constant index_map -> weights stay VMEM-resident.
            pl.BlockSpec(w1.shape, lambda i: (0, 0)),
            pl.BlockSpec(wmid.shape, lambda i: (0, 0, 0)),
            pl.BlockSpec(bh.shape, lambda i: (0, 0)),
            pl.BlockSpec(w6.shape, lambda i: (0, 0)),
        ],
        out_specs=pl.BlockSpec((bm, OUT_PAD), lambda i: (i, 0)),
        compiler_params=pltpu.CompilerParams(
            dimension_semantics=("parallel",),
            vmem_limit_bytes=32 << 20),
        cost_estimate=pl.CostEstimate(
            flops=flops,
            transcendentals=b_pad * OUT_PAD,
            bytes_accessed=bytes_accessed),
    )(xp, w1, wmid, bh, w6)

    return out[:b, :OUTPUT_DIM]


def init_raw_params(key):
    """PyTorch-default-like Linear init (uniform +-1/sqrt(fan_in)) + synthetic BN stats."""
    dims = [(N_FEAT, N_NODES)] + [(N_NODES, N_NODES)] * 4 + [(N_NODES, OUTPUT_DIM)]
    layers = []
    for li, (fan_in, fan_out) in enumerate(dims):
        key, kw, kb, kg, kbe, km, kv = jax.random.split(key, 7)
        bound = 1.0 / jnp.sqrt(jnp.float32(fan_in))
        # Stored (in, out): transpose of PyTorch's (out, in) Linear weight.
        w = jax.random.uniform(kw, (fan_in, fan_out), jnp.float32, -bound, bound)
        b = jax.random.uniform(kb, (fan_out,), jnp.float32, -bound, bound)
        if li < 5:
            gamma = 1.0 + 0.1 * jax.random.normal(kg, (fan_out,), jnp.float32)
            beta = 0.1 * jax.random.normal(kbe, (fan_out,), jnp.float32)
            mean = 0.05 * jax.random.normal(km, (fan_out,), jnp.float32)
            var = 1.0 + 0.1 * jax.random.uniform(kv, (fan_out,), jnp.float32)
            layers.append((w, b, gamma, beta, mean, var))
        else:
            layers.append((w, b))
    return layers


def fold_and_pad(layers):
    """Fold eval-mode BN into the following Linear, pack+pad into 4 lane-dense operands."""
    scales, shifts = [], []
    for (w, b, gamma, beta, mean, var) in layers[:5]:
        s = gamma / jnp.sqrt(var + BN_EPS)
        scales.append(s)
        shifts.append(beta - mean * s)

    folded = []
    for li in range(6):
        w0, b0 = layers[li][0], layers[li][1]
        if li > 0:
            s_prev, t_prev = scales[li - 1], shifts[li - 1]
            w = s_prev[:, None] * w0          # diag(s_{l-1}) @ W_l
            b = b0 + t_prev @ w0              # b_l + t_{l-1} @ W_l
        else:
            w, b = w0, b0
        folded.append((w, b))

    def pad2(w, rows, cols):
        return jnp.zeros((rows, cols), jnp.float32).at[:w.shape[0], :w.shape[1]].set(w)

    w1p = pad2(folded[0][0], N_FEAT, N_NODES_PAD).astype(jnp.bfloat16)        # (64, 512)
    wmid = jnp.stack([pad2(folded[li][0], N_NODES_PAD, N_NODES_PAD)
                      for li in range(1, 5)]).astype(jnp.bfloat16)            # (4, 512, 512)
    w6p = pad2(folded[5][0], N_NODES_PAD, OUT_PAD).astype(jnp.bfloat16)       # (512, 128)

    bh = jnp.zeros((6, N_NODES_PAD), jnp.float32)
    for li in range(5):
        bh = bh.at[li, :N_NODES].set(folded[li][1])
    bh = bh.at[5, :OUTPUT_DIM].set(folded[5][1])                              # (6, 512)

    return (w1p, wmid, bh, w6p)


def reference_forward_original(x, layers):
    """Pure-JAX f32 reference of the original module semantics (eval mode)."""
    h = x
    for (w, b, gamma, beta, mean, var) in layers[:5]:
        r = jnp.maximum(h @ w + b, 0.0)
        s = gamma / jnp.sqrt(var + BN_EPS)
        h = r * s + (beta - mean * s)          # Dropout(eval) = identity
    w, b = layers[5]
    return jax.nn.sigmoid(h @ w + b)


def reference_forward_folded(x, params):
    """Pure-JAX reference using the exact packed/folded bf16 params the kernel sees."""
    w1, wmid, bh, w6 = params
    h = x.astype(jnp.bfloat16)
    z = jnp.dot(h, w1, preferred_element_type=jnp.float32) + bh[0:1]
    h = jnp.maximum(z, 0.0).astype(jnp.bfloat16)
    for li in range(4):
        z = jnp.dot(h, wmid[li], preferred_element_type=jnp.float32) + bh[li + 1:li + 2]
        h = jnp.maximum(z, 0.0).astype(jnp.bfloat16)
    z = jnp.dot(h, w6, preferred_element_type=jnp.float32) + bh[5:6, :OUT_PAD]
    return jax.nn.sigmoid(z)[:, :OUTPUT_DIM]


if __name__ == "__main__":
    key = jax.random.PRNGKey(0)
    kx, kp = jax.random.split(key)

    layers = init_raw_params(kp)
    params = fold_and_pad(layers)

    # --- Small batch (grid = 1) -------------------------------------------------
    x = jax.random.normal(kx, (BATCH, N_FEAT), jnp.float32)
    out = jax.block_until_ready(network_forward(x, params))
    assert out.shape == (BATCH, OUTPUT_DIM)

    # Tight check: kernel vs. identical bf16 folded math in pure JAX.
    ref_folded = reference_forward_folded(x, params)
    assert jnp.allclose(out, ref_folded, atol=1e-3, rtol=1e-3), "mismatch vs. folded reference"

    # Semantics check: kernel vs. original f32 Linear->ReLU->BN->Dropout(eval) module.
    ref_orig = reference_forward_original(x, layers)
    assert jnp.allclose(out, ref_orig, atol=2e-2, rtol=2e-2), "mismatch vs. original semantics"

    # --- Larger, non-multiple batch (exercises multi-tile grid + row padding) ----
    x2 = jax.random.normal(jax.random.fold_in(kx, 1), (600, N_FEAT), jnp.float32)
    out2 = jax.block_until_ready(network_forward(x2, params))
    assert out2.shape == (600, OUTPUT_DIM)
    assert jnp.allclose(out2, reference_forward_folded(x2, params),
                        atol=1e-3, rtol=1e-3), "mismatch vs. folded reference (b=600)"
    assert jnp.allclose(out2, reference_forward_original(x2, layers),
                        atol=2e-2, rtol=2e-2), "mismatch vs. original semantics (b=600)"

    print("KERNEL_OK")
</pallas_src>

<mosaic_0001>
module attributes {stable_mosaic.version = 11 : i64} {
  func.func @_mlp_kernel(%arg0: i32, %arg1: memref<8x64xf32, #tpu.memory_space<vmem>>, %arg2: memref<64x512xbf16, #tpu.memory_space<vmem>>, %arg3: memref<4x512x512xbf16, #tpu.memory_space<vmem>>, %arg4: memref<6x512xf32, #tpu.memory_space<vmem>>, %arg5: memref<512x128xbf16, #tpu.memory_space<vmem>>, %arg6: memref<8x128xf32, #tpu.memory_space<vmem>>) attributes {dimension_semantics = [#tpu.dimension_semantics<parallel>], iteration_bounds = array<i64: 1>, scalar_prefetch = 0 : i64, scratch_operands = 0 : i64, tpu.core_type = #tpu.core_type<tc>, window_params = [{transform_indices = @transform_0, window_bounds = array<i64: 8, 64>}, {pipeline_mode = #tpu.pipeline_mode<synchronous>, transform_indices = @transform_1, window_bounds = array<i64: 64, 512>}, {pipeline_mode = #tpu.pipeline_mode<synchronous>, transform_indices = @transform_2, window_bounds = array<i64: 4, 512, 512>}, {pipeline_mode = #tpu.pipeline_mode<synchronous>, transform_indices = @transform_3, window_bounds = array<i64: 6, 512>}, {pipeline_mode = #tpu.pipeline_mode<synchronous>, transform_indices = @transform_4, window_bounds = array<i64: 512, 128>}, {transform_indices = @transform_5, window_bounds = array<i64: 8, 128>}]} {
    %c0 = arith.constant 0 : index
    %c0_0 = arith.constant 0 : index
    %0 = vector.load %arg1[%c0, %c0_0] : memref<8x64xf32, #tpu.memory_space<vmem>>, vector<8x64xf32>
    %1 = arith.truncf %0 : vector<8x64xf32> to vector<8x64xbf16>
    %c0_1 = arith.constant 0 : index
    %c0_2 = arith.constant 0 : index
    %2 = vector.load %arg2[%c0_1, %c0_2] : memref<64x512xbf16, #tpu.memory_space<vmem>>, vector<64x512xbf16>
    %c0_3 = arith.constant 0 : index
    %c0_4 = arith.constant 0 : index
    %3 = vector.load %arg4[%c0_3, %c0_4] : memref<6x512xf32, #tpu.memory_space<vmem>>, vector<1x512xf32>
    %cst = arith.constant dense<0.000000e+00> : vector<8x512xf32>
    %4 = tpu.matmul %1, %2, %cst {dimension_numbers = #tpu.dot_dimension_numbers<[1], [0], [0], [1], [0, 0, 1, 1], [], []>} : vector<8x64xbf16>, vector<64x512xbf16>, vector<8x512xf32> -> vector<8x512xf32>
    %5 = vector.broadcast %3 : vector<1x512xf32> to vector<8x512xf32>
    %6 = arith.addf %4, %5 : vector<8x512xf32>
    %cst_5 = arith.constant 0.000000e+00 : f32
    %7 = vector.broadcast %cst_5 : f32 to vector<8x512xf32>
    %8 = arith.maximumf %6, %7 : vector<8x512xf32>
    %9 = arith.truncf %8 : vector<8x512xf32> to vector<8x512xbf16>
    %c0_6 = arith.constant 0 : index
    %c0_7 = arith.constant 0 : index
    %c0_8 = arith.constant 0 : index
    %10 = vector.load %arg3[%c0_6, %c0_7, %c0_8] : memref<4x512x512xbf16, #tpu.memory_space<vmem>>, vector<1x512x512xbf16>
    %11 = vector.shape_cast %10 : vector<1x512x512xbf16> to vector<512x512xbf16>
    %c1 = arith.constant 1 : index
    %c0_9 = arith.constant 0 : index
    %12 = vector.load %arg4[%c1, %c0_9] : memref<6x512xf32, #tpu.memory_space<vmem>>, vector<1x512xf32>
    %cst_10 = arith.constant dense<0.000000e+00> : vector<8x512xf32>
    %13 = tpu.matmul %9, %11, %cst_10 {dimension_numbers = #tpu.dot_dimension_numbers<[1], [0], [0], [1], [0, 0, 1, 1], [], []>} : vector<8x512xbf16>, vector<512x512xbf16>, vector<8x512xf32> -> vector<8x512xf32>
    %14 = vector.broadcast %12 : vector<1x512xf32> to vector<8x512xf32>
    %15 = arith.addf %13, %14 : vector<8x512xf32>
    %cst_11 = arith.constant 0.000000e+00 : f32
    %16 = vector.broadcast %cst_11 : f32 to vector<8x512xf32>
    %17 = arith.maximumf %15, %16 : vector<8x512xf32>
    %18 = arith.truncf %17 : vector<8x512xf32> to vector<8x512xbf16>
    %c1_12 = arith.constant 1 : index
    %c0_13 = arith.constant 0 : index
    %c0_14 = arith.constant 0 : index
    %19 = vector.load %arg3[%c1_12, %c0_13, %c0_14] : memref<4x512x512xbf16, #tpu.memory_space<vmem>>, vector<1x512x512xbf16>
    %20 = vector.shape_cast %19 : vector<1x512x512xbf16> to vector<512x512xbf16>
    %c2 = arith.constant 2 : index
    %c0_15 = arith.constant 0 : index
    %21 = vector.load %arg4[%c2, %c0_15] : memref<6x512xf32, #tpu.memory_space<vmem>>, vector<1x512xf32>
    %cst_16 = arith.constant dense<0.000000e+00> : vector<8x512xf32>
    %22 = tpu.matmul %18, %20, %cst_16 {dimension_numbers = #tpu.dot_dimension_numbers<[1], [0], [0], [1], [0, 0, 1, 1], [], []>} : vector<8x512xbf16>, vector<512x512xbf16>, vector<8x512xf32> -> vector<8x512xf32>
    %23 = vector.broadcast %21 : vector<1x512xf32> to vector<8x512xf32>
    %24 = arith.addf %22, %23 : vector<8x512xf32>
    %cst_17 = arith.constant 0.000000e+00 : f32
    %25 = vector.broadcast %cst_17 : f32 to vector<8x512xf32>
    %26 = arith.maximumf %24, %25 : vector<8x512xf32>
    %27 = arith.truncf %26 : vector<8x512xf32> to vector<8x512xbf16>
    %c2_18 = arith.constant 2 : index
    %c0_19 = arith.constant 0 : index
    %c0_20 = arith.constant 0 : index
    %28 = vector.load %arg3[%c2_18, %c0_19, %c0_20] : memref<4x512x512xbf16, #tpu.memory_space<vmem>>, vector<1x512x512xbf16>
    %29 = vector.shape_cast %28 : vector<1x512x512xbf16> to vector<512x512xbf16>
    %c3 = arith.constant 3 : index
    %c0_21 = arith.constant 0 : index
    %30 = vector.load %arg4[%c3, %c0_21] : memref<6x512xf32, #tpu.memory_space<vmem>>, vector<1x512xf32>
    %cst_22 = arith.constant dense<0.000000e+00> : vector<8x512xf32>
    %31 = tpu.matmul %27, %29, %cst_22 {dimension_numbers = #tpu.dot_dimension_numbers<[1], [0], [0], [1], [0, 0, 1, 1], [], []>} : vector<8x512xbf16>, vector<512x512xbf16>, vector<8x512xf32> -> vector<8x512xf32>
    %32 = vector.broadcast %30 : vector<1x512xf32> to vector<8x512xf32>
    %33 = arith.addf %31, %32 : vector<8x512xf32>
    %cst_23 = arith.constant 0.000000e+00 : f32
    %34 = vector.broadcast %cst_23 : f32 to vector<8x512xf32>
    %35 = arith.maximumf %33, %34 : vector<8x512xf32>
    %36 = arith.truncf %35 : vector<8x512xf32> to vector<8x512xbf16>
    %c3_24 = arith.constant 3 : index
    %c0_25 = arith.constant 0 : index
    %c0_26 = arith.constant 0 : index
    %37 = vector.load %arg3[%c3_24, %c0_25, %c0_26] : memref<4x512x512xbf16, #tpu.memory_space<vmem>>, vector<1x512x512xbf16>
    %38 = vector.shape_cast %37 : vector<1x512x512xbf16> to vector<512x512xbf16>
    %c4 = arith.constant 4 : index
    %c0_27 = arith.constant 0 : index
    %39 = vector.load %arg4[%c4, %c0_27] : memref<6x512xf32, #tpu.memory_space<vmem>>, vector<1x512xf32>
    %cst_28 = arith.constant dense<0.000000e+00> : vector<8x512xf32>
    %40 = tpu.matmul %36, %38, %cst_28 {dimension_numbers = #tpu.dot_dimension_numbers<[1], [0], [0], [1], [0, 0, 1, 1], [], []>} : vector<8x512xbf16>, vector<512x512xbf16>, vector<8x512xf32> -> vector<8x512xf32>
    %41 = vector.broadcast %39 : vector<1x512xf32> to vector<8x512xf32>
    %42 = arith.addf %40, %41 : vector<8x512xf32>
    %cst_29 = arith.constant 0.000000e+00 : f32
    %43 = vector.broadcast %cst_29 : f32 to vector<8x512xf32>
    %44 = arith.maximumf %42, %43 : vector<8x512xf32>
    %45 = arith.truncf %44 : vector<8x512xf32> to vector<8x512xbf16>
    %c0_30 = arith.constant 0 : index
    %c0_31 = arith.constant 0 : index
    %46 = vector.load %arg5[%c0_30, %c0_31] : memref<512x128xbf16, #tpu.memory_space<vmem>>, vector<512x128xbf16>
    %cst_32 = arith.constant dense<0.000000e+00> : vector<8x128xf32>
    %47 = tpu.matmul %45, %46, %cst_32 {dimension_numbers = #tpu.dot_dimension_numbers<[1], [0], [0], [1], [0, 0, 1, 1], [], []>} : vector<8x512xbf16>, vector<512x128xbf16>, vector<8x128xf32> -> vector<8x128xf32>
    %c5 = arith.constant 5 : index
    %c0_33 = arith.constant 0 : index
    %48 = vector.load %arg4[%c5, %c0_33] : memref<6x512xf32, #tpu.memory_space<vmem>>, vector<1x128xf32>
    %49 = vector.broadcast %48 : vector<1x128xf32> to vector<8x128xf32>
    %50 = arith.addf %47, %49 : vector<8x128xf32>
    %51 = arith.negf %50 : vector<8x128xf32>
    %52 = math.exp %51 : vector<8x128xf32>
    %cst_34 = arith.constant 1.000000e+00 : f32
    %53 = vector.broadcast %cst_34 : f32 to vector<8x128xf32>
    %54 = arith.addf %53, %52 : vector<8x128xf32>
    %55 = arith.divf %53, %54 : vector<8x128xf32>
    %c0_35 = arith.constant 0 : index
    %c0_36 = arith.constant 0 : index
    %56 = vector.load %arg6[%c0_35, %c0_36] : memref<8x128xf32, #tpu.memory_space<vmem>>, vector<8x128xf32>
    tpu.vector_store %arg6[%c0_35, %c0_36], %55 {strides = array<i32>} : memref<8x128xf32, #tpu.memory_space<vmem>>, vector<8x128xf32>,
    return
  }
  func.func @transform_0(%arg0: i32) -> (i32, i32) {
    %c0_i32 = arith.constant 0 : i32
    %c0_i32_0 = arith.constant 0 : i32
    return %arg0, %c0_i32 : i32, i32
  }
  func.func @transform_1(%arg0: i32) -> (i32, i32) {
    %c0_i32 = arith.constant 0 : i32
    %c0_i32_0 = arith.constant 0 : i32
    %c0_i32_1 = arith.constant 0 : i32
    return %c0_i32, %c0_i32_0 : i32, i32
  }
  func.func @transform_2(%arg0: i32) -> (i32, i32, i32) {
    %c0_i32 = arith.constant 0 : i32
    %c0_i32_0 = arith.constant 0 : i32
    %c0_i32_1 = arith.constant 0 : i32
    %c0_i32_2 = arith.constant 0 : i32
    return %c0_i32, %c0_i32_0, %c0_i32_1 : i32, i32, i32
  }
  func.func @transform_3(%arg0: i32) -> (i32, i32) {
    %c0_i32 = arith.constant 0 : i32
    %c0_i32_0 = arith.constant 0 : i32
    %c0_i32_1 = arith.constant 0 : i32
    return %c0_i32, %c0_i32_0 : i32, i32
  }
  func.func @transform_4(%arg0: i32) -> (i32, i32) {
    %c0_i32 = arith.constant 0 : i32
    %c0_i32_0 = arith.constant 0 : i32
    %c0_i32_1 = arith.constant 0 : i32
    return %c0_i32, %c0_i32_0 : i32, i32
  }
  func.func @transform_5(%arg0: i32) -> (i32, i32) {
    %c0_i32 = arith.constant 0 : i32
    %c0_i32_0 = arith.constant 0 : i32
    return %arg0, %c0_i32 : i32, i32
  }
}

</mosaic_0001>

<llo_original>
// kernel: network_forward.1
$region0: #{network_forward.1}
  #allocation0 [shape = 'u32[]', space=smem, size = 0x4, offset = 0x4, fixed_abs, tag = 'smem constant byte address 0x4 - core index']
  #allocation1 [shape = 'u32[72,128]{1,0:T(1,128)}', space=vmem, size = 0x9000, scoped, tag = 'internal scratch']
  %s0 = inlined_call_operand.hbm [shape: f32[8,64], index: 0, kind: input, shape index: {}]
  %s1 = inlined_call_operand.hbm [shape: bf16[64,512], index: 1, kind: input, shape index: {}]
  %s2 = inlined_call_operand.hbm [shape: bf16[4,512,512], index: 2, kind: input, shape index: {}]
  %s3 = inlined_call_operand.hbm [shape: f32[6,512], index: 3, kind: input, shape index: {}]
  %s4 = inlined_call_operand.hbm [shape: bf16[512,128], index: 4, kind: input, shape index: {}]
  %s5 = inlined_call_operand.vmem [shape: f32[8,128], index: 5, kind: output, shape index: {}]
  %s6 = sld [smem:[#allocation0]]
  $region50: #{network_forward.1} parent=0
    _
  %s8 = ssub.s32 1, %s6
  %s9 = scalar_select 0, %s8, %s6
  $region1: #{network_forward.1} parent=0
    #allocation2 [shape = 'u8[4096]{0}', space=vmem, size = 0x1000, scoped, tag = 'input window, operand 0, single buffered']
    #allocation3 [shape = 's32[1]{0}', space=sflag, size = 0x4, scoped, tag = 'scoped memory for network_forward.1']
    #allocation4 [shape = 'u8[65536]{0}', space=vmem, size = 0x10000, scoped, tag = 'input window, operand 1, single buffered']
    #allocation5 [shape = 's32[1]{0}', space=sflag, size = 0x4, scoped, tag = 'scoped memory for network_forward.1']
    #allocation6 [shape = 'u8[2097152]{0}', space=vmem, size = 0x200000, scoped, tag = 'input window, operand 2, single buffered']
    #allocation7 [shape = 'u8[16384]{0}', space=vmem, size = 0x4000, scoped, tag = 'input window, operand 3, single buffered']
    #allocation8 [shape = 's32[1]{0}', space=sflag, size = 0x4, scoped, tag = 'scoped memory for network_forward.1']
    #allocation9 [shape = 'u8[131072]{0}', space=vmem, size = 0x20000, scoped, tag = 'input window, operand 4, single buffered']
    %10 = vsyncpa [#allocation3], 0
    %11 = vsyncpa [#allocation5], 0
    %12 = vsyncpa [#allocation8], 0
    // Predicated region
    $region2: #{network_forward.1} parent=1 // pred_check
      _
    $region3: #{network_forward.1} parent=1 // pred_check_branch
      %14 = sbr.rel (0) target = $region5
    $region4: #{network_forward.1} parent=1 // pred_region
      %16 = vsyncadd [#allocation3], 0
      %s18 = sshll.u32 %s0, 4
      %s19 = int_to_ptr.hbm [resolvable:$true] %s18
      %s20 = sshll.u32 [#allocation2], 4
      %s21 = int_to_ptr.vmem [resolvable:$true] %s20
      %23 = dma.hbm_to_vmem [thread:$0]  %s19, 128, %s21, [#allocation3]
    $region5: #{network_forward.1} parent=1 // pred_fallthru
      _
    // Predicated region
    $region6: #{network_forward.1} parent=1 // pred_check
      _
    $region7: #{network_forward.1} parent=1 // pred_check_branch
      %25 = sbr.rel (0) target = $region9
    $region8: #{network_forward.1} parent=1 // pred_region
      %27 = vsyncadd [#allocation5], 0
      %s28 = sshll.u32 %s1, 4
      %s29 = int_to_ptr.hbm [resolvable:$true] %s28
      %s30 = sshll.u32 [#allocation4], 4
      %s31 = int_to_ptr.vmem [resolvable:$true] %s30
      %36 = dma.hbm_to_vmem [thread:$0]  %s29, 2048, %s31, [#allocation5], 256, 256, 16
    $region9: #{network_forward.1} parent=1 // pred_fallthru
      _
    // Predicated region
    $region10: #{network_forward.1} parent=1 // pred_check
      _
    $region11: #{network_forward.1} parent=1 // pred_check_branch
      %38 = sbr.rel (0) target = $region13
    $region12: #{network_forward.1} parent=1 // pred_region
      %40 = vsyncadd [#allocation5], 0
      %s41 = sshll.u32 %s2, 4
      %s42 = int_to_ptr.hbm [resolvable:$true] %s41
      %s43 = sshll.u32 [#allocation6], 4
      %s44 = int_to_ptr.vmem [resolvable:$true] %s43
      %49 = dma.hbm_to_vmem [thread:$0]  %s42, 65536, %s44, [#allocation5], 256, 256, 16
    $region13: #{network_forward.1} parent=1 // pred_fallthru
      _
    // Predicated region
    $region14: #{network_forward.1} parent=1 // pred_check
      _
    $region15: #{network_forward.1} parent=1 // pred_check_branch
      %51 = sbr.rel (0) target = $region17
    $region16: #{network_forward.1} parent=1 // pred_region
      %53 = vsyncadd [#allocation8], 0
      %s55 = sshll.u32 %s3, 4
      %s56 = int_to_ptr.hbm [resolvable:$true] %s55
      %s57 = sshll.u32 [#allocation7], 4
      %s58 = int_to_ptr.vmem [resolvable:$true] %s57
      %60 = dma.hbm_to_vmem [thread:$0]  %s56, 512, %s58, [#allocation8]
    $region17: #{network_forward.1} parent=1 // pred_fallthru
      _
    // Predicated region
    $region18: #{network_forward.1} parent=1 // pred_check
      _
    $region19: #{network_forward.1} parent=1 // pred_check_branch
      %62 = sbr.rel (0) target = $region21
    $region20: #{network_forward.1} parent=1 // pred_region
      %64 = vsyncadd [#allocation8], 0
      %s65 = sshll.u32 %s4, 4
      %s66 = int_to_ptr.hbm [resolvable:$true] %s65
      %s67 = sshll.u32 [#allocation9], 4
      %s68 = int_to_ptr.vmem [resolvable:$true] %s67
      %73 = dma.hbm_to_vmem [thread:$0]  %s66, 4096, %s68, [#allocation8], 64, 64, 4
    $region21: #{network_forward.1} parent=1 // pred_fallthru
      _
    // Predicated region
    $region22: #{network_forward.1} parent=1 // pred_check
      _
    $region23: #{network_forward.1} parent=1 // pred_check_branch
      %75 = sbr.rel (0) target = $region25
    $region24: #{network_forward.1} parent=1 // pred_region
      %77 = dma.done [#allocation3], 128
    $region25: #{network_forward.1} parent=1 // pred_fallthru
      _
    // Predicated region
    $region26: #{network_forward.1} parent=1 // pred_check
      _
    $region27: #{network_forward.1} parent=1 // pred_check_branch
      %79 = sbr.rel (0) target = $region29
    $region28: #{network_forward.1} parent=1 // pred_region
      %81 = dma.done [#allocation5], 2048
    $region29: #{network_forward.1} parent=1 // pred_fallthru
      _
    // Predicated region
    $region30: #{network_forward.1} parent=1 // pred_check
      _
    $region31: #{network_forward.1} parent=1 // pred_check_branch
      %83 = sbr.rel (0) target = $region33
    $region32: #{network_forward.1} parent=1 // pred_region
      %85 = dma.done [#allocation5], 65536
    $region33: #{network_forward.1} parent=1 // pred_fallthru
      _
    // Predicated region
    $region34: #{network_forward.1} parent=1 // pred_check
      _
    $region35: #{network_forward.1} parent=1 // pred_check_branch
      %87 = sbr.rel (0) target = $region37
    $region36: #{network_forward.1} parent=1 // pred_region
      %89 = dma.done [#allocation8], 512
    $region37: #{network_forward.1} parent=1 // pred_fallthru
      _
    // Predicated region
    $region38: #{network_forward.1} parent=1 // pred_check
      _
    $region39: #{network_forward.1} parent=1 // pred_check_branch
      %91 = sbr.rel (0) target = $region41
    $region40: #{network_forward.1} parent=1 // pred_region
      %93 = dma.done [#allocation8], 4096
    $region41: #{network_forward.1} parent=1 // pred_fallthru
      _
    %v95 = vld [vmem:[#allocation2] sm:$0xff]
    %v96 = vpack.c.bf16 %v95, %v95
    %v97 = vld [vmem:[#allocation4] sm:$0xff]
    %v98 = vld [vmem:[#allocation4 + $0x8] sm:$0xff]
    %v99 = vld [vmem:[#allocation4 + $0x10] sm:$0xff]
    %v100 = vld [vmem:[#allocation4 + $0x18] sm:$0xff]
    %v101 = vld [vmem:[#allocation4 + $0x20] sm:$0xff]
    %v102 = vld [vmem:[#allocation4 + $0x28] sm:$0xff]
    %v103 = vld [vmem:[#allocation4 + $0x30] sm:$0xff]
    %v104 = vld [vmem:[#allocation4 + $0x38] sm:$0xff]
    %v105 = vld [vmem:[#allocation4 + $0x40] sm:$0xff]
    %v106 = vld [vmem:[#allocation4 + $0x48] sm:$0xff]
    %v107 = vld [vmem:[#allocation4 + $0x50] sm:$0xff]
    %v108 = vld [vmem:[#allocation4 + $0x58] sm:$0xff]
    %v109 = vld [vmem:[#allocation4 + $0x60] sm:$0xff]
    %v110 = vld [vmem:[#allocation4 + $0x68] sm:$0xff]
    %v111 = vld [vmem:[#allocation4 + $0x70] sm:$0xff]
    %v112 = vld [vmem:[#allocation4 + $0x78] sm:$0xff]
    %v113 = vld [vmem:[#allocation7] ss:$8 sm:$0xf]
    %v115 = vperm.slane %v113, 0
    %v116 = vperm.slane %v113, 1
    %v117 = vperm.slane %v113, 2
    %v118 = vperm.slane %v113, 3
    %v139 = vunpack.c.l.b16 %v97
    %v140 = vunpack.c.h.b16 %v97
    %v141 = vunpack.c.l.b16 %v98
    %v142 = vunpack.c.h.b16 %v98
    %v143 = vunpack.c.l.b16 %v99
    %v144 = vunpack.c.h.b16 %v99
    %v145 = vunpack.c.l.b16 %v100
    %v146 = vunpack.c.h.b16 %v100
    %v147 = vunpack.c.l.b16 %v101
    %v148 = vunpack.c.h.b16 %v101
    %v149 = vunpack.c.l.b16 %v102
    %v150 = vunpack.c.h.b16 %v102
    %v151 = vunpack.c.l.b16 %v103
    %v152 = vunpack.c.h.b16 %v103
    %v153 = vunpack.c.l.b16 %v104
    %v154 = vunpack.c.h.b16 %v104
    %v155 = vunpack.c.l.b16 %v105
    %v156 = vunpack.c.h.b16 %v105
    %v157 = vunpack.c.l.b16 %v106
    %v158 = vunpack.c.h.b16 %v106
    %v159 = vunpack.c.l.b16 %v107
    %v160 = vunpack.c.h.b16 %v107
    %v161 = vunpack.c.l.b16 %v108
    %v162 = vunpack.c.h.b16 %v108
    %v163 = vunpack.c.l.b16 %v109
    %v164 = vunpack.c.h.b16 %v109
    %v165 = vunpack.c.l.b16 %v110
    %v166 = vunpack.c.h.b16 %v110
    %v167 = vunpack.c.l.b16 %v111
    %v168 = vunpack.c.h.b16 %v111
    %v169 = vunpack.c.l.b16 %v112
    %v170 = vunpack.c.h.b16 %v112
    %v171 = vpack.c.b16 %v143, %v139
    %v172 = vpack.c.b16 %v144, %v140
    %v173 = vpack.c.b16 %v145, %v141
    %v174 = vpack.c.b16 %v146, %v142
    %v175 = vpack.c.b16 %v151, %v147
    %v176 = vpack.c.b16 %v152, %v148
    %v177 = vpack.c.b16 %v153, %v149
    %v178 = vpack.c.b16 %v154, %v150
    %v179 = vpack.c.b16 %v159, %v155
    %v180 = vpack.c.b16 %v160, %v156
    %v181 = vpack.c.b16 %v161, %v157
    %v182 = vpack.c.b16 %v162, %v158
    %v183 = vpack.c.b16 %v167, %v163
    %v184 = vpack.c.b16 %v168, %v164
    %v185 = vpack.c.b16 %v169, %v165
    %v186 = vpack.c.b16 %v170, %v166
    %vm203 = vcmask 523264
    %v205 = vsel %vm203, %v96, 0
    %207 = vmatpush.bf16.msra.mxu0 0
    %208 = vmatpush.bf16.msra.mxu0 0
    %209 = vmatpush.bf16.msra.mxu0 0
    %210 = vmatpush.bf16.msra.mxu0 0
    %211 = vmatpush.bf16.msra.mxu0 %v183
    %212 = vmatpush.bf16.msra.mxu0 %v179
    %213 = vmatpush.bf16.msra.mxu0 %v175
    %214 = vmatpush.bf16.msra.mxu0 %v171
    %215 = vmatmul.bf16.gmra.mxu0 %v205
    %v216 = vpop.f32.mrf.mxu0
    %v217 = vadd.f32 %v115, %v216
    %v218 = vpop.f32.mrf.mxu0
    %219 = vdwg.mxu0
    %220 = vmatpush.bf16.msra.mxu0 0
    %221 = vmatpush.bf16.msra.mxu0 0
    %222 = vmatpush.bf16.msra.mxu0 0
    %223 = vmatpush.bf16.msra.mxu0 0
    %224 = vmatpush.bf16.msra.mxu0 %v184
    %225 = vmatpush.bf16.msra.mxu0 %v180
    %226 = vmatpush.bf16.msra.mxu0 %v176
    %227 = vmatpush.bf16.msra.mxu0 %v172
    %228 = vmatmul.bf16.gmra.mxu0 %v205
    %v229 = vpop.f32.mrf.mxu0
    %v230 = vadd.f32 %v116, %v229
    %v231 = vpop.f32.mrf.mxu0
    %232 = vdwg.mxu0
    %233 = vmatpush.bf16.msra.mxu0 0
    %234 = vmatpush.bf16.msra.mxu0 0
    %235 = vmatpush.bf16.msra.mxu0 0
    %236 = vmatpush.bf16.msra.mxu0 0
    %237 = vmatpush.bf16.msra.mxu0 %v185
    %238 = vmatpush.bf16.msra.mxu0 %v181
    %239 = vmatpush.bf16.msra.mxu0 %v177
    %240 = vmatpush.bf16.msra.mxu0 %v173
    %241 = vmatmul.bf16.gmra.mxu0 %v205
    %v242 = vpop.f32.mrf.mxu0
    %v243 = vadd.f32 %v117, %v242
    %v244 = vpop.f32.mrf.mxu0
    %245 = vdwg.mxu0
    %246 = vmatpush.bf16.msra.mxu0 0
    %247 = vmatpush.bf16.msra.mxu0 0
    %248 = vmatpush.bf16.msra.mxu0 0
    %249 = vmatpush.bf16.msra.mxu0 0
    %250 = vmatpush.bf16.msra.mxu0 %v186
    %251 = vmatpush.bf16.msra.mxu0 %v182
    %252 = vmatpush.bf16.msra.mxu0 %v178
    %253 = vmatpush.bf16.msra.mxu0 %v174
    %254 = vmatmul.bf16.gmra.mxu0 %v205
    %v255 = vpop.f32.mrf.mxu0
    %v256 = vadd.f32 %v118, %v255
    %v257 = vpop.f32.mrf.mxu0
    %258 = vdwg.mxu0
    %v259 = vmax.f32 %v217, 0.0
    %v260 = vmax.f32 %v230, 0.0
    %v261 = vmax.f32 %v243, 0.0
    %v262 = vmax.f32 %v256, 0.0
    %v263 = vpack.c.bf16 %v259, %v259
    %v264 = vpack.c.bf16 %v260, %v260
    %v265 = vpack.c.bf16 %v261, %v261
    %v266 = vpack.c.bf16 %v262, %v262
    %v267 = vld [vmem:[#allocation6] sm:$0xff]
    %v268 = vld [vmem:[#allocation6 + $0x8] sm:$0xff]
    %v269 = vld [vmem:[#allocation6 + $0x10] sm:$0xff]
    %v270 = vld [vmem:[#allocation6 + $0x18] sm:$0xff]
    %v271 = vld [vmem:[#allocation6 + $0x20] sm:$0xff]
    %v272 = vld [vmem:[#allocation6 + $0x28] sm:$0xff]
    %v273 = vld [vmem:[#allocation6 + $0x30] sm:$0xff]
    %v274 = vld [vmem:[#allocation6 + $0x38] sm:$0xff]
    %v275 = vld [vmem:[#allocation6 + $0x40] sm:$0xff]
    %v276 = vld [vmem:[#allocation6 + $0x48] sm:$0xff]
    %v277 = vld [vmem:[#allocation6 + $0x50] sm:$0xff]
    %v278 = vld [vmem:[#allocation6 + $0x58] sm:$0xff]
    %v279 = vld [vmem:[#allocation6 + $0x60] sm:$0xff]
    %v280 = vld [vmem:[#allocation6 + $0x68] sm:$0xff]
    %v281 = vld [vmem:[#allocation6 + $0x70] sm:$0xff]
    %v282 = vld [vmem:[#allocation6 + $0x78] sm:$0xff]
    %v283 = vld [vmem:[#allocation6 + $0x80] sm:$0xff]
    %v284 = vld [vmem:[#allocation6 + $0x88] sm:$0xff]
    %v285 = vld [vmem:[#allocation6 + $0x90] sm:$0xff]
    %v286 = vld [vmem:[#allocation6 + $0x98] sm:$0xff]
    %v287 = vld [vmem:[#allocation6 + $0xa0] sm:$0xff]
    %v288 = vld [vmem:[#allocation6 + $0xa8] sm:$0xff]
    %v289 = vld [vmem:[#allocation6 + $0xb0] sm:$0xff]
    %v290 = vld [vmem:[#allocation6 + $0xb8] sm:$0xff]
    %v291 = vld [vmem:[#allocation6 + $0xc0] sm:$0xff]
    %v292 = vld [vmem:[#allocation6 + $0xc8] sm:$0xff]
    %v293 = vld [vmem:[#allocation6 + $0xd0] sm:$0xff]
    %v294 = vld [vmem:[#allocation6 + $0xd8] sm:$0xff]
    %v295 = vld [vmem:[#allocation6 + $0xe0] sm:$0xff]
    %v296 = vld [vmem:[#allocation6 + $0xe8] sm:$0xff]
    %v297 = vld [vmem:[#allocation6 + $0xf0] sm:$0xff]
    %v298 = vld [vmem:[#allocation6 + $0xf8] sm:$0xff]
    %v299 = vld [vmem:[#allocation6 + $0x100] sm:$0xff]
    %v300 = vld [vmem:[#allocation6 + $0x108] sm:$0xff]
    %v301 = vld [vmem:[#allocation6 + $0x110] sm:$0xff]
    %v302 = vld [vmem:[#allocation6 + $0x118] sm:$0xff]
    %v303 = vld [vmem:[#allocation6 + $0x120] sm:$0xff]
    %v304 = vld [vmem:[#allocation6 + $0x128] sm:$0xff]
    %v305 = vld [vmem:[#allocation6 + $0x130] sm:$0xff]
    %v306 = vld [vmem:[#allocation6 + $0x138] sm:$0xff]
    %v307 = vld [vmem:[#allocation6 + $0x140] sm:$0xff]
    %v308 = vld [vmem:[#allocation6 + $0x148] sm:$0xff]
    %v309 = vld [vmem:[#allocation6 + $0x150] sm:$0xff]
    %v310 = vld [vmem:[#allocation6 + $0x158] sm:$0xff]
    %v311 = vld [vmem:[#allocation6 + $0x160] sm:$0xff]
    %v312 = vld [vmem:[#allocation6 + $0x168] sm:$0xff]
    %v313 = vld [vmem:[#allocation6 + $0x170] sm:$0xff]
    %v314 = vld [vmem:[#allocation6 + $0x178] sm:$0xff]
    %v315 = vld [vmem:[#allocation6 + $0x180] sm:$0xff]
    %v316 = vld [vmem:[#allocation6 + $0x188] sm:$0xff]
    %v317 = vld [vmem:[#allocation6 + $0x190] sm:$0xff]
    %v318 = vld [vmem:[#allocation6 + $0x198] sm:$0xff]
    %v319 = vld [vmem:[#allocation6 + $0x1a0] sm:$0xff]
    %v320 = vld [vmem:[#allocation6 + $0x1a8] sm:$0xff]
    %v321 = vld [vmem:[#allocation6 + $0x1b0] sm:$0xff]
    %v322 = vld [vmem:[#allocation6 + $0x1b8] sm:$0xff]
    %v323 = vld [vmem:[#allocation6 + $0x1c0] sm:$0xff]
    %v324 = vld [vmem:[#allocation6 + $0x1c8] sm:$0xff]
    %v325 = vld [vmem:[#allocation6 + $0x1d0] sm:$0xff]
    %v326 = vld [vmem:[#allocation6 + $0x1d8] sm:$0xff]
    %v327 = vld [vmem:[#allocation6 + $0x1e0] sm:$0xff]
    %v328 = vld [vmem:[#allocation6 + $0x1e8] sm:$0xff]
    %v329 = vld [vmem:[#allocation6 + $0x1f0] sm:$0xff]
    %v330 = vld [vmem:[#allocation6 + $0x1f8] sm:$0xff]
    %v331 = vld [vmem:[#allocation6 + $0x200] sm:$0xff]
    %v332 = vld [vmem:[#allocation6 + $0x208] sm:$0xff]
    %v333 = vld [vmem:[#allocation6 + $0x210] sm:$0xff]
    %v334 = vld [vmem:[#allocation6 + $0x218] sm:$0xff]
    %v335 = vld [vmem:[#allocation6 + $0x220] sm:$0xff]
    %v336 = vld [vmem:[#allocation6 + $0x228] sm:$0xff]
    %v337 = vld [vmem:[#allocation6 + $0x230] sm:$0xff]
    %v338 = vld [vmem:[#allocation6 + $0x238] sm:$0xff]
    %v339 = vld [vmem:[#allocation6 + $0x240] sm:$0xff]
    %v340 = vld [vmem:[#allocation6 + $0x248] sm:$0xff]
    %v341 = vld [vmem:[#allocation6 + $0x250] sm:$0xff]
    %v342 = vld [vmem:[#allocation6 + $0x258] sm:$0xff]
    %v343 = vld [vmem:[#allocation6 + $0x260] sm:$0xff]
    %v344 = vld [vmem:[#allocation6 + $0x268] sm:$0xff]
    %v345 = vld [vmem:[#allocation6 + $0x270] sm:$0xff]
    %v346 = vld [vmem:[#allocation6 + $0x278] sm:$0xff]
    %v347 = vld [vmem:[#allocation6 + $0x280] sm:$0xff]
    %v348 = vld [vmem:[#allocation6 + $0x288] sm:$0xff]
    %v349 = vld [vmem:[#allocation6 + $0x290] sm:$0xff]
    %v350 = vld [vmem:[#allocation6 + $0x298] sm:$0xff]
    %v351 = vld [vmem:[#allocation6 + $0x2a0] sm:$0xff]
    %v352 = vld [vmem:[#allocation6 + $0x2a8] sm:$0xff]
    %v353 = vld [vmem:[#allocation6 + $0x2b0] sm:$0xff]
    %v354 = vld [vmem:[#allocation6 + $0x2b8] sm:$0xff]
    %v355 = vld [vmem:[#allocation6 + $0x2c0] sm:$0xff]
    %v356 = vld [vmem:[#allocation6 + $0x2c8] sm:$0xff]
    %v357 = vld [vmem:[#allocation6 + $0x2d0] sm:$0xff]
    %v358 = vld [vmem:[#allocation6 + $0x2d8] sm:$0xff]
    %v359 = vld [vmem:[#allocation6 + $0x2e0] sm:$0xff]
    %v360 = vld [vmem:[#allocation6 + $0x2e8] sm:$0xff]
    %v361 = vld [vmem:[#allocation6 + $0x2f0] sm:$0xff]
    %v362 = vld [vmem:[#allocation6 + $0x2f8] sm:$0xff]
    %v363 = vld [vmem:[#allocation6 + $0x300] sm:$0xff]
    %v364 = vld [vmem:[#allocation6 + $0x308] sm:$0xff]
    %v365 = vld [vmem:[#allocation6 + $0x310] sm:$0xff]
    %v366 = vld [vmem:[#allocation6 + $0x318] sm:$0xff]
    %v367 = vld [vmem:[#allocation6 + $0x320] sm:$0xff]
    %v368 = vld [vmem:[#allocation6 + $0x328] sm:$0xff]
    %v369 = vld [vmem:[#allocation6 + $0x330] sm:$0xff]
    %v370 = vld [vmem:[#allocation6 + $0x338] sm:$0xff]
    %v371 = vld [vmem:[#allocation6 + $0x340] sm:$0xff]
    %v372 = vld [vmem:[#allocation6 + $0x348] sm:$0xff]
    %v373 = vld [vmem:[#allocation6 + $0x350] sm:$0xff]
    %v374 = vld [vmem:[#allocation6 + $0x358] sm:$0xff]
    %v375 = vld [vmem:[#allocation6 + $0x360] sm:$0xff]
    %v376 = vld [vmem:[#allocation6 + $0x368] sm:$0xff]
    %v377 = vld [vmem:[#allocation6 + $0x370] sm:$0xff]
    %v378 = vld [vmem:[#allocation6 + $0x378] sm:$0xff]
    %v379 = vld [vmem:[#allocation6 + $0x380] sm:$0xff]
    %v380 = vld [vmem:[#allocation6 + $0x388] sm:$0xff]
    %v381 = vld [vmem:[#allocation6 + $0x390] sm:$0xff]
    %v382 = vld [vmem:[#allocation6 + $0x398] sm:$0xff]
    %v383 = vld [vmem:[#allocation6 + $0x3a0] sm:$0xff]
    %v384 = vld [vmem:[#allocation6 + $0x3a8] sm:$0xff]
    %v385 = vld [vmem:[#allocation6 + $0x3b0] sm:$0xff]
    %v386 = vld [vmem:[#allocation6 + $0x3b8] sm:$0xff]
    %v387 = vld [vmem:[#allocation6 + $0x3c0] sm:$0xff]
    %v388 = vld [vmem:[#allocation6 + $0x3c8] sm:$0xff]
    %v389 = vld [vmem:[#allocation6 + $0x3d0] sm:$0xff]
    %v390 = vld [vmem:[#allocation6 + $0x3d8] sm:$0xff]
    %v391 = vld [vmem:[#allocation6 + $0x3e0] sm:$0xff]
    %v392 = vld [vmem:[#allocation6 + $0x3e8] sm:$0xff]
    %v393 = vld [vmem:[#allocation6 + $0x3f0] sm:$0xff]
    %v394 = vld [vmem:[#allocation6 + $0x3f8] sm:$0xff]
    %s395 = scalar_lea.vmem [#allocation7], 1
    %v396 = vld [vmem:[%s395] ss:$8 sm:$0xf]
    %v398 = vperm.slane %v396, 0
    %v399 = vperm.slane %v396, 1
    %v400 = vperm.slane %v396, 2
    %v401 = vperm.slane %v396, 3
    %v534 = vunpack.c.l.b16 %v267
    %v535 = vunpack.c.h.b16 %v267
    %v536 = vunpack.c.l.b16 %v268
    %v537 = vunpack.c.h.b16 %v268
    %v538 = vunpack.c.l.b16 %v269
    %v539 = vunpack.c.h.b16 %v269
    %v540 = vunpack.c.l.b16 %v270
    %v541 = vunpack.c.h.b16 %v270
    %v542 = vunpack.c.l.b16 %v271
    %v543 = vunpack.c.h.b16 %v271
    %v544 = vunpack.c.l.b16 %v272
    %v545 = vunpack.c.h.b16 %v272
    %v546 = vunpack.c.l.b16 %v273
    %v547 = vunpack.c.h.b16 %v273
    %v548 = vunpack.c.l.b16 %v274
    %v549 = vunpack.c.h.b16 %v274
    %v550 = vunpack.c.l.b16 %v275
    %v551 = vunpack.c.h.b16 %v275
    %v552 = vunpack.c.l.b16 %v276
    %v553 = vunpack.c.h.b16 %v276
    %v554 = vunpack.c.l.b16 %v277
    %v555 = vunpack.c.h.b16 %v277
    %v556 = vunpack.c.l.b16 %v278
    %v557 = vunpack.c.h.b16 %v278
    %v558 = vunpack.c.l.b16 %v279
    %v559 = vunpack.c.h.b16 %v279
    %v560 = vunpack.c.l.b16 %v280
    %v561 = vunpack.c.h.b16 %v280
    %v562 = vunpack.c.l.b16 %v281
    %v563 = vunpack.c.h.b16 %v281
    %v564 = vunpack.c.l.b16 %v282
    %v565 = vunpack.c.h.b16 %v282
    %v566 = vunpack.c.l.b16 %v283
    %v567 = vunpack.c.h.b16 %v283
    %v568 = vunpack.c.l.b16 %v284
    %v569 = vunpack.c.h.b16 %v284
    %v570 = vunpack.c.l.b16 %v285
    %v571 = vunpack.c.h.b16 %v285
    %v572 = vunpack.c.l.b16 %v286
    %v573 = vunpack.c.h.b16 %v286
    %v574 = vunpack.c.l.b16 %v287
    %v575 = vunpack.c.h.b16 %v287
    %v576 = vunpack.c.l.b16 %v288
    %v577 = vunpack.c.h.b16 %v288
    %v578 = vunpack.c.l.b16 %v289
    %v579 = vunpack.c.h.b16 %v289
    %v580 = vunpack.c.l.b16 %v290
    %v581 = vunpack.c.h.b16 %v290
    %v582 = vunpack.c.l.b16 %v291
    %v583 = vunpack.c.h.b16 %v291
    %v584 = vunpack.c.l.b16 %v292
    %v585 = vunpack.c.h.b16 %v292
    %v586 = vunpack.c.l.b16 %v293
    %v587 = vunpack.c.h.b16 %v293
    %v588 = vunpack.c.l.b16 %v294
    %v589 = vunpack.c.h.b16 %v294
    %v590 = vunpack.c.l.b16 %v295
    %v591 = vunpack.c.h.b16 %v295
    %v592 = vunpack.c.l.b16 %v296
    %v593 = vunpack.c.h.b16 %v296
    %v594 = vunpack.c.l.b16 %v297
    %v595 = vunpack.c.h.b16 %v297
    %v596 = vunpack.c.l.b16 %v298
    %v597 = vunpack.c.h.b16 %v298
    %v598 = vunpack.c.l.b16 %v299
    %v599 = vunpack.c.h.b16 %v299
    %v600 = vunpack.c.l.b16 %v300
    %v601 = vunpack.c.h.b16 %v300
    %v602 = vunpack.c.l.b16 %v301
    %v603 = vunpack.c.h.b16 %v301
    %v604 = vunpack.c.l.b16 %v302
    %v605 = vunpack.c.h.b16 %v302
    %v606 = vunpack.c.l.b16 %v303
    %v607 = vunpack.c.h.b16 %v303
    %v608 = vunpack.c.l.b16 %v304
    %v609 = vunpack.c.h.b16 %v304
    %v610 = vunpack.c.l.b16 %v305
    %v611 = vunpack.c.h.b16 %v305
    %v612 = vunpack.c.l.b16 %v306
    %v613 = vunpack.c.h.b16 %v306
    %v614 = vunpack.c.l.b16 %v307
    %v615 = vunpack.c.h.b16 %v307
    %v616 = vunpack.c.l.b16 %v308
    %v617 = vunpack.c.h.b16 %v308
    %v618 = vunpack.c.l.b16 %v309
    %v619 = vunpack.c.h.b16 %v309
    %v620 = vunpack.c.l.b16 %v310
    %v621 = vunpack.c.h.b16 %v310
    %v622 = vunpack.c.l.b16 %v311
    %v623 = vunpack.c.h.b16 %v311
    %v624 = vunpack.c.l.b16 %v312
    %v625 = vunpack.c.h.b16 %v312
    %v626 = vunpack.c.l.b16 %v313
    %v627 = vunpack.c.h.b16 %v313
    %v628 = vunpack.c.l.b16 %v314
    %v629 = vunpack.c.h.b16 %v314
    %v630 = vunpack.c.l.b16 %v315
    %v631 = vunpack.c.h.b16 %v315
    %v632 = vunpack.c.l.b16 %v316
    %v633 = vunpack.c.h.b16 %v316
    %v634 = vunpack.c.l.b16 %v317
    %v635 = vunpack.c.h.b16 %v317
    %v636 = vunpack.c.l.b16 %v318
    %v637 = vunpack.c.h.b16 %v318
    %v638 = vunpack.c.l.b16 %v319
    %v639 = vunpack.c.h.b16 %v319
    %v640 = vunpack.c.l.b16 %v320
    %v641 = vunpack.c.h.b16 %v320
    %v642 = vunpack.c.l.b16 %v321
    %v643 = vunpack.c.h.b16 %v321
    %v644 = vunpack.c.l.b16 %v322
    %v645 = vunpack.c.h.b16 %v322
    %v646 = vunpack.c.l.b16 %v323
    %v647 = vunpack.c.h.b16 %v323
    %v648 = vunpack.c.l.b16 %v324
    %v649 = vunpack.c.h.b16 %v324
    %v650 = vunpack.c.l.b16 %v325
    %v651 = vunpack.c.h.b16 %v325
    %v652 = vunpack.c.l.b16 %v326
    %v653 = vunpack.c.h.b16 %v326
    %v654 = vunpack.c.l.b16 %v327
    %v655 = vunpack.c.h.b16 %v327
    %v656 = vunpack.c.l.b16 %v328
    %v657 = vunpack.c.h.b16 %v328
    %v658 = vunpack.c.l.b16 %v329
    %v659 = vunpack.c.h.b16 %v329
    %v660 = vunpack.c.l.b16 %v330
    %v661 = vunpack.c.h.b16 %v330
    %v662 = vunpack.c.l.b16 %v331
    %v663 = vunpack.c.h.b16 %v331
    %v664 = vunpack.c.l.b16 %v332
    %v665 = vunpack.c.h.b16 %v332
    %v666 = vunpack.c.l.b16 %v333
    %v667 = vunpack.c.h.b16 %v333
    %v668 = vunpack.c.l.b16 %v334
    %v669 = vunpack.c.h.b16 %v334
    %v670 = vunpack.c.l.b16 %v335
    %v671 = vunpack.c.h.b16 %v335
    %v672 = vunpack.c.l.b16 %v336
    %v673 = vunpack.c.h.b16 %v336
    %v674 = vunpack.c.l.b16 %v337
    %v675 = vunpack.c.h.b16 %v337
    %v676 = vunpack.c.l.b16 %v338
    %v677 = vunpack.c.h.b16 %v338
    %v678 = vunpack.c.l.b16 %v339
    %v679 = vunpack.c.h.b16 %v339
    %v680 = vunpack.c.l.b16 %v340
    %v681 = vunpack.c.h.b16 %v340
    %v682 = vunpack.c.l.b16 %v341
    %v683 = vunpack.c.h.b16 %v341
    %v684 = vunpack.c.l.b16 %v342
    %v685 = vunpack.c.h.b16 %v342
    %v686 = vunpack.c.l.b16 %v343
    %v687 = vunpack.c.h.b16 %v343
    %v688 = vunpack.c.l.b16 %v344
    %v689 = vunpack.c.h.b16 %v344
    %v690 = vunpack.c.l.b16 %v345
    %v691 = vunpack.c.h.b16 %v345
    %v692 = vunpack.c.l.b16 %v346
    %v693 = vunpack.c.h.b16 %v346
    %v694 = vunpack.c.l.b16 %v347
    %v695 = vunpack.c.h.b16 %v347
    %v696 = vunpack.c.l.b16 %v348
    %v697 = vunpack.c.h.b16 %v348
    %v698 = vunpack.c.l.b16 %v349
    %v699 = vunpack.c.h.b16 %v349
    %v700 = vunpack.c.l.b16 %v350
    %v701 = vunpack.c.h.b16 %v350
    %v702 = vunpack.c.l.b16 %v351
    %v703 = vunpack.c.h.b16 %v351
    %v704 = vunpack.c.l.b16 %v352
    %v705 = vunpack.c.h.b16 %v352
    %v706 = vunpack.c.l.b16 %v353
    %v707 = vunpack.c.h.b16 %v353
    %v708 = vunpack.c.l.b16 %v354
    %v709 = vunpack.c.h.b16 %v354
    %v710 = vunpack.c.l.b16 %v355
    %v711 = vunpack.c.h.b16 %v355
    %v712 = vunpack.c.l.b16 %v356
    %v713 = vunpack.c.h.b16 %v356
    %v714 = vunpack.c.l.b16 %v357
    %v715 = vunpack.c.h.b16 %v357
    %v716 = vunpack.c.l.b16 %v358
    %v717 = vunpack.c.h.b16 %v358
    %v718 = vunpack.c.l.b16 %v359
    %v719 = vunpack.c.h.b16 %v359
    %v720 = vunpack.c.l.b16 %v360
    %v721 = vunpack.c.h.b16 %v360
    %v722 = vunpack.c.l.b16 %v361
    %v723 = vunpack.c.h.b16 %v361
    %v724 = vunpack.c.l.b16 %v362
    %v725 = vunpack.c.h.b16 %v362
    %v726 = vunpack.c.l.b16 %v363
    %v727 = vunpack.c.h.b16 %v363
    %v728 = vunpack.c.l.b16 %v364
    %v729 = vunpack.c.h.b16 %v364
    %v730 = vunpack.c.l.b16 %v365
    %v731 = vunpack.c.h.b16 %v365
    %v732 = vunpack.c.l.b16 %v366
    %v733 = vunpack.c.h.b16 %v366
    %v734 = vunpack.c.l.b16 %v367
    %v735 = vunpack.c.h.b16 %v367
    %v736 = vunpack.c.l.b16 %v368
    %v737 = vunpack.c.h.b16 %v368
    %v738 = vunpack.c.l.b16 %v369
    %v739 = vunpack.c.h.b16 %v369
    %v740 = vunpack.c.l.b16 %v370
    %v741 = vunpack.c.h.b16 %v370
    %v742 = vunpack.c.l.b16 %v371
    %v743 = vunpack.c.h.b16 %v371
    %v744 = vunpack.c.l.b16 %v372
    %v745 = vunpack.c.h.b16 %v372
    %v746 = vunpack.c.l.b16 %v373
    %v747 = vunpack.c.h.b16 %v373
    %v748 = vunpack.c.l.b16 %v374
    %v749 = vunpack.c.h.b16 %v374
    %v750 = vunpack.c.l.b16 %v375
    %v751 = vunpack.c.h.b16 %v375
    %v752 = vunpack.c.l.b16 %v376
    %v753 = vunpack.c.h.b16 %v376
    %v754 = vunpack.c.l.b16 %v377
    %v755 = vunpack.c.h.b16 %v377
    %v756 = vunpack.c.l.b16 %v378
    %v757 = vunpack.c.h.b16 %v378
    %v758 = vunpack.c.l.b16 %v379
    %v759 = vunpack.c.h.b16 %v379
    %v760 = vunpack.c.l.b16 %v380
    %v761 = vunpack.c.h.b16 %v380
    %v762 = vunpack.c.l.b16 %v381
    %v763 = vunpack.c.h.b16 %v381
    %v764 = vunpack.c.l.b16 %v382
    %v765 = vunpack.c.h.b16 %v382
    %v766 = vunpack.c.l.b16 %v383
    %v767 = vunpack.c.h.b16 %v383
    %v768 = vunpack.c.l.b16 %v384
    %v769 = vunpack.c.h.b16 %v384
    %v770 = vunpack.c.l.b16 %v385
    %v771 = vunpack.c.h.b16 %v385
    %v772 = vunpack.c.l.b16 %v386
    %v773 = vunpack.c.h.b16 %v386
    %v774 = vunpack.c.l.b16 %v387
    %v775 = vunpack.c.h.b16 %v387
    %v776 = vunpack.c.l.b16 %v388
    %v777 = vunpack.c.h.b16 %v388
    %v778 = vunpack.c.l.b16 %v389
    %v779 = vunpack.c.h.b16 %v389
    %v780 = vunpack.c.l.b16 %v390
    %v781 = vunpack.c.h.b16 %v390
    %v782 = vunpack.c.l.b16 %v391
    %v783 = vunpack.c.h.b16 %v391
    %v784 = vunpack.c.l.b16 %v392
    %v785 = vunpack.c.h.b16 %v392
    %v786 = vunpack.c.l.b16 %v393
    %v787 = vunpack.c.h.b16 %v393
    %v788 = vunpack.c.l.b16 %v394
    %v789 = vunpack.c.h.b16 %v394
    %v790 = vpack.c.b16 %v538, %v534
    %v791 = vpack.c.b16 %v539, %v535
    %v792 = vpack.c.b16 %v540, %v536
    %v793 = vpack.c.b16 %v541, %v537
    %v794 = vpack.c.b16 %v546, %v542
    %v795 = vpack.c.b16 %v547, %v543
    %v796 = vpack.c.b16 %v548, %v544
    %v797 = vpack.c.b16 %v549, %v545
    %v798 = vpack.c.b16 %v554, %v550
    %v799 = vpack.c.b16 %v555, %v551
    %v800 = vpack.c.b16 %v556, %v552
    %v801 = vpack.c.b16 %v557, %v553
    %v802 = vpack.c.b16 %v562, %v558
    %v803 = vpack.c.b16 %v563, %v559
    %v804 = vpack.c.b16 %v564, %v560
    %v805 = vpack.c.b16 %v565, %v561
    %v806 = vpack.c.b16 %v570, %v566
    %v807 = vpack.c.b16 %v571, %v567
    %v808 = vpack.c.b16 %v572, %v568
    %v809 = vpack.c.b16 %v573, %v569
    %v810 = vpack.c.b16 %v578, %v574
    %v811 = vpack.c.b16 %v579, %v575
    %v812 = vpack.c.b16 %v580, %v576
    %v813 = vpack.c.b16 %v581, %v577
    %v814 = vpack.c.b16 %v586, %v582
    %v815 = vpack.c.b16 %v587, %v583
    %v816 = vpack.c.b16 %v588, %v584
    %v817 = vpack.c.b16 %v589, %v585
    %v818 = vpack.c.b16 %v594, %v590
    %v819 = vpack.c.b16 %v595, %v591
    %v820 = vpack.c.b16 %v596, %v592
    %v821 = vpack.c.b16 %v597, %v593
    %v822 = vpack.c.b16 %v602, %v598
    %v823 = vpack.c.b16 %v603, %v599
    %v824 = vpack.c.b16 %v604, %v600
    %v825 = vpack.c.b16 %v605, %v601
    %v826 = vpack.c.b16 %v610, %v606
    %v827 = vpack.c.b16 %v611, %v607
    %v828 = vpack.c.b16 %v612, %v608
    %v829 = vpack.c.b16 %v613, %v609
    %v830 = vpack.c.b16 %v618, %v614
    %v831 = vpack.c.b16 %v619, %v615
    %v832 = vpack.c.b16 %v620, %v616
    %v833 = vpack.c.b16 %v621, %v617
    %v834 = vpack.c.b16 %v626, %v622
    %v835 = vpack.c.b16 %v627, %v623
    %v836 = vpack.c.b16 %v628, %v624
    %v837 = vpack.c.b16 %v629, %v625
    %v838 = vpack.c.b16 %v634, %v630
    %v839 = vpack.c.b16 %v635, %v631
    %v840 = vpack.c.b16 %v636, %v632
    %v841 = vpack.c.b16 %v637, %v633
    %v842 = vpack.c.b16 %v642, %v638
    %v843 = vpack.c.b16 %v643, %v639
    %v844 = vpack.c.b16 %v644, %v640
    %v845 = vpack.c.b16 %v645, %v641
    %v846 = vpack.c.b16 %v650, %v646
    %v847 = vpack.c.b16 %v651, %v647
    %v848 = vpack.c.b16 %v652, %v648
    %v849 = vpack.c.b16 %v653, %v649
    %v850 = vpack.c.b16 %v658, %v654
    %v851 = vpack.c.b16 %v659, %v655
    %v852 = vpack.c.b16 %v660, %v656
    %v853 = vpack.c.b16 %v661, %v657
    %v854 = vpack.c.b16 %v666, %v662
    %v855 = vpack.c.b16 %v667, %v663
    %v856 = vpack.c.b16 %v668, %v664
    %v857 = vpack.c.b16 %v669, %v665
    %v858 = vpack.c.b16 %v674, %v670
    %v859 = vpack.c.b16 %v675, %v671
    %v860 = vpack.c.b16 %v676, %v672
    %v861 = vpack.c.b16 %v677, %v673
    %v862 = vpack.c.b16 %v682, %v678
    %v863 = vpack.c.b16 %v683, %v679
    %v864 = vpack.c.b16 %v684, %v680
    %v865 = vpack.c.b16 %v685, %v681
    %v866 = vpack.c.b16 %v690, %v686
    %v867 = vpack.c.b16 %v691, %v687
    %v868 = vpack.c.b16 %v692, %v688
    %v869 = vpack.c.b16 %v693, %v689
    %v870 = vpack.c.b16 %v698, %v694
    %v871 = vpack.c.b16 %v699, %v695
    %v872 = vpack.c.b16 %v700, %v696
    %v873 = vpack.c.b16 %v701, %v697
    %v874 = vpack.c.b16 %v706, %v702
    %v875 = vpack.c.b16 %v707, %v703
    %v876 = vpack.c.b16 %v708, %v704
    %v877 = vpack.c.b16 %v709, %v705
    %v878 = vpack.c.b16 %v714, %v710
    %v879 = vpack.c.b16 %v715, %v711
    %v880 = vpack.c.b16 %v716, %v712
    %v881 = vpack.c.b16 %v717, %v713
    %v882 = vpack.c.b16 %v722, %v718
    %v883 = vpack.c.b16 %v723, %v719
    %v884 = vpack.c.b16 %v724, %v720
    %v885 = vpack.c.b16 %v725, %v721
    %v886 = vpack.c.b16 %v730, %v726
    %v887 = vpack.c.b16 %v731, %v727
    %v888 = vpack.c.b16 %v732, %v728
    %v889 = vpack.c.b16 %v733, %v729
    %v890 = vpack.c.b16 %v738, %v734
    %v891 = vpack.c.b16 %v739, %v735
    %v892 = vpack.c.b16 %v740, %v736
    %v893 = vpack.c.b16 %v741, %v737
    %v894 = vpack.c.b16 %v746, %v742
    %v895 = vpack.c.b16 %v747, %v743
    %v896 = vpack.c.b16 %v748, %v744
    %v897 = vpack.c.b16 %v749, %v745
    %v898 = vpack.c.b16 %v754, %v750
    %v899 = vpack.c.b16 %v755, %v751
    %v900 = vpack.c.b16 %v756, %v752
    %v901 = vpack.c.b16 %v757, %v753
    %v902 = vpack.c.b16 %v762, %v758
    %v903 = vpack.c.b16 %v763, %v759
    %v904 = vpack.c.b16 %v764, %v760
    %v905 = vpack.c.b16 %v765, %v761
    %v906 = vpack.c.b16 %v770, %v766
    %v907 = vpack.c.b16 %v771, %v767
    %v908 = vpack.c.b16 %v772, %v768
    %v909 = vpack.c.b16 %v773, %v769
    %v910 = vpack.c.b16 %v778, %v774
    %v911 = vpack.c.b16 %v779, %v775
    %v912 = vpack.c.b16 %v780, %v776
    %v913 = vpack.c.b16 %v781, %v777
    %v914 = vpack.c.b16 %v786, %v782
    %v915 = vpack.c.b16 %v787, %v783
    %v916 = vpack.c.b16 %v788, %v784
    %v917 = vpack.c.b16 %v789, %v785
    %1046 = vmatpush.bf16.msra.mxu0 %v818
    %1047 = vmatpush.bf16.msra.mxu0 %v814
    %1048 = vmatpush.bf16.msra.mxu0 %v810
    %1049 = vmatpush.bf16.msra.mxu0 %v806
    %1050 = vmatpush.bf16.msra.mxu0 %v802
    %1051 = vmatpush.bf16.msra.mxu0 %v798
    %1052 = vmatpush.bf16.msra.mxu0 %v794
    %1053 = vmatpush.bf16.msra.mxu0 %v790
    %1054 = vmatmul.bf16.gmra.mxu0 %v263
    %v1055 = vpop.f32.mrf.mxu0
    %v1056 = vadd.f32 %v398, %v1055
    %v1057 = vpop.f32.mrf.mxu0
    %1058 = vdwg.mxu0
    %1059 = vmatpush.bf16.msra.mxu0 %v850
    %1060 = vmatpush.bf16.msra.mxu0 %v846
    %1061 = vmatpush.bf16.msra.mxu0 %v842
    %1062 = vmatpush.bf16.msra.mxu0 %v838
    %1063 = vmatpush.bf16.msra.mxu0 %v834
    %1064 = vmatpush.bf16.msra.mxu0 %v830
    %1065 = vmatpush.bf16.msra.mxu0 %v826
    %1066 = vmatpush.bf16.msra.mxu0 %v822
    %1067 = vmatmul.bf16.gmra.mxu0 %v264
    %v1068 = vpop.f32.mrf.mxu0
    %v1069 = vadd.f32 %v1056, %v1068
    %v1070 = vpop.f32.mrf.mxu0
    %1071 = vdwg.mxu0
    %1072 = vmatpush.bf16.msra.mxu0 %v882
    %1073 = vmatpush.bf16.msra.mxu0 %v878
    %1074 = vmatpush.bf16.msra.mxu0 %v874
    %1075 = vmatpush.bf16.msra.mxu0 %v870
    %1076 = vmatpush.bf16.msra.mxu0 %v866
    %1077 = vmatpush.bf16.msra.mxu0 %v862
    %1078 = vmatpush.bf16.msra.mxu0 %v858
    %1079 = vmatpush.bf16.msra.mxu0 %v854
    %1080 = vmatmul.bf16.gmra.mxu0 %v265
    %v1081 = vpop.f32.mrf.mxu0
    %v1082 = vadd.f32 %v1069, %v1081
    %v1083 = vpop.f32.mrf.mxu0
    %1084 = vdwg.mxu0
    %1085 = vmatpush.bf16.msra.mxu0 %v914
    %1086 = vmatpush.bf16.msra.mxu0 %v910
    %1087 = vmatpush.bf16.msra.mxu0 %v906
    %1088 = vmatpush.bf16.msra.mxu0 %v902
    %1089 = vmatpush.bf16.msra.mxu0 %v898
    %1090 = vmatpush.bf16.msra.mxu0 %v894
    %1091 = vmatpush.bf16.msra.mxu0 %v890
    %1092 = vmatpush.bf16.msra.mxu0 %v886
    %1093 = vmatmul.bf16.gmra.mxu0 %v266
    %v1094 = vpop.f32.mrf.mxu0
    %v1095 = vadd.f32 %v1082, %v1094
    %v1096 = vpop.f32.mrf.mxu0
    %1097 = vdwg.mxu0
    %1098 = vmatpush.bf16.msra.mxu0 %v819
    %1099 = vmatpush.bf16.msra.mxu0 %v815
    %1100 = vmatpush.bf16.msra.mxu0 %v811
    %1101 = vmatpush.bf16.msra.mxu0 %v807
    %1102 = vmatpush.bf16.msra.mxu0 %v803
    %1103 = vmatpush.bf16.msra.mxu0 %v799
    %1104 = vmatpush.bf16.msra.mxu0 %v795
    %1105 = vmatpush.bf16.msra.mxu0 %v791
    %1106 = vmatmul.bf16.gmra.mxu0 %v263
    %v1107 = vpop.f32.mrf.mxu0
    %v1108 = vadd.f32 %v399, %v1107
    %v1109 = vpop.f32.mrf.mxu0
    %1110 = vdwg.mxu0
    %1111 = vmatpush.bf16.msra.mxu0 %v851
    %1112 = vmatpush.bf16.msra.mxu0 %v847
    %1113 = vmatpush.bf16.msra.mxu0 %v843
    %1114 = vmatpush.bf16.msra.mxu0 %v839
    %1115 = vmatpush.bf16.msra.mxu0 %v835
    %1116 = vmatpush.bf16.msra.mxu0 %v831
    %1117 = vmatpush.bf16.msra.mxu0 %v827
    %1118 = vmatpush.bf16.msra.mxu0 %v823
    %1119 = vmatmul.bf16.gmra.mxu0 %v264
    %v1120 = vpop.f32.mrf.mxu0
    %v1121 = vadd.f32 %v1108, %v1120
    %v1122 = vpop.f32.mrf.mxu0
    %1123 = vdwg.mxu0
    %1124 = vmatpush.bf16.msra.mxu0 %v883
    %1125 = vmatpush.bf16.msra.mxu0 %v879
    %1126 = vmatpush.bf16.msra.mxu0 %v875
    %1127 = vmatpush.bf16.msra.mxu0 %v871
    %1128 = vmatpush.bf16.msra.mxu0 %v867
    %1129 = vmatpush.bf16.msra.mxu0 %v863
    %1130 = vmatpush.bf16.msra.mxu0 %v859
    %1131 = vmatpush.bf16.msra.mxu0 %v855
    %1132 = vmatmul.bf16.gmra.mxu0 %v265
    %v1133 = vpop.f32.mrf.mxu0
    %v1134 = vadd.f32 %v1121, %v1133
    %v1135 = vpop.f32.mrf.mxu0
    %1136 = vdwg.mxu0
    %1137 = vmatpush.bf16.msra.mxu0 %v915
    %1138 = vmatpush.bf16.msra.mxu0 %v911
    %1139 = vmatpush.bf16.msra.mxu0 %v907
    %1140 = vmatpush.bf16.msra.mxu0 %v903
    %1141 = vmatpush.bf16.msra.mxu0 %v899
    %1142 = vmatpush.bf16.msra.mxu0 %v895
    %1143 = vmatpush.bf16.msra.mxu0 %v891
    %1144 = vmatpush.bf16.msra.mxu0 %v887
    %1145 = vmatmul.bf16.gmra.mxu0 %v266
    %v1146 = vpop.f32.mrf.mxu0
    %v1147 = vadd.f32 %v1134, %v1146
    %v1148 = vpop.f32.mrf.mxu0
    %1149 = vdwg.mxu0
    %1150 = vmatpush.bf16.msra.mxu0 %v820
    %1151 = vmatpush.bf16.msra.mxu0 %v816
    %1152 = vmatpush.bf16.msra.mxu0 %v812
    %1153 = vmatpush.bf16.msra.mxu0 %v808
    %1154 = vmatpush.bf16.msra.mxu0 %v804
    %1155 = vmatpush.bf16.msra.mxu0 %v800
    %1156 = vmatpush.bf16.msra.mxu0 %v796
    %1157 = vmatpush.bf16.msra.mxu0 %v792
    %1158 = vmatmul.bf16.gmra.mxu0 %v263
    %v1159 = vpop.f32.mrf.mxu0
    %v1160 = vadd.f32 %v400, %v1159
    %v1161 = vpop.f32.mrf.mxu0
    %1162 = vdwg.mxu0
    %1163 = vmatpush.bf16.msra.mxu0 %v852
    %1164 = vmatpush.bf16.msra.mxu0 %v848
    %1165 = vmatpush.bf16.msra.mxu0 %v844
    %1166 = vmatpush.bf16.msra.mxu0 %v840
    %1167 = vmatpush.bf16.msra.mxu0 %v836
    %1168 = vmatpush.bf16.msra.mxu0 %v832
    %1169 = vmatpush.bf16.msra.mxu0 %v828
    %1170 = vmatpush.bf16.msra.mxu0 %v824
    %1171 = vmatmul.bf16.gmra.mxu0 %v264
    %v1172 = vpop.f32.mrf.mxu0
    %v1173 = vadd.f32 %v1160, %v1172
    %v1174 = vpop.f32.mrf.mxu0
    %1175 = vdwg.mxu0
    %1176 = vmatpush.bf16.msra.mxu0 %v884
    %1177 = vmatpush.bf16.msra.mxu0 %v880
    %1178 = vmatpush.bf16.msra.mxu0 %v876
    %1179 = vmatpush.bf16.msra.mxu0 %v872
    %1180 = vmatpush.bf16.msra.mxu0 %v868
    %1181 = vmatpush.bf16.msra.mxu0 %v864
    %1182 = vmatpush.bf16.msra.mxu0 %v860
    %1183 = vmatpush.bf16.msra.mxu0 %v856
    %1184 = vmatmul.bf16.gmra.mxu0 %v265
    %v1185 = vpop.f32.mrf.mxu0
    %v1186 = vadd.f32 %v1173, %v1185
    %v1187 = vpop.f32.mrf.mxu0
    %1188 = vdwg.mxu0
    %1189 = vmatpush.bf16.msra.mxu0 %v916
    %1190 = vmatpush.bf16.msra.mxu0 %v912
    %1191 = vmatpush.bf16.msra.mxu0 %v908
    %1192 = vmatpush.bf16.msra.mxu0 %v904
    %1193 = vmatpush.bf16.msra.mxu0 %v900
    %1194 = vmatpush.bf16.msra.mxu0 %v896
    %1195 = vmatpush.bf16.msra.mxu0 %v892
    %1196 = vmatpush.bf16.msra.mxu0 %v888
    %1197 = vmatmul.bf16.gmra.mxu0 %v266
    %v1198 = vpop.f32.mrf.mxu0
    %v1199 = vadd.f32 %v1186, %v1198
    %v1200 = vpop.f32.mrf.mxu0
    %1201 = vdwg.mxu0
    %1202 = vmatpush.bf16.msra.mxu0 %v821
    %1203 = vmatpush.bf16.msra.mxu0 %v817
    %1204 = vmatpush.bf16.msra.mxu0 %v813
    %1205 = vmatpush.bf16.msra.mxu0 %v809
    %1206 = vmatpush.bf16.msra.mxu0 %v805
    %1207 = vmatpush.bf16.msra.mxu0 %v801
    %1208 = vmatpush.bf16.msra.mxu0 %v797
    %1209 = vmatpush.bf16.msra.mxu0 %v793
    %1210 = vmatmul.bf16.gmra.mxu0 %v263
    %v1211 = vpop.f32.mrf.mxu0
    %v1212 = vadd.f32 %v401, %v1211
    %v1213 = vpop.f32.mrf.mxu0
    %1214 = vdwg.mxu0
    %1215 = vmatpush.bf16.msra.mxu0 %v853
    %1216 = vmatpush.bf16.msra.mxu0 %v849
    %1217 = vmatpush.bf16.msra.mxu0 %v845
    %1218 = vmatpush.bf16.msra.mxu0 %v841
    %1219 = vmatpush.bf16.msra.mxu0 %v837
    %1220 = vmatpush.bf16.msra.mxu0 %v833
    %1221 = vmatpush.bf16.msra.mxu0 %v829
    %1222 = vmatpush.bf16.msra.mxu0 %v825
    %1223 = vmatmul.bf16.gmra.mxu0 %v264
    %v1224 = vpop.f32.mrf.mxu0
    %v1225 = vadd.f32 %v1212, %v1224
    %v1226 = vpop.f32.mrf.mxu0
    %1227 = vdwg.mxu0
    %1228 = vmatpush.bf16.msra.mxu0 %v885
    %1229 = vmatpush.bf16.msra.mxu0 %v881
    %1230 = vmatpush.bf16.msra.mxu0 %v877
    %1231 = vmatpush.bf16.msra.mxu0 %v873
    %1232 = vmatpush.bf16.msra.mxu0 %v869
    %1233 = vmatpush.bf16.msra.mxu0 %v865
    %1234 = vmatpush.bf16.msra.mxu0 %v861
    %1235 = vmatpush.bf16.msra.mxu0 %v857
    %1236 = vmatmul.bf16.gmra.mxu0 %v265
    %v1237 = vpop.f32.mrf.mxu0
    %v1238 = vadd.f32 %v1225, %v1237
    %v1239 = vpop.f32.mrf.mxu0
    %1240 = vdwg.mxu0
    %1241 = vmatpush.bf16.msra.mxu0 %v917
    %1242 = vmatpush.bf16.msra.mxu0 %v913
    %1243 = vmatpush.bf16.msra.mxu0 %v909
    %1244 = vmatpush.bf16.msra.mxu0 %v905
    %1245 = vmatpush.bf16.msra.mxu0 %v901
    %1246 = vmatpush.bf16.msra.mxu0 %v897
    %1247 = vmatpush.bf16.msra.mxu0 %v893
    %1248 = vmatpush.bf16.msra.mxu0 %v889
    %1249 = vmatmul.bf16.gmra.mxu0 %v266
    %v1250 = vpop.f32.mrf.mxu0
    %v1251 = vadd.f32 %v1238, %v1250
    %v1252 = vpop.f32.mrf.mxu0
    %1253 = vdwg.mxu0
    %v1254 = vmax.f32 %v1095, 0.0
    %v1255 = vmax.f32 %v1147, 0.0
    %v1256 = vmax.f32 %v1199, 0.0
    %v1257 = vmax.f32 %v1251, 0.0
    %v1258 = vpack.c.bf16 %v1254, %v1254
    %v1259 = vpack.c.bf16 %v1255, %v1255
    %v1260 = vpack.c.bf16 %v1256, %v1256
    %v1261 = vpack.c.bf16 %v1257, %v1257
    %s1262 = scalar_lea.vmem [#allocation6], 1024
    %v1263 = vld [vmem:[%s1262] sm:$0xff]
    %v1264 = vld [vmem:[%s1262 + $0x8] sm:$0xff]
    %v1265 = vld [vmem:[%s1262 + $0x10] sm:$0xff]
    %v1266 = vld [vmem:[%s1262 + $0x18] sm:$0xff]
    %v1267 = vld [vmem:[%s1262 + $0x20] sm:$0xff]
    %v1268 = vld [vmem:[%s1262 + $0x28] sm:$0xff]
    %v1269 = vld [vmem:[%s1262 + $0x30] sm:$0xff]
    %v1270 = vld [vmem:[%s1262 + $0x38] sm:$0xff]
    %v1271 = vld [vmem:[%s1262 + $0x40] sm:$0xff]
    %v1272 = vld [vmem:[%s1262 + $0x48] sm:$0xff]
    %v1273 = vld [vmem:[%s1262 + $0x50] sm:$0xff]
    %v1274 = vld [vmem:[%s1262 + $0x58] sm:$0xff]
    %v1275 = vld [vmem:[%s1262 + $0x60] sm:$0xff]
    %v1276 = vld [vmem:[%s1262 + $0x68] sm:$0xff]
    %v1277 = vld [vmem:[%s1262 + $0x70] sm:$0xff]
    %v1278 = vld [vmem:[%s1262 + $0x78] sm:$0xff]
    %v1279 = vld [vmem:[%s1262 + $0x80] sm:$0xff]
    %v1280 = vld [vmem:[%s1262 + $0x88] sm:$0xff]
    %v1281 = vld [vmem:[%s1262 + $0x90] sm:$0xff]
    %v1282 = vld [vmem:[%s1262 + $0x98] sm:$0xff]
    %v1283 = vld [vmem:[%s1262 + $0xa0] sm:$0xff]
    %v1284 = vld [vmem:[%s1262 + $0xa8] sm:$0xff]
    %v1285 = vld [vmem:[%s1262 + $0xb0] sm:$0xff]
    %v1286 = vld [vmem:[%s1262 + $0xb8] sm:$0xff]
    %v1287 = vld [vmem:[%s1262 + $0xc0] sm:$0xff]
    %v1288 = vld [vmem:[%s1262 + $0xc8] sm:$0xff]
    %v1289 = vld [vmem:[%s1262 + $0xd0] sm:$0xff]
    %v1290 = vld [vmem:[%s1262 + $0xd8] sm:$0xff]
    %v1291 = vld [vmem:[%s1262 + $0xe0] sm:$0xff]
    %v1292 = vld [vmem:[%s1262 + $0xe8] sm:$0xff]
    %v1293 = vld [vmem:[%s1262 + $0xf0] sm:$0xff]
    %v1294 = vld [vmem:[%s1262 + $0xf8] sm:$0xff]
    %v1295 = vld [vmem:[%s1262 + $0x100] sm:$0xff]
    %v1296 = vld [vmem:[%s1262 + $0x108] sm:$0xff]
    %v1297 = vld [vmem:[%s1262 + $0x110] sm:$0xff]
    %v1298 = vld [vmem:[%s1262 + $0x118] sm:$0xff]
    %v1299 = vld [vmem:[%s1262 + $0x120] sm:$0xff]
    %v1300 = vld [vmem:[%s1262 + $0x128] sm:$0xff]
    %v1301 = vld [vmem:[%s1262 + $0x130] sm:$0xff]
    %v1302 = vld [vmem:[%s1262 + $0x138] sm:$0xff]
    %v1303 = vld [vmem:[%s1262 + $0x140] sm:$0xff]
    %v1304 = vld [vmem:[%s1262 + $0x148] sm:$0xff]
    %v1305 = vld [vmem:[%s1262 + $0x150] sm:$0xff]
    %v1306 = vld [vmem:[%s1262 + $0x158] sm:$0xff]
    %v1307 = vld [vmem:[%s1262 + $0x160] sm:$0xff]
    %v1308 = vld [vmem:[%s1262 + $0x168] sm:$0xff]
    %v1309 = vld [vmem:[%s1262 + $0x170] sm:$0xff]
    %v1310 = vld [vmem:[%s1262 + $0x178] sm:$0xff]
    %v1311 = vld [vmem:[%s1262 + $0x180] sm:$0xff]
    %v1312 = vld [vmem:[%s1262 + $0x188] sm:$0xff]
    %v1313 = vld [vmem:[%s1262 + $0x190] sm:$0xff]
    %v1314 = vld [vmem:[%s1262 + $0x198] sm:$0xff]
    %v1315 = vld [vmem:[%s1262 + $0x1a0] sm:$0xff]
    %v1316 = vld [vmem:[%s1262 + $0x1a8] sm:$0xff]
    %v1317 = vld [vmem:[%s1262 + $0x1b0] sm:$0xff]
    %v1318 = vld [vmem:[%s1262 + $0x1b8] sm:$0xff]
    %v1319 = vld [vmem:[%s1262 + $0x1c0] sm:$0xff]
    %v1320 = vld [vmem:[%s1262 + $0x1c8] sm:$0xff]
    %v1321 = vld [vmem:[%s1262 + $0x1d0] sm:$0xff]
    %v1322 = vld [vmem:[%s1262 + $0x1d8] sm:$0xff]
    %v1323 = vld [vmem:[%s1262 + $0x1e0] sm:$0xff]
    %v1324 = vld [vmem:[%s1262 + $0x1e8] sm:$0xff]
    %v1325 = vld [vmem:[%s1262 + $0x1f0] sm:$0xff]
    %v1326 = vld [vmem:[%s1262 + $0x1f8] sm:$0xff]
    %v1327 = vld [vmem:[%s1262 + $0x200] sm:$0xff]
    %v1328 = vld [vmem:[%s1262 + $0x208] sm:$0xff]
    %v1329 = vld [vmem:[%s1262 + $0x210] sm:$0xff]
    %v1330 = vld [vmem:[%s1262 + $0x218] sm:$0xff]
    %v1331 = vld [vmem:[%s1262 + $0x220] sm:$0xff]
    %v1332 = vld [vmem:[%s1262 + $0x228] sm:$0xff]
    %v1333 = vld [vmem:[%s1262 + $0x230] sm:$0xff]
    %v1334 = vld [vmem:[%s1262 + $0x238] sm:$0xff]
    %v1335 = vld [vmem:[%s1262 + $0x240] sm:$0xff]
    %v1336 = vld [vmem:[%s1262 + $0x248] sm:$0xff]
    %v1337 = vld [vmem:[%s1262 + $0x250] sm:$0xff]
    %v1338 = vld [vmem:[%s1262 + $0x258] sm:$0xff]
    %v1339 = vld [vmem:[%s1262 + $0x260] sm:$0xff]
    %v1340 = vld [vmem:[%s1262 + $0x268] sm:$0xff]
    %v1341 = vld [vmem:[%s1262 + $0x270] sm:$0xff]
    %v1342 = vld [vmem:[%s1262 + $0x278] sm:$0xff]
    %v1343 = vld [vmem:[%s1262 + $0x280] sm:$0xff]
    %v1344 = vld [vmem:[%s1262 + $0x288] sm:$0xff]
    %v1345 = vld [vmem:[%s1262 + $0x290] sm:$0xff]
    %v1346 = vld [vmem:[%s1262 + $0x298] sm:$0xff]
    %v1347 = vld [vmem:[%s1262 + $0x2a0] sm:$0xff]
    %v1348 = vld [vmem:[%s1262 + $0x2a8] sm:$0xff]
    %v1349 = vld [vmem:[%s1262 + $0x2b0] sm:$0xff]
    %v1350 = vld [vmem:[%s1262 + $0x2b8] sm:$0xff]
    %v1351 = vld [vmem:[%s1262 + $0x2c0] sm:$0xff]
    %v1352 = vld [vmem:[%s1262 + $0x2c8] sm:$0xff]
    %v1353 = vld [vmem:[%s1262 + $0x2d0] sm:$0xff]
    %v1354 = vld [vmem:[%s1262 + $0x2d8] sm:$0xff]
    %v1355 = vld [vmem:[%s1262 + $0x2e0] sm:$0xff]
    %v1356 = vld [vmem:[%s1262 + $0x2e8] sm:$0xff]
    %v1357 = vld [vmem:[%s1262 + $0x2f0] sm:$0xff]
    %v1358 = vld [vmem:[%s1262 + $0x2f8] sm:$0xff]
    %v1359 = vld [vmem:[%s1262 + $0x300] sm:$0xff]
    %v1360 = vld [vmem:[%s1262 + $0x308] sm:$0xff]
    %v1361 = vld [vmem:[%s1262 + $0x310] sm:$0xff]
    %v1362 = vld [vmem:[%s1262 + $0x318] sm:$0xff]
    %v1363 = vld [vmem:[%s1262 + $0x320] sm:$0xff]
    %v1364 = vld [vmem:[%s1262 + $0x328] sm:$0xff]
    %v1365 = vld [vmem:[%s1262 + $0x330] sm:$0xff]
    %v1366 = vld [vmem:[%s1262 + $0x338] sm:$0xff]
    %v1367 = vld [vmem:[%s1262 + $0x340] sm:$0xff]
    %v1368 = vld [vmem:[%s1262 + $0x348] sm:$0xff]
    %v1369 = vld [vmem:[%s1262 + $0x350] sm:$0xff]
    %v1370 = vld [vmem:[%s1262 + $0x358] sm:$0xff]
    %v1371 = vld [vmem:[%s1262 + $0x360] sm:$0xff]
    %v1372 = vld [vmem:[%s1262 + $0x368] sm:$0xff]
    %v1373 = vld [vmem:[%s1262 + $0x370] sm:$0xff]
    %v1374 = vld [vmem:[%s1262 + $0x378] sm:$0xff]
    %v1375 = vld [vmem:[%s1262 + $0x380] sm:$0xff]
    %v1376 = vld [vmem:[%s1262 + $0x388] sm:$0xff]
    %v1377 = vld [vmem:[%s1262 + $0x390] sm:$0xff]
    %v1378 = vld [vmem:[%s1262 + $0x398] sm:$0xff]
    %v1379 = vld [vmem:[%s1262 + $0x3a0] sm:$0xff]
    %v1380 = vld [vmem:[%s1262 + $0x3a8] sm:$0xff]
    %v1381 = vld [vmem:[%s1262 + $0x3b0] sm:$0xff]
    %v1382 = vld [vmem:[%s1262 + $0x3b8] sm:$0xff]
    %v1383 = vld [vmem:[%s1262 + $0x3c0] sm:$0xff]
    %v1384 = vld [vmem:[%s1262 + $0x3c8] sm:$0xff]
    %v1385 = vld [vmem:[%s1262 + $0x3d0] sm:$0xff]
    %v1386 = vld [vmem:[%s1262 + $0x3d8] sm:$0xff]
    %v1387 = vld [vmem:[%s1262 + $0x3e0] sm:$0xff]
    %v1388 = vld [vmem:[%s1262 + $0x3e8] sm:$0xff]
    %v1389 = vld [vmem:[%s1262 + $0x3f0] sm:$0xff]
    %v1390 = vld [vmem:[%s1262 + $0x3f8] sm:$0xff]
    %s1391 = scalar_lea.vmem [#allocation7], 2
    %v1392 = vld [vmem:[%s1391] ss:$8 sm:$0xf]
    %v1394 = vperm.slane %v1392, 0
    %v1395 = vperm.slane %v1392, 1
    %v1396 = vperm.slane %v1392, 2
    %v1397 = vperm.slane %v1392, 3
    %v1530 = vunpack.c.l.b16 %v1263
    %v1531 = vunpack.c.h.b16 %v1263
    %v1532 = vunpack.c.l.b16 %v1264
    %v1533 = vunpack.c.h.b16 %v1264
    %v1534 = vunpack.c.l.b16 %v1265
    %v1535 = vunpack.c.h.b16 %v1265
    %v1536 = vunpack.c.l.b16 %v1266
    %v1537 = vunpack.c.h.b16 %v1266
    %v1538 = vunpack.c.l.b16 %v1267
    %v1539 = vunpack.c.h.b16 %v1267
    %v1540 = vunpack.c.l.b16 %v1268
    %v1541 = vunpack.c.h.b16 %v1268
    %v1542 = vunpack.c.l.b16 %v1269
    %v1543 = vunpack.c.h.b16 %v1269
    %v1544 = vunpack.c.l.b16 %v1270
    %v1545 = vunpack.c.h.b16 %v1270
    %v1546 = vunpack.c.l.b16 %v1271
    %v1547 = vunpack.c.h.b16 %v1271
    %v1548 = vunpack.c.l.b16 %v1272
    %v1549 = vunpack.c.h.b16 %v1272
    %v1550 = vunpack.c.l.b16 %v1273
    %v1551 = vunpack.c.h.b16 %v1273
    %v1552 = vunpack.c.l.b16 %v1274
    %v1553 = vunpack.c.h.b16 %v1274
    %v1554 = vunpack.c.l.b16 %v1275
    %v1555 = vunpack.c.h.b16 %v1275
    %v1556 = vunpack.c.l.b16 %v1276
    %v1557 = vunpack.c.h.b16 %v1276
    %v1558 = vunpack.c.l.b16 %v1277
    %v1559 = vunpack.c.h.b16 %v1277
    %v1560 = vunpack.c.l.b16 %v1278
    %v1561 = vunpack.c.h.b16 %v1278
    %v1562 = vunpack.c.l.b16 %v1279
    %v1563 = vunpack.c.h.b16 %v1279
    %v1564 = vunpack.c.l.b16 %v1280
    %v1565 = vunpack.c.h.b16 %v1280
    %v1566 = vunpack.c.l.b16 %v1281
    %v1567 = vunpack.c.h.b16 %v1281
    %v1568 = vunpack.c.l.b16 %v1282
    %v1569 = vunpack.c.h.b16 %v1282
    %v1570 = vunpack.c.l.b16 %v1283
    %v1571 = vunpack.c.h.b16 %v1283
    %v1572 = vunpack.c.l.b16 %v1284
    %v1573 = vunpack.c.h.b16 %v1284
    %v1574 = vunpack.c.l.b16 %v1285
    %v1575 = vunpack.c.h.b16 %v1285
    %v1576 = vunpack.c.l.b16 %v1286
    %v1577 = vunpack.c.h.b16 %v1286
    %v1578 = vunpack.c.l.b16 %v1287
    %v1579 = vunpack.c.h.b16 %v1287
    %v1580 = vunpack.c.l.b16 %v1288
    %v1581 = vunpack.c.h.b16 %v1288
    %v1582 = vunpack.c.l.b16 %v1289
    %v1583 = vunpack.c.h.b16 %v1289
    %v1584 = vunpack.c.l.b16 %v1290
    %v1585 = vunpack.c.h.b16 %v1290
    %v1586 = vunpack.c.l.b16 %v1291
    %v1587 = vunpack.c.h.b16 %v1291
    %v1588 = vunpack.c.l.b16 %v1292
    %v1589 = vunpack.c.h.b16 %v1292
    %v1590 = vunpack.c.l.b16 %v1293
    %v1591 = vunpack.c.h.b16 %v1293
    %v1592 = vunpack.c.l.b16 %v1294
    %v1593 = vunpack.c.h.b16 %v1294
    %v1594 = vunpack.c.l.b16 %v1295
    %v1595 = vunpack.c.h.b16 %v1295
    %v1596 = vunpack.c.l.b16 %v1296
    %v1597 = vunpack.c.h.b16 %v1296
    %v1598 = vunpack.c.l.b16 %v1297
    %v1599 = vunpack.c.h.b16 %v1297
    %v1600 = vunpack.c.l.b16 %v1298
    %v1601 = vunpack.c.h.b16 %v1298
    %v1602 = vunpack.c.l.b16 %v1299
    %v1603 = vunpack.c.h.b16 %v1299
    %v1604 = vunpack.c.l.b16 %v1300
    %v1605 = vunpack.c.h.b16 %v1300
    %v1606 = vunpack.c.l.b16 %v1301
    %v1607 = vunpack.c.h.b16 %v1301
    %v1608 = vunpack.c.l.b16 %v1302
    %v1609 = vunpack.c.h.b16 %v1302
    %v1610 = vunpack.c.l.b16 %v1303
    %v1611 = vunpack.c.h.b16 %v1303
    %v1612 = vunpack.c.l.b16 %v1304
    %v1613 = vunpack.c.h.b16 %v1304
    %v1614 = vunpack.c.l.b16 %v1305
    %v1615 = vunpack.c.h.b16 %v1305
    %v1616 = vunpack.c.l.b16 %v1306
    %v1617 = vunpack.c.h.b16 %v1306
    %v1618 = vunpack.c.l.b16 %v1307
    %v1619 = vunpack.c.h.b16 %v1307
    %v1620 = vunpack.c.l.b16 %v1308
    %v1621 = vunpack.c.h.b16 %v1308
    %v1622 = vunpack.c.l.b16 %v1309
    %v1623 = vunpack.c.h.b16 %v1309
    %v1624 = vunpack.c.l.b16 %v1310
    %v1625 = vunpack.c.h.b16 %v1310
    %v1626 = vunpack.c.l.b16 %v1311
    %v1627 = vunpack.c.h.b16 %v1311
    %v1628 = vunpack.c.l.b16 %v1312
    %v1629 = vunpack.c.h.b16 %v1312
    %v1630 = vunpack.c.l.b16 %v1313
    %v1631 = vunpack.c.h.b16 %v1313
    %v1632 = vunpack.c.l.b16 %v1314
    %v1633 = vunpack.c.h.b16 %v1314
    %v1634 = vunpack.c.l.b16 %v1315
    %v1635 = vunpack.c.h.b16 %v1315
    %v1636 = vunpack.c.l.b16 %v1316
    %v1637 = vunpack.c.h.b16 %v1316
    %v1638 = vunpack.c.l.b16 %v1317
    %v1639 = vunpack.c.h.b16 %v1317
    %v1640 = vunpack.c.l.b16 %v1318
    %v1641 = vunpack.c.h.b16 %v1318
    %v1642 = vunpack.c.l.b16 %v1319
    %v1643 = vunpack.c.h.b16 %v1319
    %v1644 = vunpack.c.l.b16 %v1320
    %v1645 = vunpack.c.h.b16 %v1320
    %v1646 = vunpack.c.l.b16 %v1321
    %v1647 = vunpack.c.h.b16 %v1321
    %v1648 = vunpack.c.l.b16 %v1322
    %v1649 = vunpack.c.h.b16 %v1322
    %v1650 = vunpack.c.l.b16 %v1323
    %v1651 = vunpack.c.h.b16 %v1323
    %v1652 = vunpack.c.l.b16 %v1324
    %v1653 = vunpack.c.h.b16 %v1324
    %v1654 = vunpack.c.l.b16 %v1325
    %v1655 = vunpack.c.h.b16 %v1325
    %v1656 = vunpack.c.l.b16 %v1326
    %v1657 = vunpack.c.h.b16 %v1326
    %v1658 = vunpack.c.l.b16 %v1327
    %v1659 = vunpack.c.h.b16 %v1327
    %v1660 = vunpack.c.l.b16 %v1328
    %v1661 = vunpack.c.h.b16 %v1328
    %v1662 = vunpack.c.l.b16 %v1329
    %v1663 = vunpack.c.h.b16 %v1329
    %v1664 = vunpack.c.l.b16 %v1330
    %v1665 = vunpack.c.h.b16 %v1330
    %v1666 = vunpack.c.l.b16 %v1331
    %v1667 = vunpack.c.h.b16 %v1331
    %v1668 = vunpack.c.l.b16 %v1332
    %v1669 = vunpack.c.h.b16 %v1332
    %v1670 = vunpack.c.l.b16 %v1333
    %v1671 = vunpack.c.h.b16 %v1333
    %v1672 = vunpack.c.l.b16 %v1334
    %v1673 = vunpack.c.h.b16 %v1334
    %v1674 = vunpack.c.l.b16 %v1335
    %v1675 = vunpack.c.h.b16 %v1335
    %v1676 = vunpack.c.l.b16 %v1336
    %v1677 = vunpack.c.h.b16 %v1336
    %v1678 = vunpack.c.l.b16 %v1337
    %v1679 = vunpack.c.h.b16 %v1337
    %v1680 = vunpack.c.l.b16 %v1338
    %v1681 = vunpack.c.h.b16 %v1338
    %v1682 = vunpack.c.l.b16 %v1339
    %v1683 = vunpack.c.h.b16 %v1339
    %v1684 = vunpack.c.l.b16 %v1340
    %v1685 = vunpack.c.h.b16 %v1340
    %v1686 = vunpack.c.l.b16 %v1341
    %v1687 = vunpack.c.h.b16 %v1341
    %v1688 = vunpack.c.l.b16 %v1342
    %v1689 = vunpack.c.h.b16 %v1342
    %v1690 = vunpack.c.l.b16 %v1343
    %v1691 = vunpack.c.h.b16 %v1343
    %v1692 = vunpack.c.l.b16 %v1344
    %v1693 = vunpack.c.h.b16 %v1344
    %v1694 = vunpack.c.l.b16 %v1345
    %v1695 = vunpack.c.h.b16 %v1345
    %v1696 = vunpack.c.l.b16 %v1346
    %v1697 = vunpack.c.h.b16 %v1346
    %v1698 = vunpack.c.l.b16 %v1347
    %v1699 = vunpack.c.h.b16 %v1347
    %v1700 = vunpack.c.l.b16 %v1348
    %v1701 = vunpack.c.h.b16 %v1348
    %v1702 = vunpack.c.l.b16 %v1349
    %v1703 = vunpack.c.h.b16 %v1349
    %v1704 = vunpack.c.l.b16 %v1350
    %v1705 = vunpack.c.h.b16 %v1350
    %v1706 = vunpack.c.l.b16 %v1351
    %v1707 = vunpack.c.h.b16 %v1351
    %v1708 = vunpack.c.l.b16 %v1352
    %v1709 = vunpack.c.h.b16 %v1352
    %v1710 = vunpack.c.l.b16 %v1353
    %v1711 = vunpack.c.h.b16 %v1353
    %v1712 = vunpack.c.l.b16 %v1354
    %v1713 = vunpack.c.h.b16 %v1354
    %v1714 = vunpack.c.l.b16 %v1355
    %v1715 = vunpack.c.h.b16 %v1355
    %v1716 = vunpack.c.l.b16 %v1356
    %v1717 = vunpack.c.h.b16 %v1356
    %v1718 = vunpack.c.l.b16 %v1357
    %v1719 = vunpack.c.h.b16 %v1357
    %v1720 = vunpack.c.l.b16 %v1358
    %v1721 = vunpack.c.h.b16 %v1358
    %v1722 = vunpack.c.l.b16 %v1359
    %v1723 = vunpack.c.h.b16 %v1359
    %v1724 = vunpack.c.l.b16 %v1360
    %v1725 = vunpack.c.h.b16 %v1360
    %v1726 = vunpack.c.l.b16 %v1361
    %v1727 = vunpack.c.h.b16 %v1361
    %v1728 = vunpack.c.l.b16 %v1362
    %v1729 = vunpack.c.h.b16 %v1362
    %v1730 = vunpack.c.l.b16 %v1363
    %v1731 = vunpack.c.h.b16 %v1363
    %v1732 = vunpack.c.l.b16 %v1364
    %v1733 = vunpack.c.h.b16 %v1364
    %v1734 = vunpack.c.l.b16 %v1365
    %v1735 = vunpack.c.h.b16 %v1365
    %v1736 = vunpack.c.l.b16 %v1366
    %v1737 = vunpack.c.h.b16 %v1366
    %v1738 = vunpack.c.l.b16 %v1367
    %v1739 = vunpack.c.h.b16 %v1367
    %v1740 = vunpack.c.l.b16 %v1368
    %v1741 = vunpack.c.h.b16 %v1368
    %v1742 = vunpack.c.l.b16 %v1369
    %v1743 = vunpack.c.h.b16 %v1369
    %v1744 = vunpack.c.l.b16 %v1370
    %v1745 = vunpack.c.h.b16 %v1370
    %v1746 = vunpack.c.l.b16 %v1371
    %v1747 = vunpack.c.h.b16 %v1371
    %v1748 = vunpack.c.l.b16 %v1372
    %v1749 = vunpack.c.h.b16 %v1372
    %v1750 = vunpack.c.l.b16 %v1373
    %v1751 = vunpack.c.h.b16 %v1373
    %v1752 = vunpack.c.l.b16 %v1374
    %v1753 = vunpack.c.h.b16 %v1374
    %v1754 = vunpack.c.l.b16 %v1375
    %v1755 = vunpack.c.h.b16 %v1375
    %v1756 = vunpack.c.l.b16 %v1376
    %v1757 = vunpack.c.h.b16 %v1376
    %v1758 = vunpack.c.l.b16 %v1377
    %v1759 = vunpack.c.h.b16 %v1377
    %v1760 = vunpack.c.l.b16 %v1378
    %v1761 = vunpack.c.h.b16 %v1378
    %v1762 = vunpack.c.l.b16 %v1379
    %v1763 = vunpack.c.h.b16 %v1379
    %v1764 = vunpack.c.l.b16 %v1380
    %v1765 = vunpack.c.h.b16 %v1380
    %v1766 = vunpack.c.l.b16 %v1381
    %v1767 = vunpack.c.h.b16 %v1381
    %v1768 = vunpack.c.l.b16 %v1382
    %v1769 = vunpack.c.h.b16 %v1382
    %v1770 = vunpack.c.l.b16 %v1383
    %v1771 = vunpack.c.h.b16 %v1383
    %v1772 = vunpack.c.l.b16 %v1384
    %v1773 = vunpack.c.h.b16 %v1384
    %v1774 = vunpack.c.l.b16 %v1385
    %v1775 = vunpack.c.h.b16 %v1385
    %v1776 = vunpack.c.l.b16 %v1386
    %v1777 = vunpack.c.h.b16 %v1386
    %v1778 = vunpack.c.l.b16 %v1387
    %v1779 = vunpack.c.h.b16 %v1387
    %v1780 = vunpack.c.l.b16 %v1388
    %v1781 = vunpack.c.h.b16 %v1388
    %v1782 = vunpack.c.l.b16 %v1389
    %v1783 = vunpack.c.h.b16 %v1389
    %v1784 = vunpack.c.l.b16 %v1390
    %v1785 = vunpack.c.h.b16 %v1390
    %v1786 = vpack.c.b16 %v1534, %v1530
    %v1787 = vpack.c.b16 %v1535, %v1531
    %v1788 = vpack.c.b16 %v1536, %v1532
    %v1789 = vpack.c.b16 %v1537, %v1533
    %v1790 = vpack.c.b16 %v1542, %v1538
    %v1791 = vpack.c.b16 %v1543, %v1539
    %v1792 = vpack.c.b16 %v1544, %v1540
    %v1793 = vpack.c.b16 %v1545, %v1541
    %v1794 = vpack.c.b16 %v1550, %v1546
    %v1795 = vpack.c.b16 %v1551, %v1547
    %v1796 = vpack.c.b16 %v1552, %v1548
    %v1797 = vpack.c.b16 %v1553, %v1549
    %v1798 = vpack.c.b16 %v1558, %v1554
    %v1799 = vpack.c.b16 %v1559, %v1555
    %v1800 = vpack.c.b16 %v1560, %v1556
    %v1801 = vpack.c.b16 %v1561, %v1557
    %v1802 = vpack.c.b16 %v1566, %v1562
    %v1803 = vpack.c.b16 %v1567, %v1563
    %v1804 = vpack.c.b16 %v1568, %v1564
    %v1805 = vpack.c.b16 %v1569, %v1565
    %v1806 = vpack.c.b16 %v1574, %v1570
    %v1807 = vpack.c.b16 %v1575, %v1571
    %v1808 = vpack.c.b16 %v1576, %v1572
    %v1809 = vpack.c.b16 %v1577, %v1573
    %v1810 = vpack.c.b16 %v1582, %v1578
    %v1811 = vpack.c.b16 %v1583, %v1579
    %v1812 = vpack.c.b16 %v1584, %v1580
    %v1813 = vpack.c.b16 %v1585, %v1581
    %v1814 = vpack.c.b16 %v1590, %v1586
    %v1815 = vpack.c.b16 %v1591, %v1587
    %v1816 = vpack.c.b16 %v1592, %v1588
    %v1817 = vpack.c.b16 %v1593, %v1589
    %v1818 = vpack.c.b16 %v1598, %v1594
    %v1819 = vpack.c.b16 %v1599, %v1595
    %v1820 = vpack.c.b16 %v1600, %v1596
    %v1821 = vpack.c.b16 %v1601, %v1597
    %v1822 = vpack.c.b16 %v1606, %v1602
    %v1823 = vpack.c.b16 %v1607, %v1603
    %v1824 = vpack.c.b16 %v1608, %v1604
    %v1825 = vpack.c.b16 %v1609, %v1605
    %v1826 = vpack.c.b16 %v1614, %v1610
    %v1827 = vpack.c.b16 %v1615, %v1611
    %v1828 = vpack.c.b16 %v1616, %v1612
    %v1829 = vpack.c.b16 %v1617, %v1613
    %v1830 = vpack.c.b16 %v1622, %v1618
    %v1831 = vpack.c.b16 %v1623, %v1619
    %v1832 = vpack.c.b16 %v1624, %v1620
    %v1833 = vpack.c.b16 %v1625, %v1621
    %v1834 = vpack.c.b16 %v1630, %v1626
    %v1835 = vpack.c.b16 %v1631, %v1627
    %v1836 = vpack.c.b16 %v1632, %v1628
    %v1837 = vpack.c.b16 %v1633, %v1629
    %v1838 = vpack.c.b16 %v1638, %v1634
    %v1839 = vpack.c.b16 %v1639, %v1635
    %v1840 = vpack.c.b16 %v1640, %v1636
    %v1841 = vpack.c.b16 %v1641, %v1637
    %v1842 = vpack.c.b16 %v1646, %v1642
    %v1843 = vpack.c.b16 %v1647, %v1643
    %v1844 = vpack.c.b16 %v1648, %v1644
    %v1845 = vpack.c.b16 %v1649, %v1645
    %v1846 = vpack.c.b16 %v1654, %v1650
    %v1847 = vpack.c.b16 %v1655, %v1651
    %v1848 = vpack.c.b16 %v1656, %v1652
    %v1849 = vpack.c.b16 %v1657, %v1653
    %v1850 = vpack.c.b16 %v1662, %v1658
    %v1851 = vpack.c.b16 %v1663, %v1659
    %v1852 = vpack.c.b16 %v1664, %v1660
    %v1853 = vpack.c.b16 %v1665, %v1661
    %v1854 = vpack.c.b16 %v1670, %v1666
    %v1855 = vpack.c.b16 %v1671, %v1667
    %v1856 = vpack.c.b16 %v1672, %v1668
    %v1857 = vpack.c.b16 %v1673, %v1669
    %v1858 = vpack.c.b16 %v1678, %v1674
    %v1859 = vpack.c.b16 %v1679, %v1675
    %v1860 = vpack.c.b16 %v1680, %v1676
    %v1861 = vpack.c.b16 %v1681, %v1677
    %v1862 = vpack.c.b16 %v1686, %v1682
    %v1863 = vpack.c.b16 %v1687, %v1683
    %v1864 = vpack.c.b16 %v1688, %v1684
    %v1865 = vpack.c.b16 %v1689, %v1685
    %v1866 = vpack.c.b16 %v1694, %v1690
    %v1867 = vpack.c.b16 %v1695, %v1691
    %v1868 = vpack.c.b16 %v1696, %v1692
    %v1869 = vpack.c.b16 %v1697, %v1693
    %v1870 = vpack.c.b16 %v1702, %v1698
    %v1871 = vpack.c.b16 %v1703, %v1699
    %v1872 = vpack.c.b16 %v1704, %v1700
    %v1873 = vpack.c.b16 %v1705, %v1701
    %v1874 = vpack.c.b16 %v1710, %v1706
    %v1875 = vpack.c.b16 %v1711, %v1707
    %v1876 = vpack.c.b16 %v1712, %v1708
    %v1877 = vpack.c.b16 %v1713, %v1709
    %v1878 = vpack.c.b16 %v1718, %v1714
    %v1879 = vpack.c.b16 %v1719, %v1715
    %v1880 = vpack.c.b16 %v1720, %v1716
    %v1881 = vpack.c.b16 %v1721, %v1717
    %v1882 = vpack.c.b16 %v1726, %v1722
    %v1883 = vpack.c.b16 %v1727, %v1723
    %v1884 = vpack.c.b16 %v1728, %v1724
    %v1885 = vpack.c.b16 %v1729, %v1725
    %v1886 = vpack.c.b16 %v1734, %v1730
    %v1887 = vpack.c.b16 %v1735, %v1731
    %v1888 = vpack.c.b16 %v1736, %v1732
    %v1889 = vpack.c.b16 %v1737, %v1733
    %v1890 = vpack.c.b16 %v1742, %v1738
    %v1891 = vpack.c.b16 %v1743, %v1739
    %v1892 = vpack.c.b16 %v1744, %v1740
    %v1893 = vpack.c.b16 %v1745, %v1741
    %v1894 = vpack.c.b16 %v1750, %v1746
    %v1895 = vpack.c.b16 %v1751, %v1747
    %v1896 = vpack.c.b16 %v1752, %v1748
    %v1897 = vpack.c.b16 %v1753, %v1749
    %v1898 = vpack.c.b16 %v1758, %v1754
    %v1899 = vpack.c.b16 %v1759, %v1755
    %v1900 = vpack.c.b16 %v1760, %v1756
    %v1901 = vpack.c.b16 %v1761, %v1757
    %v1902 = vpack.c.b16 %v1766, %v1762
    %v1903 = vpack.c.b16 %v1767, %v1763
    %v1904 = vpack.c.b16 %v1768, %v1764
    %v1905 = vpack.c.b16 %v1769, %v1765
    %v1906 = vpack.c.b16 %v1774, %v1770
    %v1907 = vpack.c.b16 %v1775, %v1771
    %v1908 = vpack.c.b16 %v1776, %v1772
    %v1909 = vpack.c.b16 %v1777, %v1773
    %v1910 = vpack.c.b16 %v1782, %v1778
    %v1911 = vpack.c.b16 %v1783, %v1779
    %v1912 = vpack.c.b16 %v1784, %v1780
    %v1913 = vpack.c.b16 %v1785, %v1781
    %2042 = vmatpush.bf16.msra.mxu0 %v1814
    %2043 = vmatpush.bf16.msra.mxu0 %v1810
    %2044 = vmatpush.bf16.msra.mxu0 %v1806
    %2045 = vmatpush.bf16.msra.mxu0 %v1802
    %2046 = vmatpush.bf16.msra.mxu0 %v1798
    %2047 = vmatpush.bf16.msra.mxu0 %v1794
    %2048 = vmatpush.bf16.msra.mxu0 %v1790
    %2049 = vmatpush.bf16.msra.mxu0 %v1786
    %2050 = vmatmul.bf16.gmra.mxu0 %v1258
    %v2051 = vpop.f32.mrf.mxu0
    %v2052 = vadd.f32 %v1394, %v2051
    %v2053 = vpop.f32.mrf.mxu0
    %2054 = vdwg.mxu0
    %2055 = vmatpush.bf16.msra.mxu0 %v1846
    %2056 = vmatpush.bf16.msra.mxu0 %v1842
    %2057 = vmatpush.bf16.msra.mxu0 %v1838
    %2058 = vmatpush.bf16.msra.mxu0 %v1834
    %2059 = vmatpush.bf16.msra.mxu0 %v1830
    %2060 = vmatpush.bf16.msra.mxu0 %v1826
    %2061 = vmatpush.bf16.msra.mxu0 %v1822
    %2062 = vmatpush.bf16.msra.mxu0 %v1818
    %2063 = vmatmul.bf16.gmra.mxu0 %v1259
    %v2064 = vpop.f32.mrf.mxu0
    %v2065 = vadd.f32 %v2052, %v2064
    %v2066 = vpop.f32.mrf.mxu0
    %2067 = vdwg.mxu0
    %2068 = vmatpush.bf16.msra.mxu0 %v1878
    %2069 = vmatpush.bf16.msra.mxu0 %v1874
    %2070 = vmatpush.bf16.msra.mxu0 %v1870
    %2071 = vmatpush.bf16.msra.mxu0 %v1866
    %2072 = vmatpush.bf16.msra.mxu0 %v1862
    %2073 = vmatpush.bf16.msra.mxu0 %v1858
    %2074 = vmatpush.bf16.msra.mxu0 %v1854
    %2075 = vmatpush.bf16.msra.mxu0 %v1850
    %2076 = vmatmul.bf16.gmra.mxu0 %v1260
    %v2077 = vpop.f32.mrf.mxu0
    %v2078 = vadd.f32 %v2065, %v2077
    %v2079 = vpop.f32.mrf.mxu0
    %2080 = vdwg.mxu0
    %2081 = vmatpush.bf16.msra.mxu0 %v1910
    %2082 = vmatpush.bf16.msra.mxu0 %v1906
    %2083 = vmatpush.bf16.msra.mxu0 %v1902
    %2084 = vmatpush.bf16.msra.mxu0 %v1898
    %2085 = vmatpush.bf16.msra.mxu0 %v1894
    %2086 = vmatpush.bf16.msra.mxu0 %v1890
    %2087 = vmatpush.bf16.msra.mxu0 %v1886
    %2088 = vmatpush.bf16.msra.mxu0 %v1882
    %2089 = vmatmul.bf16.gmra.mxu0 %v1261
    %v2090 = vpop.f32.mrf.mxu0
    %v2091 = vadd.f32 %v2078, %v2090
    %v2092 = vpop.f32.mrf.mxu0
    %2093 = vdwg.mxu0
    %2094 = vmatpush.bf16.msra.mxu0 %v1815
    %2095 = vmatpush.bf16.msra.mxu0 %v1811
    %2096 = vmatpush.bf16.msra.mxu0 %v1807
    %2097 = vmatpush.bf16.msra.mxu0 %v1803
    %2098 = vmatpush.bf16.msra.mxu0 %v1799
    %2099 = vmatpush.bf16.msra.mxu0 %v1795
    %2100 = vmatpush.bf16.msra.mxu0 %v1791
    %2101 = vmatpush.bf16.msra.mxu0 %v1787
    %2102 = vmatmul.bf16.gmra.mxu0 %v1258
    %v2103 = vpop.f32.mrf.mxu0
    %v2104 = vadd.f32 %v1395, %v2103
    %v2105 = vpop.f32.mrf.mxu0
    %2106 = vdwg.mxu0
    %2107 = vmatpush.bf16.msra.mxu0 %v1847
    %2108 = vmatpush.bf16.msra.mxu0 %v1843
    %2109 = vmatpush.bf16.msra.mxu0 %v1839
    %2110 = vmatpush.bf16.msra.mxu0 %v1835
    %2111 = vmatpush.bf16.msra.mxu0 %v1831
    %2112 = vmatpush.bf16.msra.mxu0 %v1827
    %2113 = vmatpush.bf16.msra.mxu0 %v1823
    %2114 = vmatpush.bf16.msra.mxu0 %v1819
    %2115 = vmatmul.bf16.gmra.mxu0 %v1259
    %v2116 = vpop.f32.mrf.mxu0
    %v2117 = vadd.f32 %v2104, %v2116
    %v2118 = vpop.f32.mrf.mxu0
    %2119 = vdwg.mxu0
    %2120 = vmatpush.bf16.msra.mxu0 %v1879
    %2121 = vmatpush.bf16.msra.mxu0 %v1875
    %2122 = vmatpush.bf16.msra.mxu0 %v1871
    %2123 = vmatpush.bf16.msra.mxu0 %v1867
    %2124 = vmatpush.bf16.msra.mxu0 %v1863
    %2125 = vmatpush.bf16.msra.mxu0 %v1859
    %2126 = vmatpush.bf16.msra.mxu0 %v1855
    %2127 = vmatpush.bf16.msra.mxu0 %v1851
    %2128 = vmatmul.bf16.gmra.mxu0 %v1260
    %v2129 = vpop.f32.mrf.mxu0
    %v2130 = vadd.f32 %v2117, %v2129
    %v2131 = vpop.f32.mrf.mxu0
    %2132 = vdwg.mxu0
    %2133 = vmatpush.bf16.msra.mxu0 %v1911
    %2134 = vmatpush.bf16.msra.mxu0 %v1907
    %2135 = vmatpush.bf16.msra.mxu0 %v1903
    %2136 = vmatpush.bf16.msra.mxu0 %v1899
    %2137 = vmatpush.bf16.msra.mxu0 %v1895
    %2138 = vmatpush.bf16.msra.mxu0 %v1891
    %2139 = vmatpush.bf16.msra.mxu0 %v1887
    %2140 = vmatpush.bf16.msra.mxu0 %v1883
    %2141 = vmatmul.bf16.gmra.mxu0 %v1261
    %v2142 = vpop.f32.mrf.mxu0
    %v2143 = vadd.f32 %v2130, %v2142
    %v2144 = vpop.f32.mrf.mxu0
    %2145 = vdwg.mxu0
    %2146 = vmatpush.bf16.msra.mxu0 %v1816
    %2147 = vmatpush.bf16.msra.mxu0 %v1812
    %2148 = vmatpush.bf16.msra.mxu0 %v1808
    %2149 = vmatpush.bf16.msra.mxu0 %v1804
    %2150 = vmatpush.bf16.msra.mxu0 %v1800
    %2151 = vmatpush.bf16.msra.mxu0 %v1796
    %2152 = vmatpush.bf16.msra.mxu0 %v1792
    %2153 = vmatpush.bf16.msra.mxu0 %v1788
    %2154 = vmatmul.bf16.gmra.mxu0 %v1258
    %v2155 = vpop.f32.mrf.mxu0
    %v2156 = vadd.f32 %v1396, %v2155
    %v2157 = vpop.f32.mrf.mxu0
    %2158 = vdwg.mxu0
    %2159 = vmatpush.bf16.msra.mxu0 %v1848
    %2160 = vmatpush.bf16.msra.mxu0 %v1844
    %2161 = vmatpush.bf16.msra.mxu0 %v1840
    %2162 = vmatpush.bf16.msra.mxu0 %v1836
    %2163 = vmatpush.bf16.msra.mxu0 %v1832
    %2164 = vmatpush.bf16.msra.mxu0 %v1828
    %2165 = vmatpush.bf16.msra.mxu0 %v1824
    %2166 = vmatpush.bf16.msra.mxu0 %v1820
    %2167 = vmatmul.bf16.gmra.mxu0 %v1259
    %v2168 = vpop.f32.mrf.mxu0
    %v2169 = vadd.f32 %v2156, %v2168
    %v2170 = vpop.f32.mrf.mxu0
    %2171 = vdwg.mxu0
    %2172 = vmatpush.bf16.msra.mxu0 %v1880
    %2173 = vmatpush.bf16.msra.mxu0 %v1876
    %2174 = vmatpush.bf16.msra.mxu0 %v1872
    %2175 = vmatpush.bf16.msra.mxu0 %v1868
    %2176 = vmatpush.bf16.msra.mxu0 %v1864
    %2177 = vmatpush.bf16.msra.mxu0 %v1860
    %2178 = vmatpush.bf16.msra.mxu0 %v1856
    %2179 = vmatpush.bf16.msra.mxu0 %v1852
    %2180 = vmatmul.bf16.gmra.mxu0 %v1260
    %v2181 = vpop.f32.mrf.mxu0
    %v2182 = vadd.f32 %v2169, %v2181
    %v2183 = vpop.f32.mrf.mxu0
    %2184 = vdwg.mxu0
    %2185 = vmatpush.bf16.msra.mxu0 %v1912
    %2186 = vmatpush.bf16.msra.mxu0 %v1908
    %2187 = vmatpush.bf16.msra.mxu0 %v1904
    %2188 = vmatpush.bf16.msra.mxu0 %v1900
    %2189 = vmatpush.bf16.msra.mxu0 %v1896
    %2190 = vmatpush.bf16.msra.mxu0 %v1892
    %2191 = vmatpush.bf16.msra.mxu0 %v1888
    %2192 = vmatpush.bf16.msra.mxu0 %v1884
    %2193 = vmatmul.bf16.gmra.mxu0 %v1261
    %v2194 = vpop.f32.mrf.mxu0
    %v2195 = vadd.f32 %v2182, %v2194
    %v2196 = vpop.f32.mrf.mxu0
    %2197 = vdwg.mxu0
    %2198 = vmatpush.bf16.msra.mxu0 %v1817
    %2199 = vmatpush.bf16.msra.mxu0 %v1813
    %2200 = vmatpush.bf16.msra.mxu0 %v1809
    %2201 = vmatpush.bf16.msra.mxu0 %v1805
    %2202 = vmatpush.bf16.msra.mxu0 %v1801
    %2203 = vmatpush.bf16.msra.mxu0 %v1797
    %2204 = vmatpush.bf16.msra.mxu0 %v1793
    %2205 = vmatpush.bf16.msra.mxu0 %v1789
    %2206 = vmatmul.bf16.gmra.mxu0 %v1258
    %v2207 = vpop.f32.mrf.mxu0
    %v2208 = vadd.f32 %v1397, %v2207
    %v2209 = vpop.f32.mrf.mxu0
    %2210 = vdwg.mxu0
    %2211 = vmatpush.bf16.msra.mxu0 %v1849
    %2212 = vmatpush.bf16.msra.mxu0 %v1845
    %2213 = vmatpush.bf16.msra.mxu0 %v1841
    %2214 = vmatpush.bf16.msra.mxu0 %v1837
    %2215 = vmatpush.bf16.msra.mxu0 %v1833
    %2216 = vmatpush.bf16.msra.mxu0 %v1829
    %2217 = vmatpush.bf16.msra.mxu0 %v1825
    %2218 = vmatpush.bf16.msra.mxu0 %v1821
    %2219 = vmatmul.bf16.gmra.mxu0 %v1259
    %v2220 = vpop.f32.mrf.mxu0
    %v2221 = vadd.f32 %v2208, %v2220
    %v2222 = vpop.f32.mrf.mxu0
    %2223 = vdwg.mxu0
    %2224 = vmatpush.bf16.msra.mxu0 %v1881
    %2225 = vmatpush.bf16.msra.mxu0 %v1877
    %2226 = vmatpush.bf16.msra.mxu0 %v1873
    %2227 = vmatpush.bf16.msra.mxu0 %v1869
    %2228 = vmatpush.bf16.msra.mxu0 %v1865
    %2229 = vmatpush.bf16.msra.mxu0 %v1861
    %2230 = vmatpush.bf16.msra.mxu0 %v1857
    %2231 = vmatpush.bf16.msra.mxu0 %v1853
    %2232 = vmatmul.bf16.gmra.mxu0 %v1260
    %v2233 = vpop.f32.mrf.mxu0
    %v2234 = vadd.f32 %v2221, %v2233
    %v2235 = vpop.f32.mrf.mxu0
    %2236 = vdwg.mxu0
    %2237 = vmatpush.bf16.msra.mxu0 %v1913
    %2238 = vmatpush.bf16.msra.mxu0 %v1909
    %2239 = vmatpush.bf16.msra.mxu0 %v1905
    %2240 = vmatpush.bf16.msra.mxu0 %v1901
    %2241 = vmatpush.bf16.msra.mxu0 %v1897
    %2242 = vmatpush.bf16.msra.mxu0 %v1893
    %2243 = vmatpush.bf16.msra.mxu0 %v1889
    %2244 = vmatpush.bf16.msra.mxu0 %v1885
    %2245 = vmatmul.bf16.gmra.mxu0 %v1261
    %v2246 = vpop.f32.mrf.mxu0
    %v2247 = vadd.f32 %v2234, %v2246
    %v2248 = vpop.f32.mrf.mxu0
    %2249 = vdwg.mxu0
    %v2250 = vmax.f32 %v2091, 0.0
    %v2251 = vmax.f32 %v2143, 0.0
    %v2252 = vmax.f32 %v2195, 0.0
    %v2253 = vmax.f32 %v2247, 0.0
    %v2254 = vpack.c.bf16 %v2250, %v2250
    %v2255 = vpack.c.bf16 %v2251, %v2251
    %v2256 = vpack.c.bf16 %v2252, %v2252
    %v2257 = vpack.c.bf16 %v2253, %v2253
    %s2258 = scalar_lea.vmem [#allocation6], 2048
    %v2259 = vld [vmem:[%s2258] sm:$0xff]
    %v2260 = vld [vmem:[%s2258 + $0x8] sm:$0xff]
    %v2261 = vld [vmem:[%s2258 + $0x10] sm:$0xff]
    %v2262 = vld [vmem:[%s2258 + $0x18] sm:$0xff]
    %v2263 = vld [vmem:[%s2258 + $0x20] sm:$0xff]
    %v2264 = vld [vmem:[%s2258 + $0x28] sm:$0xff]
    %v2265 = vld [vmem:[%s2258 + $0x30] sm:$0xff]
    %v2266 = vld [vmem:[%s2258 + $0x38] sm:$0xff]
    %v2267 = vld [vmem:[%s2258 + $0x40] sm:$0xff]
    %v2268 = vld [vmem:[%s2258 + $0x48] sm:$0xff]
    %v2269 = vld [vmem:[%s2258 + $0x50] sm:$0xff]
    %v2270 = vld [vmem:[%s2258 + $0x58] sm:$0xff]
    %v2271 = vld [vmem:[%s2258 + $0x60] sm:$0xff]
    %v2272 = vld [vmem:[%s2258 + $0x68] sm:$0xff]
    %v2273 = vld [vmem:[%s2258 + $0x70] sm:$0xff]
    %v2274 = vld [vmem:[%s2258 + $0x78] sm:$0xff]
    %v2275 = vld [vmem:[%s2258 + $0x80] sm:$0xff]
    %v2276 = vld [vmem:[%s2258 + $0x88] sm:$0xff]
    %v2277 = vld [vmem:[%s2258 + $0x90] sm:$0xff]
    %v2278 = vld [vmem:[%s2258 + $0x98] sm:$0xff]
    %v2279 = vld [vmem:[%s2258 + $0xa0] sm:$0xff]
    %v2280 = vld [vmem:[%s2258 + $0xa8] sm:$0xff]
    %v2281 = vld [vmem:[%s2258 + $0xb0] sm:$0xff]
    %v2282 = vld [vmem:[%s2258 + $0xb8] sm:$0xff]
    %v2283 = vld [vmem:[%s2258 + $0xc0] sm:$0xff]
    %v2284 = vld [vmem:[%s2258 + $0xc8] sm:$0xff]
    %v2285 = vld [vmem:[%s2258 + $0xd0] sm:$0xff]
    %v2286 = vld [vmem:[%s2258 + $0xd8] sm:$0xff]
    %v2287 = vld [vmem:[%s2258 + $0xe0] sm:$0xff]
    %v2288 = vld [vmem:[%s2258 + $0xe8] sm:$0xff]
    %v2289 = vld [vmem:[%s2258 + $0xf0] sm:$0xff]
    %v2290 = vld [vmem:[%s2258 + $0xf8] sm:$0xff]
    %v2291 = vld [vmem:[%s2258 + $0x100] sm:$0xff]
    %v2292 = vld [vmem:[%s2258 + $0x108] sm:$0xff]
    %v2293 = vld [vmem:[%s2258 + $0x110] sm:$0xff]
    %v2294 = vld [vmem:[%s2258 + $0x118] sm:$0xff]
    %v2295 = vld [vmem:[%s2258 + $0x120] sm:$0xff]
    %v2296 = vld [vmem:[%s2258 + $0x128] sm:$0xff]
    %v2297 = vld [vmem:[%s2258 + $0x130] sm:$0xff]
    %v2298 = vld [vmem:[%s2258 + $0x138] sm:$0xff]
    %v2299 = vld [vmem:[%s2258 + $0x140] sm:$0xff]
    %v2300 = vld [vmem:[%s2258 + $0x148] sm:$0xff]
    %v2301 = vld [vmem:[%s2258 + $0x150] sm:$0xff]
    %v2302 = vld [vmem:[%s2258 + $0x158] sm:$0xff]
    %v2303 = vld [vmem:[%s2258 + $0x160] sm:$0xff]
    %v2304 = vld [vmem:[%s2258 + $0x168] sm:$0xff]
    %v2305 = vld [vmem:[%s2258 + $0x170] sm:$0xff]
    %v2306 = vld [vmem:[%s2258 + $0x178] sm:$0xff]
    %v2307 = vld [vmem:[%s2258 + $0x180] sm:$0xff]
    %v2308 = vld [vmem:[%s2258 + $0x188] sm:$0xff]
    %v2309 = vld [vmem:[%s2258 + $0x190] sm:$0xff]
    %v2310 = vld [vmem:[%s2258 + $0x198] sm:$0xff]
    %v2311 = vld [vmem:[%s2258 + $0x1a0] sm:$0xff]
    %v2312 = vld [vmem:[%s2258 + $0x1a8] sm:$0xff]
    %v2313 = vld [vmem:[%s2258 + $0x1b0] sm:$0xff]
    %v2314 = vld [vmem:[%s2258 + $0x1b8] sm:$0xff]
    %v2315 = vld [vmem:[%s2258 + $0x1c0] sm:$0xff]
    %v2316 = vld [vmem:[%s2258 + $0x1c8] sm:$0xff]
    %v2317 = vld [vmem:[%s2258 + $0x1d0] sm:$0xff]
    %v2318 = vld [vmem:[%s2258 + $0x1d8] sm:$0xff]
    %v2319 = vld [vmem:[%s2258 + $0x1e0] sm:$0xff]
    %v2320 = vld [vmem:[%s2258 + $0x1e8] sm:$0xff]
    %v2321 = vld [vmem:[%s2258 + $0x1f0] sm:$0xff]
    %v2322 = vld [vmem:[%s2258 + $0x1f8] sm:$0xff]
    %v2323 = vld [vmem:[%s2258 + $0x200] sm:$0xff]
    %v2324 = vld [vmem:[%s2258 + $0x208] sm:$0xff]
    %v2325 = vld [vmem:[%s2258 + $0x210] sm:$0xff]
    %v2326 = vld [vmem:[%s2258 + $0x218] sm:$0xff]
    %v2327 = vld [vmem:[%s2258 + $0x220] sm:$0xff]
    %v2328 = vld [vmem:[%s2258 + $0x228] sm:$0xff]
    %v2329 = vld [vmem:[%s2258 + $0x230] sm:$0xff]
    %v2330 = vld [vmem:[%s2258 + $0x238] sm:$0xff]
    %v2331 = vld [vmem:[%s2258 + $0x240] sm:$0xff]
    %v2332 = vld [vmem:[%s2258 + $0x248] sm:$0xff]
    %v2333 = vld [vmem:[%s2258 + $0x250] sm:$0xff]
    %v2334 = vld [vmem:[%s2258 + $0x258] sm:$0xff]
    %v2335 = vld [vmem:[%s2258 + $0x260] sm:$0xff]
    %v2336 = vld [vmem:[%s2258 + $0x268] sm:$0xff]
    %v2337 = vld [vmem:[%s2258 + $0x270] sm:$0xff]
    %v2338 = vld [vmem:[%s2258 + $0x278] sm:$0xff]
    %v2339 = vld [vmem:[%s2258 + $0x280] sm:$0xff]
    %v2340 = vld [vmem:[%s2258 + $0x288] sm:$0xff]
    %v2341 = vld [vmem:[%s2258 + $0x290] sm:$0xff]
    %v2342 = vld [vmem:[%s2258 + $0x298] sm:$0xff]
    %v2343 = vld [vmem:[%s2258 + $0x2a0] sm:$0xff]
    %v2344 = vld [vmem:[%s2258 + $0x2a8] sm:$0xff]
    %v2345 = vld [vmem:[%s2258 + $0x2b0] sm:$0xff]
    %v2346 = vld [vmem:[%s2258 + $0x2b8] sm:$0xff]
    %v2347 = vld [vmem:[%s2258 + $0x2c0] sm:$0xff]
    %v2348 = vld [vmem:[%s2258 + $0x2c8] sm:$0xff]
    %v2349 = vld [vmem:[%s2258 + $0x2d0] sm:$0xff]
    %v2350 = vld [vmem:[%s2258 + $0x2d8] sm:$0xff]
    %v2351 = vld [vmem:[%s2258 + $0x2e0] sm:$0xff]
    %v2352 = vld [vmem:[%s2258 + $0x2e8] sm:$0xff]
    %v2353 = vld [vmem:[%s2258 + $0x2f0] sm:$0xff]
    %v2354 = vld [vmem:[%s2258 + $0x2f8] sm:$0xff]
    %v2355 = vld [vmem:[%s2258 + $0x300] sm:$0xff]
    %v2356 = vld [vmem:[%s2258 + $0x308] sm:$0xff]
    %v2357 = vld [vmem:[%s2258 + $0x310] sm:$0xff]
    %v2358 = vld [vmem:[%s2258 + $0x318] sm:$0xff]
    %v2359 = vld [vmem:[%s2258 + $0x320] sm:$0xff]
    %v2360 = vld [vmem:[%s2258 + $0x328] sm:$0xff]
    %v2361 = vld [vmem:[%s2258 + $0x330] sm:$0xff]
    %v2362 = vld [vmem:[%s2258 + $0x338] sm:$0xff]
    %v2363 = vld [vmem:[%s2258 + $0x340] sm:$0xff]
    %v2364 = vld [vmem:[%s2258 + $0x348] sm:$0xff]
    %v2365 = vld [vmem:[%s2258 + $0x350] sm:$0xff]
    %v2366 = vld [vmem:[%s2258 + $0x358] sm:$0xff]
    %v2367 = vld [vmem:[%s2258 + $0x360] sm:$0xff]
    %v2368 = vld [vmem:[%s2258 + $0x368] sm:$0xff]
    %v2369 = vld [vmem:[%s2258 + $0x370] sm:$0xff]
    %v2370 = vld [vmem:[%s2258 + $0x378] sm:$0xff]
    %v2371 = vld [vmem:[%s2258 + $0x380] sm:$0xff]
    %v2372 = vld [vmem:[%s2258 + $0x388] sm:$0xff]
    %v2373 = vld [vmem:[%s2258 + $0x390] sm:$0xff]
    %v2374 = vld [vmem:[%s2258 + $0x398] sm:$0xff]
    %v2375 = vld [vmem:[%s2258 + $0x3a0] sm:$0xff]
    %v2376 = vld [vmem:[%s2258 + $0x3a8] sm:$0xff]
    %v2377 = vld [vmem:[%s2258 + $0x3b0] sm:$0xff]
    %v2378 = vld [vmem:[%s2258 + $0x3b8] sm:$0xff]
    %v2379 = vld [vmem:[%s2258 + $0x3c0] sm:$0xff]
    %v2380 = vld [vmem:[%s2258 + $0x3c8] sm:$0xff]
    %v2381 = vld [vmem:[%s2258 + $0x3d0] sm:$0xff]
    %v2382 = vld [vmem:[%s2258 + $0x3d8] sm:$0xff]
    %v2383 = vld [vmem:[%s2258 + $0x3e0] sm:$0xff]
    %v2384 = vld [vmem:[%s2258 + $0x3e8] sm:$0xff]
    %v2385 = vld [vmem:[%s2258 + $0x3f0] sm:$0xff]
    %v2386 = vld [vmem:[%s2258 + $0x3f8] sm:$0xff]
    %s2387 = scalar_lea.vmem [#allocation7], 3
    %v2388 = vld [vmem:[%s2387] ss:$8 sm:$0xf]
    %v2390 = vperm.slane %v2388, 0
    %v2391 = vperm.slane %v2388, 1
    %v2392 = vperm.slane %v2388, 2
    %v2393 = vperm.slane %v2388, 3
    %v2526 = vunpack.c.l.b16 %v2259
    %v2527 = vunpack.c.h.b16 %v2259
    %v2528 = vunpack.c.l.b16 %v2260
    %v2529 = vunpack.c.h.b16 %v2260
    %v2530 = vunpack.c.l.b16 %v2261
    %v2531 = vunpack.c.h.b16 %v2261
    %v2532 = vunpack.c.l.b16 %v2262
    %v2533 = vunpack.c.h.b16 %v2262
    %v2534 = vunpack.c.l.b16 %v2263
    %v2535 = vunpack.c.h.b16 %v2263
    %v2536 = vunpack.c.l.b16 %v2264
    %v2537 = vunpack.c.h.b16 %v2264
    %v2538 = vunpack.c.l.b16 %v2265
    %v2539 = vunpack.c.h.b16 %v2265
    %v2540 = vunpack.c.l.b16 %v2266
    %v2541 = vunpack.c.h.b16 %v2266
    %v2542 = vunpack.c.l.b16 %v2267
    %v2543 = vunpack.c.h.b16 %v2267
    %v2544 = vunpack.c.l.b16 %v2268
    %v2545 = vunpack.c.h.b16 %v2268
    %v2546 = vunpack.c.l.b16 %v2269
    %v2547 = vunpack.c.h.b16 %v2269
    %v2548 = vunpack.c.l.b16 %v2270
    %v2549 = vunpack.c.h.b16 %v2270
    %v2550 = vunpack.c.l.b16 %v2271
    %v2551 = vunpack.c.h.b16 %v2271
    %v2552 = vunpack.c.l.b16 %v2272
    %v2553 = vunpack.c.h.b16 %v2272
    %v2554 = vunpack.c.l.b16 %v2273
    %v2555 = vunpack.c.h.b16 %v2273
    %v2556 = vunpack.c.l.b16 %v2274
    %v2557 = vunpack.c.h.b16 %v2274
    %v2558 = vunpack.c.l.b16 %v2275
    %v2559 = vunpack.c.h.b16 %v2275
    %v2560 = vunpack.c.l.b16 %v2276
    %v2561 = vunpack.c.h.b16 %v2276
    %v2562 = vunpack.c.l.b16 %v2277
    %v2563 = vunpack.c.h.b16 %v2277
    %v2564 = vunpack.c.l.b16 %v2278
    %v2565 = vunpack.c.h.b16 %v2278
    %v2566 = vunpack.c.l.b16 %v2279
    %v2567 = vunpack.c.h.b16 %v2279
    %v2568 = vunpack.c.l.b16 %v2280
    %v2569 = vunpack.c.h.b16 %v2280
    %v2570 = vunpack.c.l.b16 %v2281
    %v2571 = vunpack.c.h.b16 %v2281
    %v2572 = vunpack.c.l.b16 %v2282
    %v2573 = vunpack.c.h.b16 %v2282
    %v2574 = vunpack.c.l.b16 %v2283
    %v2575 = vunpack.c.h.b16 %v2283
    %v2576 = vunpack.c.l.b16 %v2284
    %v2577 = vunpack.c.h.b16 %v2284
    %v2578 = vunpack.c.l.b16 %v2285
    %v2579 = vunpack.c.h.b16 %v2285
    %v2580 = vunpack.c.l.b16 %v2286
    %v2581 = vunpack.c.h.b16 %v2286
    %v2582 = vunpack.c.l.b16 %v2287
    %v2583 = vunpack.c.h.b16 %v2287
    %v2584 = vunpack.c.l.b16 %v2288
    %v2585 = vunpack.c.h.b16 %v2288
    %v2586 = vunpack.c.l.b16 %v2289
    %v2587 = vunpack.c.h.b16 %v2289
    %v2588 = vunpack.c.l.b16 %v2290
    %v2589 = vunpack.c.h.b16 %v2290
    %v2590 = vunpack.c.l.b16 %v2291
    %v2591 = vunpack.c.h.b16 %v2291
    %v2592 = vunpack.c.l.b16 %v2292
    %v2593 = vunpack.c.h.b16 %v2292
    %v2594 = vunpack.c.l.b16 %v2293
    %v2595 = vunpack.c.h.b16 %v2293
    %v2596 = vunpack.c.l.b16 %v2294
    %v2597 = vunpack.c.h.b16 %v2294
    %v2598 = vunpack.c.l.b16 %v2295
    %v2599 = vunpack.c.h.b16 %v2295
    %v2600 = vunpack.c.l.b16 %v2296
    %v2601 = vunpack.c.h.b16 %v2296
    %v2602 = vunpack.c.l.b16 %v2297
    %v2603 = vunpack.c.h.b16 %v2297
    %v2604 = vunpack.c.l.b16 %v2298
    %v2605 = vunpack.c.h.b16 %v2298
    %v2606 = vunpack.c.l.b16 %v2299
    %v2607 = vunpack.c.h.b16 %v2299
    %v2608 = vunpack.c.l.b16 %v2300
    %v2609 = vunpack.c.h.b16 %v2300
    %v2610 = vunpack.c.l.b16 %v2301
    %v2611 = vunpack.c.h.b16 %v2301
    %v2612 = vunpack.c.l.b16 %v2302
    %v2613 = vunpack.c.h.b16 %v2302
    %v2614 = vunpack.c.l.b16 %v2303
    %v2615 = vunpack.c.h.b16 %v2303
    %v2616 = vunpack.c.l.b16 %v2304
    %v2617 = vunpack.c.h.b16 %v2304
    %v2618 = vunpack.c.l.b16 %v2305
    %v2619 = vunpack.c.h.b16 %v2305
    %v2620 = vunpack.c.l.b16 %v2306
    %v2621 = vunpack.c.h.b16 %v2306
    %v2622 = vunpack.c.l.b16 %v2307
    %v2623 = vunpack.c.h.b16 %v2307
    %v2624 = vunpack.c.l.b16 %v2308
    %v2625 = vunpack.c.h.b16 %v2308
    %v2626 = vunpack.c.l.b16 %v2309
    %v2627 = vunpack.c.h.b16 %v2309
    %v2628 = vunpack.c.l.b16 %v2310
    %v2629 = vunpack.c.h.b16 %v2310
    %v2630 = vunpack.c.l.b16 %v2311
    %v2631 = vunpack.c.h.b16 %v2311
    %v2632 = vunpack.c.l.b16 %v2312
    %v2633 = vunpack.c.h.b16 %v2312
    %v2634 = vunpack.c.l.b16 %v2313
    %v2635 = vunpack.c.h.b16 %v2313
    %v2636 = vunpack.c.l.b16 %v2314
    %v2637 = vunpack.c.h.b16 %v2314
    %v2638 = vunpack.c.l.b16 %v2315
    %v2639 = vunpack.c.h.b16 %v2315
    %v2640 = vunpack.c.l.b16 %v2316
    %v2641 = vunpack.c.h.b16 %v2316
    %v2642 = vunpack.c.l.b16 %v2317
    %v2643 = vunpack.c.h.b16 %v2317
    %v2644 = vunpack.c.l.b16 %v2318
    %v2645 = vunpack.c.h.b16 %v2318
    %v2646 = vunpack.c.l.b16 %v2319
    %v2647 = vunpack.c.h.b16 %v2319
    %v2648 = vunpack.c.l.b16 %v2320
    %v2649 = vunpack.c.h.b16 %v2320
    %v2650 = vunpack.c.l.b16 %v2321
    %v2651 = vunpack.c.h.b16 %v2321
    %v2652 = vunpack.c.l.b16 %v2322
    %v2653 = vunpack.c.h.b16 %v2322
    %v2654 = vunpack.c.l.b16 %v2323
    %v2655 = vunpack.c.h.b16 %v2323
    %v2656 = vunpack.c.l.b16 %v2324
    %v2657 = vunpack.c.h.b16 %v2324
    %v2658 = vunpack.c.l.b16 %v2325
    %v2659 = vunpack.c.h.b16 %v2325
    %v2660 = vunpack.c.l.b16 %v2326
    %v2661 = vunpack.c.h.b16 %v2326
    %v2662 = vunpack.c.l.b16 %v2327
    %v2663 = vunpack.c.h.b16 %v2327
    %v2664 = vunpack.c.l.b16 %v2328
    %v2665 = vunpack.c.h.b16 %v2328
    %v2666 = vunpack.c.l.b16 %v2329
    %v2667 = vunpack.c.h.b16 %v2329
    %v2668 = vunpack.c.l.b16 %v2330
    %v2669 = vunpack.c.h.b16 %v2330
    %v2670 = vunpack.c.l.b16 %v2331
    %v2671 = vunpack.c.h.b16 %v2331
    %v2672 = vunpack.c.l.b16 %v2332
    %v2673 = vunpack.c.h.b16 %v2332
    %v2674 = vunpack.c.l.b16 %v2333
    %v2675 = vunpack.c.h.b16 %v2333
    %v2676 = vunpack.c.l.b16 %v2334
    %v2677 = vunpack.c.h.b16 %v2334
    %v2678 = vunpack.c.l.b16 %v2335
    %v2679 = vunpack.c.h.b16 %v2335
    %v2680 = vunpack.c.l.b16 %v2336
    %v2681 = vunpack.c.h.b16 %v2336
    %v2682 = vunpack.c.l.b16 %v2337
    %v2683 = vunpack.c.h.b16 %v2337
    %v2684 = vunpack.c.l.b16 %v2338
    %v2685 = vunpack.c.h.b16 %v2338
    %v2686 = vunpack.c.l.b16 %v2339
    %v2687 = vunpack.c.h.b16 %v2339
    %v2688 = vunpack.c.l.b16 %v2340
    %v2689 = vunpack.c.h.b16 %v2340
    %v2690 = vunpack.c.l.b16 %v2341
    %v2691 = vunpack.c.h.b16 %v2341
    %v2692 = vunpack.c.l.b16 %v2342
    %v2693 = vunpack.c.h.b16 %v2342
    %v2694 = vunpack.c.l.b16 %v2343
    %v2695 = vunpack.c.h.b16 %v2343
    %v2696 = vunpack.c.l.b16 %v2344
    %v2697 = vunpack.c.h.b16 %v2344
    %v2698 = vunpack.c.l.b16 %v2345
    %v2699 = vunpack.c.h.b16 %v2345
    %v2700 = vunpack.c.l.b16 %v2346
    %v2701 = vunpack.c.h.b16 %v2346
    %v2702 = vunpack.c.l.b16 %v2347
    %v2703 = vunpack.c.h.b16 %v2347
    %v2704 = vunpack.c.l.b16 %v2348
    %v2705 = vunpack.c.h.b16 %v2348
    %v2706 = vunpack.c.l.b16 %v2349
    %v2707 = vunpack.c.h.b16 %v2349
    %v2708 = vunpack.c.l.b16 %v2350
    %v2709 = vunpack.c.h.b16 %v2350
    %v2710 = vunpack.c.l.b16 %v2351
    %v2711 = vunpack.c.h.b16 %v2351
    %v2712 = vunpack.c.l.b16 %v2352
    %v2713 = vunpack.c.h.b16 %v2352
    %v2714 = vunpack.c.l.b16 %v2353
    %v2715 = vunpack.c.h.b16 %v2353
    %v2716 = vunpack.c.l.b16 %v2354
    %v2717 = vunpack.c.h.b16 %v2354
    %v2718 = vunpack.c.l.b16 %v2355
    %v2719 = vunpack.c.h.b16 %v2355
    %v2720 = vunpack.c.l.b16 %v2356
    %v2721 = vunpack.c.h.b16 %v2356
    %v2722 = vunpack.c.l.b16 %v2357
    %v2723 = vunpack.c.h.b16 %v2357
    %v2724 = vunpack.c.l.b16 %v2358
    %v2725 = vunpack.c.h.b16 %v2358
    %v2726 = vunpack.c.l.b16 %v2359
    %v2727 = vunpack.c.h.b16 %v2359
    %v2728 = vunpack.c.l.b16 %v2360
    %v2729 = vunpack.c.h.b16 %v2360
    %v2730 = vunpack.c.l.b16 %v2361
    %v2731 = vunpack.c.h.b16 %v2361
    %v2732 = vunpack.c.l.b16 %v2362
    %v2733 = vunpack.c.h.b16 %v2362
    %v2734 = vunpack.c.l.b16 %v2363
    %v2735 = vunpack.c.h.b16 %v2363
    %v2736 = vunpack.c.l.b16 %v2364
    %v2737 = vunpack.c.h.b16 %v2364
    %v2738 = vunpack.c.l.b16 %v2365
    %v2739 = vunpack.c.h.b16 %v2365
    %v2740 = vunpack.c.l.b16 %v2366
    %v2741 = vunpack.c.h.b16 %v2366
    %v2742 = vunpack.c.l.b16 %v2367
    %v2743 = vunpack.c.h.b16 %v2367
    %v2744 = vunpack.c.l.b16 %v2368
    %v2745 = vunpack.c.h.b16 %v2368
    %v2746 = vunpack.c.l.b16 %v2369
    %v2747 = vunpack.c.h.b16 %v2369
    %v2748 = vunpack.c.l.b16 %v2370
    %v2749 = vunpack.c.h.b16 %v2370
    %v2750 = vunpack.c.l.b16 %v2371
    %v2751 = vunpack.c.h.b16 %v2371
    %v2752 = vunpack.c.l.b16 %v2372
    %v2753 = vunpack.c.h.b16 %v2372
    %v2754 = vunpack.c.l.b16 %v2373
    %v2755 = vunpack.c.h.b16 %v2373
    %v2756 = vunpack.c.l.b16 %v2374
    %v2757 = vunpack.c.h.b16 %v2374
    %v2758 = vunpack.c.l.b16 %v2375
    %v2759 = vunpack.c.h.b16 %v2375
    %v2760 = vunpack.c.l.b16 %v2376
    %v2761 = vunpack.c.h.b16 %v2376
    %v2762 = vunpack.c.l.b16 %v2377
    %v2763 = vunpack.c.h.b16 %v2377
    %v2764 = vunpack.c.l.b16 %v2378
    %v2765 = vunpack.c.h.b16 %v2378
    %v2766 = vunpack.c.l.b16 %v2379
    %v2767 = vunpack.c.h.b16 %v2379
    %v2768 = vunpack.c.l.b16 %v2380
    %v2769 = vunpack.c.h.b16 %v2380
    %v2770 = vunpack.c.l.b16 %v2381
    %v2771 = vunpack.c.h.b16 %v2381
    %v2772 = vunpack.c.l.b16 %v2382
    %v2773 = vunpack.c.h.b16 %v2382
    %v2774 = vunpack.c.l.b16 %v2383
    %v2775 = vunpack.c.h.b16 %v2383
    %v2776 = vunpack.c.l.b16 %v2384
    %v2777 = vunpack.c.h.b16 %v2384
    %v2778 = vunpack.c.l.b16 %v2385
    %v2779 = vunpack.c.h.b16 %v2385
    %v2780 = vunpack.c.l.b16 %v2386
    %v2781 = vunpack.c.h.b16 %v2386
    %v2782 = vpack.c.b16 %v2530, %v2526
    %v2783 = vpack.c.b16 %v2531, %v2527
    %v2784 = vpack.c.b16 %v2532, %v2528
    %v2785 = vpack.c.b16 %v2533, %v2529
    %v2786 = vpack.c.b16 %v2538, %v2534
    %v2787 = vpack.c.b16 %v2539, %v2535
    %v2788 = vpack.c.b16 %v2540, %v2536
    %v2789 = vpack.c.b16 %v2541, %v2537
    %v2790 = vpack.c.b16 %v2546, %v2542
    %v2791 = vpack.c.b16 %v2547, %v2543
    %v2792 = vpack.c.b16 %v2548, %v2544
    %v2793 = vpack.c.b16 %v2549, %v2545
    %v2794 = vpack.c.b16 %v2554, %v2550
    %v2795 = vpack.c.b16 %v2555, %v2551
    %v2796 = vpack.c.b16 %v2556, %v2552
    %v2797 = vpack.c.b16 %v2557, %v2553
    %v2798 = vpack.c.b16 %v2562, %v2558
    %v2799 = vpack.c.b16 %v2563, %v2559
    %v2800 = vpack.c.b16 %v2564, %v2560
    %v2801 = vpack.c.b16 %v2565, %v2561
    %v2802 = vpack.c.b16 %v2570, %v2566
    %v2803 = vpack.c.b16 %v2571, %v2567
    %v2804 = vpack.c.b16 %v2572, %v2568
    %v2805 = vpack.c.b16 %v2573, %v2569
    %v2806 = vpack.c.b16 %v2578, %v2574
    %v2807 = vpack.c.b16 %v2579, %v2575
    %v2808 = vpack.c.b16 %v2580, %v2576
    %v2809 = vpack.c.b16 %v2581, %v2577
    %v2810 = vpack.c.b16 %v2586, %v2582
    %v2811 = vpack.c.b16 %v2587, %v2583
    %v2812 = vpack.c.b16 %v2588, %v2584
    %v2813 = vpack.c.b16 %v2589, %v2585
    %v2814 = vpack.c.b16 %v2594, %v2590
    %v2815 = vpack.c.b16 %v2595, %v2591
    %v2816 = vpack.c.b16 %v2596, %v2592
    %v2817 = vpack.c.b16 %v2597, %v2593
    %v2818 = vpack.c.b16 %v2602, %v2598
    %v2819 = vpack.c.b16 %v2603, %v2599
    %v2820 = vpack.c.b16 %v2604, %v2600
    %v2821 = vpack.c.b16 %v2605, %v2601
    %v2822 = vpack.c.b16 %v2610, %v2606
    %v2823 = vpack.c.b16 %v2611, %v2607
    %v2824 = vpack.c.b16 %v2612, %v2608
    %v2825 = vpack.c.b16 %v2613, %v2609
    %v2826 = vpack.c.b16 %v2618, %v2614
    %v2827 = vpack.c.b16 %v2619, %v2615
    %v2828 = vpack.c.b16 %v2620, %v2616
    %v2829 = vpack.c.b16 %v2621, %v2617
    %v2830 = vpack.c.b16 %v2626, %v2622
    %v2831 = vpack.c.b16 %v2627, %v2623
    %v2832 = vpack.c.b16 %v2628, %v2624
    %v2833 = vpack.c.b16 %v2629, %v2625
    %v2834 = vpack.c.b16 %v2634, %v2630
    %v2835 = vpack.c.b16 %v2635, %v2631
    %v2836 = vpack.c.b16 %v2636, %v2632
    %v2837 = vpack.c.b16 %v2637, %v2633
    %v2838 = vpack.c.b16 %v2642, %v2638
    %v2839 = vpack.c.b16 %v2643, %v2639
    %v2840 = vpack.c.b16 %v2644, %v2640
    %v2841 = vpack.c.b16 %v2645, %v2641
    %v2842 = vpack.c.b16 %v2650, %v2646
    %v2843 = vpack.c.b16 %v2651, %v2647
    %v2844 = vpack.c.b16 %v2652, %v2648
    %v2845 = vpack.c.b16 %v2653, %v2649
    %v2846 = vpack.c.b16 %v2658, %v2654
    %v2847 = vpack.c.b16 %v2659, %v2655
    %v2848 = vpack.c.b16 %v2660, %v2656
    %v2849 = vpack.c.b16 %v2661, %v2657
    %v2850 = vpack.c.b16 %v2666, %v2662
    %v2851 = vpack.c.b16 %v2667, %v2663
    %v2852 = vpack.c.b16 %v2668, %v2664
    %v2853 = vpack.c.b16 %v2669, %v2665
    %v2854 = vpack.c.b16 %v2674, %v2670
    %v2855 = vpack.c.b16 %v2675, %v2671
    %v2856 = vpack.c.b16 %v2676, %v2672
    %v2857 = vpack.c.b16 %v2677, %v2673
    %v2858 = vpack.c.b16 %v2682, %v2678
    %v2859 = vpack.c.b16 %v2683, %v2679
    %v2860 = vpack.c.b16 %v2684, %v2680
    %v2861 = vpack.c.b16 %v2685, %v2681
    %v2862 = vpack.c.b16 %v2690, %v2686
    %v2863 = vpack.c.b16 %v2691, %v2687
    %v2864 = vpack.c.b16 %v2692, %v2688
    %v2865 = vpack.c.b16 %v2693, %v2689
    %v2866 = vpack.c.b16 %v2698, %v2694
    %v2867 = vpack.c.b16 %v2699, %v2695
    %v2868 = vpack.c.b16 %v2700, %v2696
    %v2869 = vpack.c.b16 %v2701, %v2697
    %v2870 = vpack.c.b16 %v2706, %v2702
    %v2871 = vpack.c.b16 %v2707, %v2703
    %v2872 = vpack.c.b16 %v2708, %v2704
    %v2873 = vpack.c.b16 %v2709, %v2705
    %v2874 = vpack.c.b16 %v2714, %v2710
    %v2875 = vpack.c.b16 %v2715, %v2711
    %v2876 = vpack.c.b16 %v2716, %v2712
    %v2877 = vpack.c.b16 %v2717, %v2713
    %v2878 = vpack.c.b16 %v2722, %v2718
    %v2879 = vpack.c.b16 %v2723, %v2719
    %v2880 = vpack.c.b16 %v2724, %v2720
    %v2881 = vpack.c.b16 %v2725, %v2721
    %v2882 = vpack.c.b16 %v2730, %v2726
    %v2883 = vpack.c.b16 %v2731, %v2727
    %v2884 = vpack.c.b16 %v2732, %v2728
    %v2885 = vpack.c.b16 %v2733, %v2729
    %v2886 = vpack.c.b16 %v2738, %v2734
    %v2887 = vpack.c.b16 %v2739, %v2735
    %v2888 = vpack.c.b16 %v2740, %v2736
    %v2889 = vpack.c.b16 %v2741, %v2737
    %v2890 = vpack.c.b16 %v2746, %v2742
    %v2891 = vpack.c.b16 %v2747, %v2743
    %v2892 = vpack.c.b16 %v2748, %v2744
    %v2893 = vpack.c.b16 %v2749, %v2745
    %v2894 = vpack.c.b16 %v2754, %v2750
    %v2895 = vpack.c.b16 %v2755, %v2751
    %v2896 = vpack.c.b16 %v2756, %v2752
    %v2897 = vpack.c.b16 %v2757, %v2753
    %v2898 = vpack.c.b16 %v2762, %v2758
    %v2899 = vpack.c.b16 %v2763, %v2759
    %v2900 = vpack.c.b16 %v2764, %v2760
    %v2901 = vpack.c.b16 %v2765, %v2761
    %v2902 = vpack.c.b16 %v2770, %v2766
    %v2903 = vpack.c.b16 %v2771, %v2767
    %v2904 = vpack.c.b16 %v2772, %v2768
    %v2905 = vpack.c.b16 %v2773, %v2769
    %v2906 = vpack.c.b16 %v2778, %v2774
    %v2907 = vpack.c.b16 %v2779, %v2775
    %v2908 = vpack.c.b16 %v2780, %v2776
    %v2909 = vpack.c.b16 %v2781, %v2777
    %3038 = vmatpush.bf16.msra.mxu0 %v2810
    %3039 = vmatpush.bf16.msra.mxu0 %v2806
    %3040 = vmatpush.bf16.msra.mxu0 %v2802
    %3041 = vmatpush.bf16.msra.mxu0 %v2798
    %3042 = vmatpush.bf16.msra.mxu0 %v2794
    %3043 = vmatpush.bf16.msra.mxu0 %v2790
    %3044 = vmatpush.bf16.msra.mxu0 %v2786
    %3045 = vmatpush.bf16.msra.mxu0 %v2782
    %3046 = vmatmul.bf16.gmra.mxu0 %v2254
    %v3047 = vpop.f32.mrf.mxu0
    %v3048 = vadd.f32 %v2390, %v3047
    %v3049 = vpop.f32.mrf.mxu0
    %3050 = vdwg.mxu0
    %3051 = vmatpush.bf16.msra.mxu0 %v2842
    %3052 = vmatpush.bf16.msra.mxu0 %v2838
    %3053 = vmatpush.bf16.msra.mxu0 %v2834
    %3054 = vmatpush.bf16.msra.mxu0 %v2830
    %3055 = vmatpush.bf16.msra.mxu0 %v2826
    %3056 = vmatpush.bf16.msra.mxu0 %v2822
    %3057 = vmatpush.bf16.msra.mxu0 %v2818
    %3058 = vmatpush.bf16.msra.mxu0 %v2814
    %3059 = vmatmul.bf16.gmra.mxu0 %v2255
    %v3060 = vpop.f32.mrf.mxu0
    %v3061 = vadd.f32 %v3048, %v3060
    %v3062 = vpop.f32.mrf.mxu0
    %3063 = vdwg.mxu0
    %3064 = vmatpush.bf16.msra.mxu0 %v2874
    %3065 = vmatpush.bf16.msra.mxu0 %v2870
    %3066 = vmatpush.bf16.msra.mxu0 %v2866
    %3067 = vmatpush.bf16.msra.mxu0 %v2862
    %3068 = vmatpush.bf16.msra.mxu0 %v2858
    %3069 = vmatpush.bf16.msra.mxu0 %v2854
    %3070 = vmatpush.bf16.msra.mxu0 %v2850
    %3071 = vmatpush.bf16.msra.mxu0 %v2846
    %3072 = vmatmul.bf16.gmra.mxu0 %v2256
    %v3073 = vpop.f32.mrf.mxu0
    %v3074 = vadd.f32 %v3061, %v3073
    %v3075 = vpop.f32.mrf.mxu0
    %3076 = vdwg.mxu0
    %3077 = vmatpush.bf16.msra.mxu0 %v2906
    %3078 = vmatpush.bf16.msra.mxu0 %v2902
    %3079 = vmatpush.bf16.msra.mxu0 %v2898
    %3080 = vmatpush.bf16.msra.mxu0 %v2894
    %3081 = vmatpush.bf16.msra.mxu0 %v2890
    %3082 = vmatpush.bf16.msra.mxu0 %v2886
    %3083 = vmatpush.bf16.msra.mxu0 %v2882
    %3084 = vmatpush.bf16.msra.mxu0 %v2878
    %3085 = vmatmul.bf16.gmra.mxu0 %v2257
    %v3086 = vpop.f32.mrf.mxu0
    %v3087 = vadd.f32 %v3074, %v3086
    %v3088 = vpop.f32.mrf.mxu0
    %3089 = vdwg.mxu0
    %3090 = vmatpush.bf16.msra.mxu0 %v2811
    %3091 = vmatpush.bf16.msra.mxu0 %v2807
    %3092 = vmatpush.bf16.msra.mxu0 %v2803
    %3093 = vmatpush.bf16.msra.mxu0 %v2799
    %3094 = vmatpush.bf16.msra.mxu0 %v2795
    %3095 = vmatpush.bf16.msra.mxu0 %v2791
    %3096 = vmatpush.bf16.msra.mxu0 %v2787
    %3097 = vmatpush.bf16.msra.mxu0 %v2783
    %3098 = vmatmul.bf16.gmra.mxu0 %v2254
    %v3099 = vpop.f32.mrf.mxu0
    %v3100 = vadd.f32 %v2391, %v3099
    %v3101 = vpop.f32.mrf.mxu0
    %3102 = vdwg.mxu0
    %3103 = vmatpush.bf16.msra.mxu0 %v2843
    %3104 = vmatpush.bf16.msra.mxu0 %v2839
    %3105 = vmatpush.bf16.msra.mxu0 %v2835
    %3106 = vmatpush.bf16.msra.mxu0 %v2831
    %3107 = vmatpush.bf16.msra.mxu0 %v2827
    %3108 = vmatpush.bf16.msra.mxu0 %v2823
    %3109 = vmatpush.bf16.msra.mxu0 %v2819
    %3110 = vmatpush.bf16.msra.mxu0 %v2815
    %3111 = vmatmul.bf16.gmra.mxu0 %v2255
    %v3112 = vpop.f32.mrf.mxu0
    %v3113 = vadd.f32 %v3100, %v3112
    %v3114 = vpop.f32.mrf.mxu0
    %3115 = vdwg.mxu0
    %3116 = vmatpush.bf16.msra.mxu0 %v2875
    %3117 = vmatpush.bf16.msra.mxu0 %v2871
    %3118 = vmatpush.bf16.msra.mxu0 %v2867
    %3119 = vmatpush.bf16.msra.mxu0 %v2863
    %3120 = vmatpush.bf16.msra.mxu0 %v2859
    %3121 = vmatpush.bf16.msra.mxu0 %v2855
    %3122 = vmatpush.bf16.msra.mxu0 %v2851
    %3123 = vmatpush.bf16.msra.mxu0 %v2847
    %3124 = vmatmul.bf16.gmra.mxu0 %v2256
    %v3125 = vpop.f32.mrf.mxu0
    %v3126 = vadd.f32 %v3113, %v3125
    %v3127 = vpop.f32.mrf.mxu0
    %3128 = vdwg.mxu0
    %3129 = vmatpush.bf16.msra.mxu0 %v2907
    %3130 = vmatpush.bf16.msra.mxu0 %v2903
    %3131 = vmatpush.bf16.msra.mxu0 %v2899
    %3132 = vmatpush.bf16.msra.mxu0 %v2895
    %3133 = vmatpush.bf16.msra.mxu0 %v2891
    %3134 = vmatpush.bf16.msra.mxu0 %v2887
    %3135 = vmatpush.bf16.msra.mxu0 %v2883
    %3136 = vmatpush.bf16.msra.mxu0 %v2879
    %3137 = vmatmul.bf16.gmra.mxu0 %v2257
    %v3138 = vpop.f32.mrf.mxu0
    %v3139 = vadd.f32 %v3126, %v3138
    %v3140 = vpop.f32.mrf.mxu0
    %3141 = vdwg.mxu0
    %3142 = vmatpush.bf16.msra.mxu0 %v2812
    %3143 = vmatpush.bf16.msra.mxu0 %v2808
    %3144 = vmatpush.bf16.msra.mxu0 %v2804
    %3145 = vmatpush.bf16.msra.mxu0 %v2800
    %3146 = vmatpush.bf16.msra.mxu0 %v2796
    %3147 = vmatpush.bf16.msra.mxu0 %v2792
    %3148 = vmatpush.bf16.msra.mxu0 %v2788
    %3149 = vmatpush.bf16.msra.mxu0 %v2784
    %3150 = vmatmul.bf16.gmra.mxu0 %v2254
    %v3151 = vpop.f32.mrf.mxu0
    %v3152 = vadd.f32 %v2392, %v3151
    %v3153 = vpop.f32.mrf.mxu0
    %3154 = vdwg.mxu0
    %3155 = vmatpush.bf16.msra.mxu0 %v2844
    %3156 = vmatpush.bf16.msra.mxu0 %v2840
    %3157 = vmatpush.bf16.msra.mxu0 %v2836
    %3158 = vmatpush.bf16.msra.mxu0 %v2832
    %3159 = vmatpush.bf16.msra.mxu0 %v2828
    %3160 = vmatpush.bf16.msra.mxu0 %v2824
    %3161 = vmatpush.bf16.msra.mxu0 %v2820
    %3162 = vmatpush.bf16.msra.mxu0 %v2816
    %3163 = vmatmul.bf16.gmra.mxu0 %v2255
    %v3164 = vpop.f32.mrf.mxu0
    %v3165 = vadd.f32 %v3152, %v3164
    %v3166 = vpop.f32.mrf.mxu0
    %3167 = vdwg.mxu0
    %3168 = vmatpush.bf16.msra.mxu0 %v2876
    %3169 = vmatpush.bf16.msra.mxu0 %v2872
    %3170 = vmatpush.bf16.msra.mxu0 %v2868
    %3171 = vmatpush.bf16.msra.mxu0 %v2864
    %3172 = vmatpush.bf16.msra.mxu0 %v2860
    %3173 = vmatpush.bf16.msra.mxu0 %v2856
    %3174 = vmatpush.bf16.msra.mxu0 %v2852
    %3175 = vmatpush.bf16.msra.mxu0 %v2848
    %3176 = vmatmul.bf16.gmra.mxu0 %v2256
    %v3177 = vpop.f32.mrf.mxu0
    %v3178 = vadd.f32 %v3165, %v3177
    %v3179 = vpop.f32.mrf.mxu0
    %3180 = vdwg.mxu0
    %3181 = vmatpush.bf16.msra.mxu0 %v2908
    %3182 = vmatpush.bf16.msra.mxu0 %v2904
    %3183 = vmatpush.bf16.msra.mxu0 %v2900
    %3184 = vmatpush.bf16.msra.mxu0 %v2896
    %3185 = vmatpush.bf16.msra.mxu0 %v2892
    %3186 = vmatpush.bf16.msra.mxu0 %v2888
    %3187 = vmatpush.bf16.msra.mxu0 %v2884
    %3188 = vmatpush.bf16.msra.mxu0 %v2880
    %3189 = vmatmul.bf16.gmra.mxu0 %v2257
    %v3190 = vpop.f32.mrf.mxu0
    %v3191 = vadd.f32 %v3178, %v3190
    %v3192 = vpop.f32.mrf.mxu0
    %3193 = vdwg.mxu0
    %3194 = vmatpush.bf16.msra.mxu0 %v2813
    %3195 = vmatpush.bf16.msra.mxu0 %v2809
    %3196 = vmatpush.bf16.msra.mxu0 %v2805
    %3197 = vmatpush.bf16.msra.mxu0 %v2801
    %3198 = vmatpush.bf16.msra.mxu0 %v2797
    %3199 = vmatpush.bf16.msra.mxu0 %v2793
    %3200 = vmatpush.bf16.msra.mxu0 %v2789
    %3201 = vmatpush.bf16.msra.mxu0 %v2785
    %3202 = vmatmul.bf16.gmra.mxu0 %v2254
    %v3203 = vpop.f32.mrf.mxu0
    %v3204 = vadd.f32 %v2393, %v3203
    %v3205 = vpop.f32.mrf.mxu0
    %3206 = vdwg.mxu0
    %3207 = vmatpush.bf16.msra.mxu0 %v2845
    %3208 = vmatpush.bf16.msra.mxu0 %v2841
    %3209 = vmatpush.bf16.msra.mxu0 %v2837
    %3210 = vmatpush.bf16.msra.mxu0 %v2833
    %3211 = vmatpush.bf16.msra.mxu0 %v2829
    %3212 = vmatpush.bf16.msra.mxu0 %v2825
    %3213 = vmatpush.bf16.msra.mxu0 %v2821
    %3214 = vmatpush.bf16.msra.mxu0 %v2817
    %3215 = vmatmul.bf16.gmra.mxu0 %v2255
    %v3216 = vpop.f32.mrf.mxu0
    %v3217 = vadd.f32 %v3204, %v3216
    %v3218 = vpop.f32.mrf.mxu0
    %3219 = vdwg.mxu0
    %3220 = vmatpush.bf16.msra.mxu0 %v2877
    %3221 = vmatpush.bf16.msra.mxu0 %v2873
    %3222 = vmatpush.bf16.msra.mxu0 %v2869
    %3223 = vmatpush.bf16.msra.mxu0 %v2865
    %3224 = vmatpush.bf16.msra.mxu0 %v2861
    %3225 = vmatpush.bf16.msra.mxu0 %v2857
    %3226 = vmatpush.bf16.msra.mxu0 %v2853
    %3227 = vmatpush.bf16.msra.mxu0 %v2849
    %3228 = vmatmul.bf16.gmra.mxu0 %v2256
    %v3229 = vpop.f32.mrf.mxu0
    %v3230 = vadd.f32 %v3217, %v3229
    %v3231 = vpop.f32.mrf.mxu0
    %3232 = vdwg.mxu0
    %3233 = vmatpush.bf16.msra.mxu0 %v2909
    %3234 = vmatpush.bf16.msra.mxu0 %v2905
    %3235 = vmatpush.bf16.msra.mxu0 %v2901
    %3236 = vmatpush.bf16.msra.mxu0 %v2897
    %3237 = vmatpush.bf16.msra.mxu0 %v2893
    %3238 = vmatpush.bf16.msra.mxu0 %v2889
    %3239 = vmatpush.bf16.msra.mxu0 %v2885
    %3240 = vmatpush.bf16.msra.mxu0 %v2881
    %3241 = vmatmul.bf16.gmra.mxu0 %v2257
    %v3242 = vpop.f32.mrf.mxu0
    %v3243 = vadd.f32 %v3230, %v3242
    %v3244 = vpop.f32.mrf.mxu0
    %3245 = vdwg.mxu0
    %v3246 = vmax.f32 %v3087, 0.0
    %v3247 = vmax.f32 %v3139, 0.0
    %v3248 = vmax.f32 %v3191, 0.0
    %v3249 = vmax.f32 %v3243, 0.0
    %v3250 = vpack.c.bf16 %v3246, %v3246
    %v3251 = vpack.c.bf16 %v3247, %v3247
    %v3252 = vpack.c.bf16 %v3248, %v3248
    %v3253 = vpack.c.bf16 %v3249, %v3249
    %s3254 = scalar_lea.vmem [#allocation6], 3072
    %v3255 = vld [vmem:[%s3254] sm:$0xff]
    %v3256 = vld [vmem:[%s3254 + $0x8] sm:$0xff]
    %v3257 = vld [vmem:[%s3254 + $0x10] sm:$0xff]
    %v3258 = vld [vmem:[%s3254 + $0x18] sm:$0xff]
    %v3259 = vld [vmem:[%s3254 + $0x20] sm:$0xff]
    %v3260 = vld [vmem:[%s3254 + $0x28] sm:$0xff]
    %v3261 = vld [vmem:[%s3254 + $0x30] sm:$0xff]
    %v3262 = vld [vmem:[%s3254 + $0x38] sm:$0xff]
    %v3263 = vld [vmem:[%s3254 + $0x40] sm:$0xff]
    %v3264 = vld [vmem:[%s3254 + $0x48] sm:$0xff]
    %v3265 = vld [vmem:[%s3254 + $0x50] sm:$0xff]
    %v3266 = vld [vmem:[%s3254 + $0x58] sm:$0xff]
    %v3267 = vld [vmem:[%s3254 + $0x60] sm:$0xff]
    %v3268 = vld [vmem:[%s3254 + $0x68] sm:$0xff]
    %v3269 = vld [vmem:[%s3254 + $0x70] sm:$0xff]
    %v3270 = vld [vmem:[%s3254 + $0x78] sm:$0xff]
    %v3271 = vld [vmem:[%s3254 + $0x80] sm:$0xff]
    %v3272 = vld [vmem:[%s3254 + $0x88] sm:$0xff]
    %v3273 = vld [vmem:[%s3254 + $0x90] sm:$0xff]
    %v3274 = vld [vmem:[%s3254 + $0x98] sm:$0xff]
    %v3275 = vld [vmem:[%s3254 + $0xa0] sm:$0xff]
    %v3276 = vld [vmem:[%s3254 + $0xa8] sm:$0xff]
    %v3277 = vld [vmem:[%s3254 + $0xb0] sm:$0xff]
    %v3278 = vld [vmem:[%s3254 + $0xb8] sm:$0xff]
    %v3279 = vld [vmem:[%s3254 + $0xc0] sm:$0xff]
    %v3280 = vld [vmem:[%s3254 + $0xc8] sm:$0xff]
    %v3281 = vld [vmem:[%s3254 + $0xd0] sm:$0xff]
    %v3282 = vld [vmem:[%s3254 + $0xd8] sm:$0xff]
    %v3283 = vld [vmem:[%s3254 + $0xe0] sm:$0xff]
    %v3284 = vld [vmem:[%s3254 + $0xe8] sm:$0xff]
    %v3285 = vld [vmem:[%s3254 + $0xf0] sm:$0xff]
    %v3286 = vld [vmem:[%s3254 + $0xf8] sm:$0xff]
    %v3287 = vld [vmem:[%s3254 + $0x100] sm:$0xff]
    %v3288 = vld [vmem:[%s3254 + $0x108] sm:$0xff]
    %v3289 = vld [vmem:[%s3254 + $0x110] sm:$0xff]
    %v3290 = vld [vmem:[%s3254 + $0x118] sm:$0xff]
    %v3291 = vld [vmem:[%s3254 + $0x120] sm:$0xff]
    %v3292 = vld [vmem:[%s3254 + $0x128] sm:$0xff]
    %v3293 = vld [vmem:[%s3254 + $0x130] sm:$0xff]
    %v3294 = vld [vmem:[%s3254 + $0x138] sm:$0xff]
    %v3295 = vld [vmem:[%s3254 + $0x140] sm:$0xff]
    %v3296 = vld [vmem:[%s3254 + $0x148] sm:$0xff]
    %v3297 = vld [vmem:[%s3254 + $0x150] sm:$0xff]
    %v3298 = vld [vmem:[%s3254 + $0x158] sm:$0xff]
    %v3299 = vld [vmem:[%s3254 + $0x160] sm:$0xff]
    %v3300 = vld [vmem:[%s3254 + $0x168] sm:$0xff]
    %v3301 = vld [vmem:[%s3254 + $0x170] sm:$0xff]
    %v3302 = vld [vmem:[%s3254 + $0x178] sm:$0xff]
    %v3303 = vld [vmem:[%s3254 + $0x180] sm:$0xff]
    %v3304 = vld [vmem:[%s3254 + $0x188] sm:$0xff]
    %v3305 = vld [vmem:[%s3254 + $0x190] sm:$0xff]
    %v3306 = vld [vmem:[%s3254 + $0x198] sm:$0xff]
    %v3307 = vld [vmem:[%s3254 + $0x1a0] sm:$0xff]
    %v3308 = vld [vmem:[%s3254 + $0x1a8] sm:$0xff]
    %v3309 = vld [vmem:[%s3254 + $0x1b0] sm:$0xff]
    %v3310 = vld [vmem:[%s3254 + $0x1b8] sm:$0xff]
    %v3311 = vld [vmem:[%s3254 + $0x1c0] sm:$0xff]
    %v3312 = vld [vmem:[%s3254 + $0x1c8] sm:$0xff]
    %v3313 = vld [vmem:[%s3254 + $0x1d0] sm:$0xff]
    %v3314 = vld [vmem:[%s3254 + $0x1d8] sm:$0xff]
    %v3315 = vld [vmem:[%s3254 + $0x1e0] sm:$0xff]
    %v3316 = vld [vmem:[%s3254 + $0x1e8] sm:$0xff]
    %v3317 = vld [vmem:[%s3254 + $0x1f0] sm:$0xff]
    %v3318 = vld [vmem:[%s3254 + $0x1f8] sm:$0xff]
    %v3319 = vld [vmem:[%s3254 + $0x200] sm:$0xff]
    %v3320 = vld [vmem:[%s3254 + $0x208] sm:$0xff]
    %v3321 = vld [vmem:[%s3254 + $0x210] sm:$0xff]
    %v3322 = vld [vmem:[%s3254 + $0x218] sm:$0xff]
    %v3323 = vld [vmem:[%s3254 + $0x220] sm:$0xff]
    %v3324 = vld [vmem:[%s3254 + $0x228] sm:$0xff]
    %v3325 = vld [vmem:[%s3254 + $0x230] sm:$0xff]
    %v3326 = vld [vmem:[%s3254 + $0x238] sm:$0xff]
    %v3327 = vld [vmem:[%s3254 + $0x240] sm:$0xff]
    %v3328 = vld [vmem:[%s3254 + $0x248] sm:$0xff]
    %v3329 = vld [vmem:[%s3254 + $0x250] sm:$0xff]
    %v3330 = vld [vmem:[%s3254 + $0x258] sm:$0xff]
    %v3331 = vld [vmem:[%s3254 + $0x260] sm:$0xff]
    %v3332 = vld [vmem:[%s3254 + $0x268] sm:$0xff]
    %v3333 = vld [vmem:[%s3254 + $0x270] sm:$0xff]
    %v3334 = vld [vmem:[%s3254 + $0x278] sm:$0xff]
    %v3335 = vld [vmem:[%s3254 + $0x280] sm:$0xff]
    %v3336 = vld [vmem:[%s3254 + $0x288] sm:$0xff]
    %v3337 = vld [vmem:[%s3254 + $0x290] sm:$0xff]
    %v3338 = vld [vmem:[%s3254 + $0x298] sm:$0xff]
    %v3339 = vld [vmem:[%s3254 + $0x2a0] sm:$0xff]
    %v3340 = vld [vmem:[%s3254 + $0x2a8] sm:$0xff]
    %v3341 = vld [vmem:[%s3254 + $0x2b0] sm:$0xff]
    %v3342 = vld [vmem:[%s3254 + $0x2b8] sm:$0xff]
    %v3343 = vld [vmem:[%s3254 + $0x2c0] sm:$0xff]
    %v3344 = vld [vmem:[%s3254 + $0x2c8] sm:$0xff]
    %v3345 = vld [vmem:[%s3254 + $0x2d0] sm:$0xff]
    %v3346 = vld [vmem:[%s3254 + $0x2d8] sm:$0xff]
    %v3347 = vld [vmem:[%s3254 + $0x2e0] sm:$0xff]
    %v3348 = vld [vmem:[%s3254 + $0x2e8] sm:$0xff]
    %v3349 = vld [vmem:[%s3254 + $0x2f0] sm:$0xff]
    %v3350 = vld [vmem:[%s3254 + $0x2f8] sm:$0xff]
    %v3351 = vld [vmem:[%s3254 + $0x300] sm:$0xff]
    %v3352 = vld [vmem:[%s3254 + $0x308] sm:$0xff]
    %v3353 = vld [vmem:[%s3254 + $0x310] sm:$0xff]
    %v3354 = vld [vmem:[%s3254 + $0x318] sm:$0xff]
    %v3355 = vld [vmem:[%s3254 + $0x320] sm:$0xff]
    %v3356 = vld [vmem:[%s3254 + $0x328] sm:$0xff]
    %v3357 = vld [vmem:[%s3254 + $0x330] sm:$0xff]
    %v3358 = vld [vmem:[%s3254 + $0x338] sm:$0xff]
    %v3359 = vld [vmem:[%s3254 + $0x340] sm:$0xff]
    %v3360 = vld [vmem:[%s3254 + $0x348] sm:$0xff]
    %v3361 = vld [vmem:[%s3254 + $0x350] sm:$0xff]
    %v3362 = vld [vmem:[%s3254 + $0x358] sm:$0xff]
    %v3363 = vld [vmem:[%s3254 + $0x360] sm:$0xff]
    %v3364 = vld [vmem:[%s3254 + $0x368] sm:$0xff]
    %v3365 = vld [vmem:[%s3254 + $0x370] sm:$0xff]
    %v3366 = vld [vmem:[%s3254 + $0x378] sm:$0xff]
    %v3367 = vld [vmem:[%s3254 + $0x380] sm:$0xff]
    %v3368 = vld [vmem:[%s3254 + $0x388] sm:$0xff]
    %v3369 = vld [vmem:[%s3254 + $0x390] sm:$0xff]
    %v3370 = vld [vmem:[%s3254 + $0x398] sm:$0xff]
    %v3371 = vld [vmem:[%s3254 + $0x3a0] sm:$0xff]
    %v3372 = vld [vmem:[%s3254 + $0x3a8] sm:$0xff]
    %v3373 = vld [vmem:[%s3254 + $0x3b0] sm:$0xff]
    %v3374 = vld [vmem:[%s3254 + $0x3b8] sm:$0xff]
    %v3375 = vld [vmem:[%s3254 + $0x3c0] sm:$0xff]
    %v3376 = vld [vmem:[%s3254 + $0x3c8] sm:$0xff]
    %v3377 = vld [vmem:[%s3254 + $0x3d0] sm:$0xff]
    %v3378 = vld [vmem:[%s3254 + $0x3d8] sm:$0xff]
    %v3379 = vld [vmem:[%s3254 + $0x3e0] sm:$0xff]
    %v3380 = vld [vmem:[%s3254 + $0x3e8] sm:$0xff]
    %v3381 = vld [vmem:[%s3254 + $0x3f0] sm:$0xff]
    %v3382 = vld [vmem:[%s3254 + $0x3f8] sm:$0xff]
    %s3383 = scalar_lea.vmem [#allocation7], 4
    %v3384 = vld [vmem:[%s3383] ss:$8 sm:$0xf]
    %v3386 = vperm.slane %v3384, 0
    %v3387 = vperm.slane %v3384, 1
    %v3388 = vperm.slane %v3384, 2
    %v3389 = vperm.slane %v3384, 3
    %v3522 = vunpack.c.l.b16 %v3255
    %v3523 = vunpack.c.h.b16 %v3255
    %v3524 = vunpack.c.l.b16 %v3256
    %v3525 = vunpack.c.h.b16 %v3256
    %v3526 = vunpack.c.l.b16 %v3257
    %v3527 = vunpack.c.h.b16 %v3257
    %v3528 = vunpack.c.l.b16 %v3258
    %v3529 = vunpack.c.h.b16 %v3258
    %v3530 = vunpack.c.l.b16 %v3259
    %v3531 = vunpack.c.h.b16 %v3259
    %v3532 = vunpack.c.l.b16 %v3260
    %v3533 = vunpack.c.h.b16 %v3260
    %v3534 = vunpack.c.l.b16 %v3261
    %v3535 = vunpack.c.h.b16 %v3261
    %v3536 = vunpack.c.l.b16 %v3262
    %v3537 = vunpack.c.h.b16 %v3262
    %v3538 = vunpack.c.l.b16 %v3263
    %v3539 = vunpack.c.h.b16 %v3263
    %v3540 = vunpack.c.l.b16 %v3264
    %v3541 = vunpack.c.h.b16 %v3264
    %v3542 = vunpack.c.l.b16 %v3265
    %v3543 = vunpack.c.h.b16 %v3265
    %v3544 = vunpack.c.l.b16 %v3266
    %v3545 = vunpack.c.h.b16 %v3266
    %v3546 = vunpack.c.l.b16 %v3267
    %v3547 = vunpack.c.h.b16 %v3267
    %v3548 = vunpack.c.l.b16 %v3268
    %v3549 = vunpack.c.h.b16 %v3268
    %v3550 = vunpack.c.l.b16 %v3269
    %v3551 = vunpack.c.h.b16 %v3269
    %v3552 = vunpack.c.l.b16 %v3270
    %v3553 = vunpack.c.h.b16 %v3270
    %v3554 = vunpack.c.l.b16 %v3271
    %v3555 = vunpack.c.h.b16 %v3271
    %v3556 = vunpack.c.l.b16 %v3272
    %v3557 = vunpack.c.h.b16 %v3272
    %v3558 = vunpack.c.l.b16 %v3273
    %v3559 = vunpack.c.h.b16 %v3273
    %v3560 = vunpack.c.l.b16 %v3274
    %v3561 = vunpack.c.h.b16 %v3274
    %v3562 = vunpack.c.l.b16 %v3275
    %v3563 = vunpack.c.h.b16 %v3275
    %v3564 = vunpack.c.l.b16 %v3276
    %v3565 = vunpack.c.h.b16 %v3276
    %v3566 = vunpack.c.l.b16 %v3277
    %v3567 = vunpack.c.h.b16 %v3277
    %v3568 = vunpack.c.l.b16 %v3278
    %v3569 = vunpack.c.h.b16 %v3278
    %v3570 = vunpack.c.l.b16 %v3279
    %v3571 = vunpack.c.h.b16 %v3279
    %v3572 = vunpack.c.l.b16 %v3280
    %v3573 = vunpack.c.h.b16 %v3280
    %v3574 = vunpack.c.l.b16 %v3281
    %v3575 = vunpack.c.h.b16 %v3281
    %v3576 = vunpack.c.l.b16 %v3282
    %v3577 = vunpack.c.h.b16 %v3282
    %v3578 = vunpack.c.l.b16 %v3283
    %v3579 = vunpack.c.h.b16 %v3283
    %v3580 = vunpack.c.l.b16 %v3284
    %v3581 = vunpack.c.h.b16 %v3284
    %v3582 = vunpack.c.l.b16 %v3285
    %v3583 = vunpack.c.h.b16 %v3285
    %v3584 = vunpack.c.l.b16 %v3286
    %v3585 = vunpack.c.h.b16 %v3286
    %v3586 = vunpack.c.l.b16 %v3287
    %v3587 = vunpack.c.h.b16 %v3287
    %v3588 = vunpack.c.l.b16 %v3288
    %v3589 = vunpack.c.h.b16 %v3288
    %v3590 = vunpack.c.l.b16 %v3289
    %v3591 = vunpack.c.h.b16 %v3289
    %v3592 = vunpack.c.l.b16 %v3290
    %v3593 = vunpack.c.h.b16 %v3290
    %v3594 = vunpack.c.l.b16 %v3291
    %v3595 = vunpack.c.h.b16 %v3291
    %v3596 = vunpack.c.l.b16 %v3292
    %v3597 = vunpack.c.h.b16 %v3292
    %v3598 = vunpack.c.l.b16 %v3293
    %v3599 = vunpack.c.h.b16 %v3293
    %v3600 = vunpack.c.l.b16 %v3294
    %v3601 = vunpack.c.h.b16 %v3294
    %v3602 = vunpack.c.l.b16 %v3295
    %v3603 = vunpack.c.h.b16 %v3295
    %v3604 = vunpack.c.l.b16 %v3296
    %v3605 = vunpack.c.h.b16 %v3296
    %v3606 = vunpack.c.l.b16 %v3297
    %v3607 = vunpack.c.h.b16 %v3297
    %v3608 = vunpack.c.l.b16 %v3298
    %v3609 = vunpack.c.h.b16 %v3298
    %v3610 = vunpack.c.l.b16 %v3299
    %v3611 = vunpack.c.h.b16 %v3299
    %v3612 = vunpack.c.l.b16 %v3300
    %v3613 = vunpack.c.h.b16 %v3300
    %v3614 = vunpack.c.l.b16 %v3301
    %v3615 = vunpack.c.h.b16 %v3301
    %v3616 = vunpack.c.l.b16 %v3302
    %v3617 = vunpack.c.h.b16 %v3302
    %v3618 = vunpack.c.l.b16 %v3303
    %v3619 = vunpack.c.h.b16 %v3303
    %v3620 = vunpack.c.l.b16 %v3304
    %v3621 = vunpack.c.h.b16 %v3304
    %v3622 = vunpack.c.l.b16 %v3305
    %v3623 = vunpack.c.h.b16 %v3305
    %v3624 = vunpack.c.l.b16 %v3306
    %v3625 = vunpack.c.h.b16 %v3306
    %v3626 = vunpack.c.l.b16 %v3307
    %v3627 = vunpack.c.h.b16 %v3307
    %v3628 = vunpack.c.l.b16 %v3308
    %v3629 = vunpack.c.h.b16 %v3308
    %v3630 = vunpack.c.l.b16 %v3309
    %v3631 = vunpack.c.h.b16 %v3309
    %v3632 = vunpack.c.l.b16 %v3310
    %v3633 = vunpack.c.h.b16 %v3310
    %v3634 = vunpack.c.l.b16 %v3311
    %v3635 = vunpack.c.h.b16 %v3311
    %v3636 = vunpack.c.l.b16 %v3312
    %v3637 = vunpack.c.h.b16 %v3312
    %v3638 = vunpack.c.l.b16 %v3313
    %v3639 = vunpack.c.h.b16 %v3313
    %v3640 = vunpack.c.l.b16 %v3314
    %v3641 = vunpack.c.h.b16 %v3314
    %v3642 = vunpack.c.l.b16 %v3315
    %v3643 = vunpack.c.h.b16 %v3315
    %v3644 = vunpack.c.l.b16 %v3316
    %v3645 = vunpack.c.h.b16 %v3316
    %v3646 = vunpack.c.l.b16 %v3317
    %v3647 = vunpack.c.h.b16 %v3317
    %v3648 = vunpack.c.l.b16 %v3318
    %v3649 = vunpack.c.h.b16 %v3318
    %v3650 = vunpack.c.l.b16 %v3319
    %v3651 = vunpack.c.h.b16 %v3319
    %v3652 = vunpack.c.l.b16 %v3320
    %v3653 = vunpack.c.h.b16 %v3320
    %v3654 = vunpack.c.l.b16 %v3321
    %v3655 = vunpack.c.h.b16 %v3321
    %v3656 = vunpack.c.l.b16 %v3322
    %v3657 = vunpack.c.h.b16 %v3322
    %v3658 = vunpack.c.l.b16 %v3323
    %v3659 = vunpack.c.h.b16 %v3323
    %v3660 = vunpack.c.l.b16 %v3324
    %v3661 = vunpack.c.h.b16 %v3324
    %v3662 = vunpack.c.l.b16 %v3325
    %v3663 = vunpack.c.h.b16 %v3325
    %v3664 = vunpack.c.l.b16 %v3326
    %v3665 = vunpack.c.h.b16 %v3326
    %v3666 = vunpack.c.l.b16 %v3327
    %v3667 = vunpack.c.h.b16 %v3327
    %v3668 = vunpack.c.l.b16 %v3328
    %v3669 = vunpack.c.h.b16 %v3328
    %v3670 = vunpack.c.l.b16 %v3329
    %v3671 = vunpack.c.h.b16 %v3329
    %v3672 = vunpack.c.l.b16 %v3330
    %v3673 = vunpack.c.h.b16 %v3330
    %v3674 = vunpack.c.l.b16 %v3331
    %v3675 = vunpack.c.h.b16 %v3331
    %v3676 = vunpack.c.l.b16 %v3332
    %v3677 = vunpack.c.h.b16 %v3332
    %v3678 = vunpack.c.l.b16 %v3333
    %v3679 = vunpack.c.h.b16 %v3333
    %v3680 = vunpack.c.l.b16 %v3334
    %v3681 = vunpack.c.h.b16 %v3334
    %v3682 = vunpack.c.l.b16 %v3335
    %v3683 = vunpack.c.h.b16 %v3335
    %v3684 = vunpack.c.l.b16 %v3336
    %v3685 = vunpack.c.h.b16 %v3336
    %v3686 = vunpack.c.l.b16 %v3337
    %v3687 = vunpack.c.h.b16 %v3337
    %v3688 = vunpack.c.l.b16 %v3338
    %v3689 = vunpack.c.h.b16 %v3338
    %v3690 = vunpack.c.l.b16 %v3339
    %v3691 = vunpack.c.h.b16 %v3339
    %v3692 = vunpack.c.l.b16 %v3340
    %v3693 = vunpack.c.h.b16 %v3340
    %v3694 = vunpack.c.l.b16 %v3341
    %v3695 = vunpack.c.h.b16 %v3341
    %v3696 = vunpack.c.l.b16 %v3342
    %v3697 = vunpack.c.h.b16 %v3342
    %v3698 = vunpack.c.l.b16 %v3343
    %v3699 = vunpack.c.h.b16 %v3343
    %v3700 = vunpack.c.l.b16 %v3344
    %v3701 = vunpack.c.h.b16 %v3344
    %v3702 = vunpack.c.l.b16 %v3345
    %v3703 = vunpack.c.h.b16 %v3345
    %v3704 = vunpack.c.l.b16 %v3346
    %v3705 = vunpack.c.h.b16 %v3346
    %v3706 = vunpack.c.l.b16 %v3347
    %v3707 = vunpack.c.h.b16 %v3347
    %v3708 = vunpack.c.l.b16 %v3348
    %v3709 = vunpack.c.h.b16 %v3348
    %v3710 = vunpack.c.l.b16 %v3349
    %v3711 = vunpack.c.h.b16 %v3349
    %v3712 = vunpack.c.l.b16 %v3350
    %v3713 = vunpack.c.h.b16 %v3350
    %v3714 = vunpack.c.l.b16 %v3351
    %v3715 = vunpack.c.h.b16 %v3351
    %v3716 = vunpack.c.l.b16 %v3352
    %v3717 = vunpack.c.h.b16 %v3352
    %v3718 = vunpack.c.l.b16 %v3353
    %v3719 = vunpack.c.h.b16 %v3353
    %v3720 = vunpack.c.l.b16 %v3354
    %v3721 = vunpack.c.h.b16 %v3354
    %v3722 = vunpack.c.l.b16 %v3355
    %v3723 = vunpack.c.h.b16 %v3355
    %v3724 = vunpack.c.l.b16 %v3356
    %v3725 = vunpack.c.h.b16 %v3356
    %v3726 = vunpack.c.l.b16 %v3357
    %v3727 = vunpack.c.h.b16 %v3357
    %v3728 = vunpack.c.l.b16 %v3358
    %v3729 = vunpack.c.h.b16 %v3358
    %v3730 = vunpack.c.l.b16 %v3359
    %v3731 = vunpack.c.h.b16 %v3359
    %v3732 = vunpack.c.l.b16 %v3360
    %v3733 = vunpack.c.h.b16 %v3360
    %v3734 = vunpack.c.l.b16 %v3361
    %v3735 = vunpack.c.h.b16 %v3361
    %v3736 = vunpack.c.l.b16 %v3362
    %v3737 = vunpack.c.h.b16 %v3362
    %v3738 = vunpack.c.l.b16 %v3363
    %v3739 = vunpack.c.h.b16 %v3363
    %v3740 = vunpack.c.l.b16 %v3364
    %v3741 = vunpack.c.h.b16 %v3364
    %v3742 = vunpack.c.l.b16 %v3365
    %v3743 = vunpack.c.h.b16 %v3365
    %v3744 = vunpack.c.l.b16 %v3366
    %v3745 = vunpack.c.h.b16 %v3366
    %v3746 = vunpack.c.l.b16 %v3367
    %v3747 = vunpack.c.h.b16 %v3367
    %v3748 = vunpack.c.l.b16 %v3368
    %v3749 = vunpack.c.h.b16 %v3368
    %v3750 = vunpack.c.l.b16 %v3369
    %v3751 = vunpack.c.h.b16 %v3369
    %v3752 = vunpack.c.l.b16 %v3370
    %v3753 = vunpack.c.h.b16 %v3370
    %v3754 = vunpack.c.l.b16 %v3371
    %v3755 = vunpack.c.h.b16 %v3371
    %v3756 = vunpack.c.l.b16 %v3372
    %v3757 = vunpack.c.h.b16 %v3372
    %v3758 = vunpack.c.l.b16 %v3373
    %v3759 = vunpack.c.h.b16 %v3373
    %v3760 = vunpack.c.l.b16 %v3374
    %v3761 = vunpack.c.h.b16 %v3374
    %v3762 = vunpack.c.l.b16 %v3375
    %v3763 = vunpack.c.h.b16 %v3375
    %v3764 = vunpack.c.l.b16 %v3376
    %v3765 = vunpack.c.h.b16 %v3376
    %v3766 = vunpack.c.l.b16 %v3377
    %v3767 = vunpack.c.h.b16 %v3377
    %v3768 = vunpack.c.l.b16 %v3378
    %v3769 = vunpack.c.h.b16 %v3378
    %v3770 = vunpack.c.l.b16 %v3379
    %v3771 = vunpack.c.h.b16 %v3379
    %v3772 = vunpack.c.l.b16 %v3380
    %v3773 = vunpack.c.h.b16 %v3380
    %v3774 = vunpack.c.l.b16 %v3381
    %v3775 = vunpack.c.h.b16 %v3381
    %v3776 = vunpack.c.l.b16 %v3382
    %v3777 = vunpack.c.h.b16 %v3382
    %v3778 = vpack.c.b16 %v3526, %v3522
    %v3779 = vpack.c.b16 %v3527, %v3523
    %v3780 = vpack.c.b16 %v3528, %v3524
    %v3781 = vpack.c.b16 %v3529, %v3525
    %v3782 = vpack.c.b16 %v3534, %v3530
    %v3783 = vpack.c.b16 %v3535, %v3531
    %v3784 = vpack.c.b16 %v3536, %v3532
    %v3785 = vpack.c.b16 %v3537, %v3533
    %v3786 = vpack.c.b16 %v3542, %v3538
    %v3787 = vpack.c.b16 %v3543, %v3539
    %v3788 = vpack.c.b16 %v3544, %v3540
    %v3789 = vpack.c.b16 %v3545, %v3541
    %v3790 = vpack.c.b16 %v3550, %v3546
    %v3791 = vpack.c.b16 %v3551, %v3547
    %v3792 = vpack.c.b16 %v3552, %v3548
    %v3793 = vpack.c.b16 %v3553, %v3549
    %v3794 = vpack.c.b16 %v3558, %v3554
    %v3795 = vpack.c.b16 %v3559, %v3555
    %v3796 = vpack.c.b16 %v3560, %v3556
    %v3797 = vpack.c.b16 %v3561, %v3557
    %v3798 = vpack.c.b16 %v3566, %v3562
    %v3799 = vpack.c.b16 %v3567, %v3563
    %v3800 = vpack.c.b16 %v3568, %v3564
    %v3801 = vpack.c.b16 %v3569, %v3565
    %v3802 = vpack.c.b16 %v3574, %v3570
    %v3803 = vpack.c.b16 %v3575, %v3571
    %v3804 = vpack.c.b16 %v3576, %v3572
    %v3805 = vpack.c.b16 %v3577, %v3573
    %v3806 = vpack.c.b16 %v3582, %v3578
    %v3807 = vpack.c.b16 %v3583, %v3579
    %v3808 = vpack.c.b16 %v3584, %v3580
    %v3809 = vpack.c.b16 %v3585, %v3581
    %v3810 = vpack.c.b16 %v3590, %v3586
    %v3811 = vpack.c.b16 %v3591, %v3587
    %v3812 = vpack.c.b16 %v3592, %v3588
    %v3813 = vpack.c.b16 %v3593, %v3589
    %v3814 = vpack.c.b16 %v3598, %v3594
    %v3815 = vpack.c.b16 %v3599, %v3595
    %v3816 = vpack.c.b16 %v3600, %v3596
    %v3817 = vpack.c.b16 %v3601, %v3597
    %v3818 = vpack.c.b16 %v3606, %v3602
    %v3819 = vpack.c.b16 %v3607, %v3603
    %v3820 = vpack.c.b16 %v3608, %v3604
    %v3821 = vpack.c.b16 %v3609, %v3605
    %v3822 = vpack.c.b16 %v3614, %v3610
    %v3823 = vpack.c.b16 %v3615, %v3611
    %v3824 = vpack.c.b16 %v3616, %v3612
    %v3825 = vpack.c.b16 %v3617, %v3613
    %v3826 = vpack.c.b16 %v3622, %v3618
    %v3827 = vpack.c.b16 %v3623, %v3619
    %v3828 = vpack.c.b16 %v3624, %v3620
    %v3829 = vpack.c.b16 %v3625, %v3621
    %v3830 = vpack.c.b16 %v3630, %v3626
    %v3831 = vpack.c.b16 %v3631, %v3627
    %v3832 = vpack.c.b16 %v3632, %v3628
    %v3833 = vpack.c.b16 %v3633, %v3629
    %v3834 = vpack.c.b16 %v3638, %v3634
    %v3835 = vpack.c.b16 %v3639, %v3635
    %v3836 = vpack.c.b16 %v3640, %v3636
    %v3837 = vpack.c.b16 %v3641, %v3637
    %v3838 = vpack.c.b16 %v3646, %v3642
    %v3839 = vpack.c.b16 %v3647, %v3643
    %v3840 = vpack.c.b16 %v3648, %v3644
    %v3841 = vpack.c.b16 %v3649, %v3645
    %v3842 = vpack.c.b16 %v3654, %v3650
    %v3843 = vpack.c.b16 %v3655, %v3651
    %v3844 = vpack.c.b16 %v3656, %v3652
    %v3845 = vpack.c.b16 %v3657, %v3653
    %v3846 = vpack.c.b16 %v3662, %v3658
    %v3847 = vpack.c.b16 %v3663, %v3659
    %v3848 = vpack.c.b16 %v3664, %v3660
    %v3849 = vpack.c.b16 %v3665, %v3661
    %v3850 = vpack.c.b16 %v3670, %v3666
    %v3851 = vpack.c.b16 %v3671, %v3667
    %v3852 = vpack.c.b16 %v3672, %v3668
    %v3853 = vpack.c.b16 %v3673, %v3669
    %v3854 = vpack.c.b16 %v3678, %v3674
    %v3855 = vpack.c.b16 %v3679, %v3675
    %v3856 = vpack.c.b16 %v3680, %v3676
    %v3857 = vpack.c.b16 %v3681, %v3677
    %v3858 = vpack.c.b16 %v3686, %v3682
    %v3859 = vpack.c.b16 %v3687, %v3683
    %v3860 = vpack.c.b16 %v3688, %v3684
    %v3861 = vpack.c.b16 %v3689, %v3685
    %v3862 = vpack.c.b16 %v3694, %v3690
    %v3863 = vpack.c.b16 %v3695, %v3691
    %v3864 = vpack.c.b16 %v3696, %v3692
    %v3865 = vpack.c.b16 %v3697, %v3693
    %v3866 = vpack.c.b16 %v3702, %v3698
    %v3867 = vpack.c.b16 %v3703, %v3699
    %v3868 = vpack.c.b16 %v3704, %v3700
    %v3869 = vpack.c.b16 %v3705, %v3701
    %v3870 = vpack.c.b16 %v3710, %v3706
    %v3871 = vpack.c.b16 %v3711, %v3707
    %v3872 = vpack.c.b16 %v3712, %v3708
    %v3873 = vpack.c.b16 %v3713, %v3709
    %v3874 = vpack.c.b16 %v3718, %v3714
    %v3875 = vpack.c.b16 %v3719, %v3715
    %v3876 = vpack.c.b16 %v3720, %v3716
    %v3877 = vpack.c.b16 %v3721, %v3717
    %v3878 = vpack.c.b16 %v3726, %v3722
    %v3879 = vpack.c.b16 %v3727, %v3723
    %v3880 = vpack.c.b16 %v3728, %v3724
    %v3881 = vpack.c.b16 %v3729, %v3725
    %v3882 = vpack.c.b16 %v3734, %v3730
    %v3883 = vpack.c.b16 %v3735, %v3731
    %v3884 = vpack.c.b16 %v3736, %v3732
    %v3885 = vpack.c.b16 %v3737, %v3733
    %v3886 = vpack.c.b16 %v3742, %v3738
    %v3887 = vpack.c.b16 %v3743, %v3739
    %v3888 = vpack.c.b16 %v3744, %v3740
    %v3889 = vpack.c.b16 %v3745, %v3741
    %v3890 = vpack.c.b16 %v3750, %v3746
    %v3891 = vpack.c.b16 %v3751, %v3747
    %v3892 = vpack.c.b16 %v3752, %v3748
    %v3893 = vpack.c.b16 %v3753, %v3749
    %v3894 = vpack.c.b16 %v3758, %v3754
    %v3895 = vpack.c.b16 %v3759, %v3755
    %v3896 = vpack.c.b16 %v3760, %v3756
    %v3897 = vpack.c.b16 %v3761, %v3757
    %v3898 = vpack.c.b16 %v3766, %v3762
    %v3899 = vpack.c.b16 %v3767, %v3763
    %v3900 = vpack.c.b16 %v3768, %v3764
    %v3901 = vpack.c.b16 %v3769, %v3765
    %v3902 = vpack.c.b16 %v3774, %v3770
    %v3903 = vpack.c.b16 %v3775, %v3771
    %v3904 = vpack.c.b16 %v3776, %v3772
    %v3905 = vpack.c.b16 %v3777, %v3773
    %4034 = vmatpush.bf16.msra.mxu0 %v3806
    %4035 = vmatpush.bf16.msra.mxu0 %v3802
    %4036 = vmatpush.bf16.msra.mxu0 %v3798
    %4037 = vmatpush.bf16.msra.mxu0 %v3794
    %4038 = vmatpush.bf16.msra.mxu0 %v3790
    %4039 = vmatpush.bf16.msra.mxu0 %v3786
    %4040 = vmatpush.bf16.msra.mxu0 %v3782
    %4041 = vmatpush.bf16.msra.mxu0 %v3778
    %4042 = vmatmul.bf16.gmra.mxu0 %v3250
    %v4043 = vpop.f32.mrf.mxu0
    %v4044 = vadd.f32 %v3386, %v4043
    %v4045 = vpop.f32.mrf.mxu0
    %4046 = vdwg.mxu0
    %4047 = vmatpush.bf16.msra.mxu0 %v3838
    %4048 = vmatpush.bf16.msra.mxu0 %v3834
    %4049 = vmatpush.bf16.msra.mxu0 %v3830
    %4050 = vmatpush.bf16.msra.mxu0 %v3826
    %4051 = vmatpush.bf16.msra.mxu0 %v3822
    %4052 = vmatpush.bf16.msra.mxu0 %v3818
    %4053 = vmatpush.bf16.msra.mxu0 %v3814
    %4054 = vmatpush.bf16.msra.mxu0 %v3810
    %4055 = vmatmul.bf16.gmra.mxu0 %v3251
    %v4056 = vpop.f32.mrf.mxu0
    %v4057 = vadd.f32 %v4044, %v4056
    %v4058 = vpop.f32.mrf.mxu0
    %4059 = vdwg.mxu0
    %4060 = vmatpush.bf16.msra.mxu0 %v3870
    %4061 = vmatpush.bf16.msra.mxu0 %v3866
    %4062 = vmatpush.bf16.msra.mxu0 %v3862
    %4063 = vmatpush.bf16.msra.mxu0 %v3858
    %4064 = vmatpush.bf16.msra.mxu0 %v3854
    %4065 = vmatpush.bf16.msra.mxu0 %v3850
    %4066 = vmatpush.bf16.msra.mxu0 %v3846
    %4067 = vmatpush.bf16.msra.mxu0 %v3842
    %4068 = vmatmul.bf16.gmra.mxu0 %v3252
    %v4069 = vpop.f32.mrf.mxu0
    %v4070 = vadd.f32 %v4057, %v4069
    %v4071 = vpop.f32.mrf.mxu0
    %4072 = vdwg.mxu0
    %4073 = vmatpush.bf16.msra.mxu0 %v3902
    %4074 = vmatpush.bf16.msra.mxu0 %v3898
    %4075 = vmatpush.bf16.msra.mxu0 %v3894
    %4076 = vmatpush.bf16.msra.mxu0 %v3890
    %4077 = vmatpush.bf16.msra.mxu0 %v3886
    %4078 = vmatpush.bf16.msra.mxu0 %v3882
    %4079 = vmatpush.bf16.msra.mxu0 %v3878
    %4080 = vmatpush.bf16.msra.mxu0 %v3874
    %4081 = vmatmul.bf16.gmra.mxu0 %v3253
    %v4082 = vpop.f32.mrf.mxu0
    %v4083 = vadd.f32 %v4070, %v4082
    %v4084 = vpop.f32.mrf.mxu0
    %4085 = vdwg.mxu0
    %4086 = vmatpush.bf16.msra.mxu0 %v3807
    %4087 = vmatpush.bf16.msra.mxu0 %v3803
    %4088 = vmatpush.bf16.msra.mxu0 %v3799
    %4089 = vmatpush.bf16.msra.mxu0 %v3795
    %4090 = vmatpush.bf16.msra.mxu0 %v3791
    %4091 = vmatpush.bf16.msra.mxu0 %v3787
    %4092 = vmatpush.bf16.msra.mxu0 %v3783
    %4093 = vmatpush.bf16.msra.mxu0 %v3779
    %4094 = vmatmul.bf16.gmra.mxu0 %v3250
    %v4095 = vpop.f32.mrf.mxu0
    %v4096 = vadd.f32 %v3387, %v4095
    %v4097 = vpop.f32.mrf.mxu0
    %4098 = vdwg.mxu0
    %4099 = vmatpush.bf16.msra.mxu0 %v3839
    %4100 = vmatpush.bf16.msra.mxu0 %v3835
    %4101 = vmatpush.bf16.msra.mxu0 %v3831
    %4102 = vmatpush.bf16.msra.mxu0 %v3827
    %4103 = vmatpush.bf16.msra.mxu0 %v3823
    %4104 = vmatpush.bf16.msra.mxu0 %v3819
    %4105 = vmatpush.bf16.msra.mxu0 %v3815
    %4106 = vmatpush.bf16.msra.mxu0 %v3811
    %4107 = vmatmul.bf16.gmra.mxu0 %v3251
    %v4108 = vpop.f32.mrf.mxu0
    %v4109 = vadd.f32 %v4096, %v4108
    %v4110 = vpop.f32.mrf.mxu0
    %4111 = vdwg.mxu0
    %4112 = vmatpush.bf16.msra.mxu0 %v3871
    %4113 = vmatpush.bf16.msra.mxu0 %v3867
    %4114 = vmatpush.bf16.msra.mxu0 %v3863
    %4115 = vmatpush.bf16.msra.mxu0 %v3859
    %4116 = vmatpush.bf16.msra.mxu0 %v3855
    %4117 = vmatpush.bf16.msra.mxu0 %v3851
    %4118 = vmatpush.bf16.msra.mxu0 %v3847
    %4119 = vmatpush.bf16.msra.mxu0 %v3843
    %4120 = vmatmul.bf16.gmra.mxu0 %v3252
    %v4121 = vpop.f32.mrf.mxu0
    %v4122 = vadd.f32 %v4109, %v4121
    %v4123 = vpop.f32.mrf.mxu0
    %4124 = vdwg.mxu0
    %4125 = vmatpush.bf16.msra.mxu0 %v3903
    %4126 = vmatpush.bf16.msra.mxu0 %v3899
    %4127 = vmatpush.bf16.msra.mxu0 %v3895
    %4128 = vmatpush.bf16.msra.mxu0 %v3891
    %4129 = vmatpush.bf16.msra.mxu0 %v3887
    %4130 = vmatpush.bf16.msra.mxu0 %v3883
    %4131 = vmatpush.bf16.msra.mxu0 %v3879
    %4132 = vmatpush.bf16.msra.mxu0 %v3875
    %4133 = vmatmul.bf16.gmra.mxu0 %v3253
    %v4134 = vpop.f32.mrf.mxu0
    %v4135 = vadd.f32 %v4122, %v4134
    %v4136 = vpop.f32.mrf.mxu0
    %4137 = vdwg.mxu0
    %4138 = vmatpush.bf16.msra.mxu0 %v3808
    %4139 = vmatpush.bf16.msra.mxu0 %v3804
    %4140 = vmatpush.bf16.msra.mxu0 %v3800
    %4141 = vmatpush.bf16.msra.mxu0 %v3796
    %4142 = vmatpush.bf16.msra.mxu0 %v3792
    %4143 = vmatpush.bf16.msra.mxu0 %v3788
    %4144 = vmatpush.bf16.msra.mxu0 %v3784
    %4145 = vmatpush.bf16.msra.mxu0 %v3780
    %4146 = vmatmul.bf16.gmra.mxu0 %v3250
    %v4147 = vpop.f32.mrf.mxu0
    %v4148 = vadd.f32 %v3388, %v4147
    %v4149 = vpop.f32.mrf.mxu0
    %4150 = vdwg.mxu0
    %4151 = vmatpush.bf16.msra.mxu0 %v3840
    %4152 = vmatpush.bf16.msra.mxu0 %v3836
    %4153 = vmatpush.bf16.msra.mxu0 %v3832
    %4154 = vmatpush.bf16.msra.mxu0 %v3828
    %4155 = vmatpush.bf16.msra.mxu0 %v3824
    %4156 = vmatpush.bf16.msra.mxu0 %v3820
    %4157 = vmatpush.bf16.msra.mxu0 %v3816
    %4158 = vmatpush.bf16.msra.mxu0 %v3812
    %4159 = vmatmul.bf16.gmra.mxu0 %v3251
    %v4160 = vpop.f32.mrf.mxu0
    %v4161 = vadd.f32 %v4148, %v4160
    %v4162 = vpop.f32.mrf.mxu0
    %4163 = vdwg.mxu0
    %4164 = vmatpush.bf16.msra.mxu0 %v3872
    %4165 = vmatpush.bf16.msra.mxu0 %v3868
    %4166 = vmatpush.bf16.msra.mxu0 %v3864
    %4167 = vmatpush.bf16.msra.mxu0 %v3860
    %4168 = vmatpush.bf16.msra.mxu0 %v3856
    %4169 = vmatpush.bf16.msra.mxu0 %v3852
    %4170 = vmatpush.bf16.msra.mxu0 %v3848
    %4171 = vmatpush.bf16.msra.mxu0 %v3844
    %4172 = vmatmul.bf16.gmra.mxu0 %v3252
    %v4173 = vpop.f32.mrf.mxu0
    %v4174 = vadd.f32 %v4161, %v4173
    %v4175 = vpop.f32.mrf.mxu0
    %4176 = vdwg.mxu0
    %4177 = vmatpush.bf16.msra.mxu0 %v3904
    %4178 = vmatpush.bf16.msra.mxu0 %v3900
    %4179 = vmatpush.bf16.msra.mxu0 %v3896
    %4180 = vmatpush.bf16.msra.mxu0 %v3892
    %4181 = vmatpush.bf16.msra.mxu0 %v3888
    %4182 = vmatpush.bf16.msra.mxu0 %v3884
    %4183 = vmatpush.bf16.msra.mxu0 %v3880
    %4184 = vmatpush.bf16.msra.mxu0 %v3876
    %4185 = vmatmul.bf16.gmra.mxu0 %v3253
    %v4186 = vpop.f32.mrf.mxu0
    %v4187 = vadd.f32 %v4174, %v4186
    %v4188 = vpop.f32.mrf.mxu0
    %4189 = vdwg.mxu0
    %4190 = vmatpush.bf16.msra.mxu0 %v3809
    %4191 = vmatpush.bf16.msra.mxu0 %v3805
    %4192 = vmatpush.bf16.msra.mxu0 %v3801
    %4193 = vmatpush.bf16.msra.mxu0 %v3797
    %4194 = vmatpush.bf16.msra.mxu0 %v3793
    %4195 = vmatpush.bf16.msra.mxu0 %v3789
    %4196 = vmatpush.bf16.msra.mxu0 %v3785
    %4197 = vmatpush.bf16.msra.mxu0 %v3781
    %4198 = vmatmul.bf16.gmra.mxu0 %v3250
    %v4199 = vpop.f32.mrf.mxu0
    %v4200 = vadd.f32 %v3389, %v4199
    %v4201 = vpop.f32.mrf.mxu0
    %4202 = vdwg.mxu0
    %4203 = vmatpush.bf16.msra.mxu0 %v3841
    %4204 = vmatpush.bf16.msra.mxu0 %v3837
    %4205 = vmatpush.bf16.msra.mxu0 %v3833
    %4206 = vmatpush.bf16.msra.mxu0 %v3829
    %4207 = vmatpush.bf16.msra.mxu0 %v3825
    %4208 = vmatpush.bf16.msra.mxu0 %v3821
    %4209 = vmatpush.bf16.msra.mxu0 %v3817
    %4210 = vmatpush.bf16.msra.mxu0 %v3813
    %4211 = vmatmul.bf16.gmra.mxu0 %v3251
    %v4212 = vpop.f32.mrf.mxu0
    %v4213 = vadd.f32 %v4200, %v4212
    %v4214 = vpop.f32.mrf.mxu0
    %4215 = vdwg.mxu0
    %4216 = vmatpush.bf16.msra.mxu0 %v3873
    %4217 = vmatpush.bf16.msra.mxu0 %v3869
    %4218 = vmatpush.bf16.msra.mxu0 %v3865
    %4219 = vmatpush.bf16.msra.mxu0 %v3861
    %4220 = vmatpush.bf16.msra.mxu0 %v3857
    %4221 = vmatpush.bf16.msra.mxu0 %v3853
    %4222 = vmatpush.bf16.msra.mxu0 %v3849
    %4223 = vmatpush.bf16.msra.mxu0 %v3845
    %4224 = vmatmul.bf16.gmra.mxu0 %v3252
    %v4225 = vpop.f32.mrf.mxu0
    %v4226 = vadd.f32 %v4213, %v4225
    %v4227 = vpop.f32.mrf.mxu0
    %4228 = vdwg.mxu0
    %4229 = vmatpush.bf16.msra.mxu0 %v3905
    %4230 = vmatpush.bf16.msra.mxu0 %v3901
    %4231 = vmatpush.bf16.msra.mxu0 %v3897
    %4232 = vmatpush.bf16.msra.mxu0 %v3893
    %4233 = vmatpush.bf16.msra.mxu0 %v3889
    %4234 = vmatpush.bf16.msra.mxu0 %v3885
    %4235 = vmatpush.bf16.msra.mxu0 %v3881
    %4236 = vmatpush.bf16.msra.mxu0 %v3877
    %4237 = vmatmul.bf16.gmra.mxu0 %v3253
    %v4238 = vpop.f32.mrf.mxu0
    %v4239 = vadd.f32 %v4226, %v4238
    %v4240 = vpop.f32.mrf.mxu0
    %4241 = vdwg.mxu0
    %v4242 = vmax.f32 %v4083, 0.0
    %v4243 = vmax.f32 %v4135, 0.0
    %v4244 = vmax.f32 %v4187, 0.0
    %v4245 = vmax.f32 %v4239, 0.0
    %v4246 = vpack.c.bf16 %v4242, %v4242
    %v4247 = vpack.c.bf16 %v4243, %v4243
    %v4248 = vpack.c.bf16 %v4244, %v4244
    %v4249 = vpack.c.bf16 %v4245, %v4245
    %v4250 = vld [vmem:[#allocation9] sm:$0xf]
    %v4251 = vld [vmem:[#allocation9 + $0x4] sm:$0xf]
    %v4252 = vld [vmem:[#allocation9 + $0x8] sm:$0xf]
    %v4253 = vld [vmem:[#allocation9 + $0xc] sm:$0xf]
    %v4254 = vld [vmem:[#allocation9 + $0x10] sm:$0xf]
    %v4255 = vld [vmem:[#allocation9 + $0x14] sm:$0xf]
    %v4256 = vld [vmem:[#allocation9 + $0x18] sm:$0xf]
    %v4257 = vld [vmem:[#allocation9 + $0x1c] sm:$0xf]
    %v4258 = vld [vmem:[#allocation9 + $0x20] sm:$0xf]
    %v4259 = vld [vmem:[#allocation9 + $0x24] sm:$0xf]
    %v4260 = vld [vmem:[#allocation9 + $0x28] sm:$0xf]
    %v4261 = vld [vmem:[#allocation9 + $0x2c] sm:$0xf]
    %v4262 = vld [vmem:[#allocation9 + $0x30] sm:$0xf]
    %v4263 = vld [vmem:[#allocation9 + $0x34] sm:$0xf]
    %v4264 = vld [vmem:[#allocation9 + $0x38] sm:$0xf]
    %v4265 = vld [vmem:[#allocation9 + $0x3c] sm:$0xf]
    %v4266 = vld [vmem:[#allocation9 + $0x40] sm:$0xf]
    %v4267 = vld [vmem:[#allocation9 + $0x44] sm:$0xf]
    %v4268 = vld [vmem:[#allocation9 + $0x48] sm:$0xf]
    %v4269 = vld [vmem:[#allocation9 + $0x4c] sm:$0xf]
    %v4270 = vld [vmem:[#allocation9 + $0x50] sm:$0xf]
    %v4271 = vld [vmem:[#allocation9 + $0x54] sm:$0xf]
    %v4272 = vld [vmem:[#allocation9 + $0x58] sm:$0xf]
    %v4273 = vld [vmem:[#allocation9 + $0x5c] sm:$0xf]
    %v4274 = vld [vmem:[#allocation9 + $0x60] sm:$0xf]
    %v4275 = vld [vmem:[#allocation9 + $0x64] sm:$0xf]
    %v4276 = vld [vmem:[#allocation9 + $0x68] sm:$0xf]
    %v4277 = vld [vmem:[#allocation9 + $0x6c] sm:$0xf]
    %v4278 = vld [vmem:[#allocation9 + $0x70] sm:$0xf]
    %v4279 = vld [vmem:[#allocation9 + $0x74] sm:$0xf]
    %v4280 = vld [vmem:[#allocation9 + $0x78] sm:$0xf]
    %v4281 = vld [vmem:[#allocation9 + $0x7c] sm:$0xf]
    %v4282 = vld [vmem:[#allocation9 + $0x80] sm:$0xf]
    %v4283 = vld [vmem:[#allocation9 + $0x84] sm:$0xf]
    %v4284 = vld [vmem:[#allocation9 + $0x88] sm:$0xf]
    %v4285 = vld [vmem:[#allocation9 + $0x8c] sm:$0xf]
    %v4286 = vld [vmem:[#allocation9 + $0x90] sm:$0xf]
    %v4287 = vld [vmem:[#allocation9 + $0x94] sm:$0xf]
    %v4288 = vld [vmem:[#allocation9 + $0x98] sm:$0xf]
    %v4289 = vld [vmem:[#allocation9 + $0x9c] sm:$0xf]
    %v4290 = vld [vmem:[#allocation9 + $0xa0] sm:$0xf]
    %v4291 = vld [vmem:[#allocation9 + $0xa4] sm:$0xf]
    %v4292 = vld [vmem:[#allocation9 + $0xa8] sm:$0xf]
    %v4293 = vld [vmem:[#allocation9 + $0xac] sm:$0xf]
    %v4294 = vld [vmem:[#allocation9 + $0xb0] sm:$0xf]
    %v4295 = vld [vmem:[#allocation9 + $0xb4] sm:$0xf]
    %v4296 = vld [vmem:[#allocation9 + $0xb8] sm:$0xf]
    %v4297 = vld [vmem:[#allocation9 + $0xbc] sm:$0xf]
    %v4298 = vld [vmem:[#allocation9 + $0xc0] sm:$0xf]
    %v4299 = vld [vmem:[#allocation9 + $0xc4] sm:$0xf]
    %v4300 = vld [vmem:[#allocation9 + $0xc8] sm:$0xf]
    %v4301 = vld [vmem:[#allocation9 + $0xcc] sm:$0xf]
    %v4302 = vld [vmem:[#allocation9 + $0xd0] sm:$0xf]
    %v4303 = vld [vmem:[#allocation9 + $0xd4] sm:$0xf]
    %v4304 = vld [vmem:[#allocation9 + $0xd8] sm:$0xf]
    %v4305 = vld [vmem:[#allocation9 + $0xdc] sm:$0xf]
    %v4306 = vld [vmem:[#allocation9 + $0xe0] sm:$0xf]
    %v4307 = vld [vmem:[#allocation9 + $0xe4] sm:$0xf]
    %v4308 = vld [vmem:[#allocation9 + $0xe8] sm:$0xf]
    %v4309 = vld [vmem:[#allocation9 + $0xec] sm:$0xf]
    %v4310 = vld [vmem:[#allocation9 + $0xf0] sm:$0xf]
    %v4311 = vld [vmem:[#allocation9 + $0xf4] sm:$0xf]
    %v4312 = vld [vmem:[#allocation9 + $0xf8] sm:$0xf]
    %v4313 = vld [vmem:[#allocation9 + $0xfc] sm:$0xf]
    %v4314 = vld [vmem:[#allocation7 + $0x5] ss:$0 sm:$0xff]
    %v4379 = vunpack.c.l.b16 %v4250
    %v4380 = vunpack.c.l.b16 %v4251
    %v4381 = vunpack.c.l.b16 %v4252
    %v4382 = vunpack.c.l.b16 %v4253
    %v4383 = vunpack.c.l.b16 %v4254
    %v4384 = vunpack.c.l.b16 %v4255
    %v4385 = vunpack.c.l.b16 %v4256
    %v4386 = vunpack.c.l.b16 %v4257
    %v4387 = vunpack.c.l.b16 %v4258
    %v4388 = vunpack.c.l.b16 %v4259
    %v4389 = vunpack.c.l.b16 %v4260
    %v4390 = vunpack.c.l.b16 %v4261
    %v4391 = vunpack.c.l.b16 %v4262
    %v4392 = vunpack.c.l.b16 %v4263
    %v4393 = vunpack.c.l.b16 %v4264
    %v4394 = vunpack.c.l.b16 %v4265
    %v4395 = vunpack.c.l.b16 %v4266
    %v4396 = vunpack.c.l.b16 %v4267
    %v4397 = vunpack.c.l.b16 %v4268
    %v4398 = vunpack.c.l.b16 %v4269
    %v4399 = vunpack.c.l.b16 %v4270
    %v4400 = vunpack.c.l.b16 %v4271
    %v4401 = vunpack.c.l.b16 %v4272
    %v4402 = vunpack.c.l.b16 %v4273
    %v4403 = vunpack.c.l.b16 %v4274
    %v4404 = vunpack.c.l.b16 %v4275
    %v4405 = vunpack.c.l.b16 %v4276
    %v4406 = vunpack.c.l.b16 %v4277
    %v4407 = vunpack.c.l.b16 %v4278
    %v4408 = vunpack.c.l.b16 %v4279
    %v4409 = vunpack.c.l.b16 %v4280
    %v4410 = vunpack.c.l.b16 %v4281
    %v4411 = vunpack.c.l.b16 %v4282
    %v4412 = vunpack.c.l.b16 %v4283
    %v4413 = vunpack.c.l.b16 %v4284
    %v4414 = vunpack.c.l.b16 %v4285
    %v4415 = vunpack.c.l.b16 %v4286
    %v4416 = vunpack.c.l.b16 %v4287
    %v4417 = vunpack.c.l.b16 %v4288
    %v4418 = vunpack.c.l.b16 %v4289
    %v4419 = vunpack.c.l.b16 %v4290
    %v4420 = vunpack.c.l.b16 %v4291
    %v4421 = vunpack.c.l.b16 %v4292
    %v4422 = vunpack.c.l.b16 %v4293
    %v4423 = vunpack.c.l.b16 %v4294
    %v4424 = vunpack.c.l.b16 %v4295
    %v4425 = vunpack.c.l.b16 %v4296
    %v4426 = vunpack.c.l.b16 %v4297
    %v4427 = vunpack.c.l.b16 %v4298
    %v4428 = vunpack.c.l.b16 %v4299
    %v4429 = vunpack.c.l.b16 %v4300
    %v4430 = vunpack.c.l.b16 %v4301
    %v4431 = vunpack.c.l.b16 %v4302
    %v4432 = vunpack.c.l.b16 %v4303
    %v4433 = vunpack.c.l.b16 %v4304
    %v4434 = vunpack.c.l.b16 %v4305
    %v4435 = vunpack.c.l.b16 %v4306
    %v4436 = vunpack.c.l.b16 %v4307
    %v4437 = vunpack.c.l.b16 %v4308
    %v4438 = vunpack.c.l.b16 %v4309
    %v4439 = vunpack.c.l.b16 %v4310
    %v4440 = vunpack.c.l.b16 %v4311
    %v4441 = vunpack.c.l.b16 %v4312
    %v4442 = vunpack.c.l.b16 %v4313
    %v4443 = vpack.c.b16 %v4380, %v4379
    %v4444 = vpack.c.b16 %v4382, %v4381
    %v4445 = vpack.c.b16 %v4384, %v4383
    %v4446 = vpack.c.b16 %v4386, %v4385
    %v4447 = vpack.c.b16 %v4388, %v4387
    %v4448 = vpack.c.b16 %v4390, %v4389
    %v4449 = vpack.c.b16 %v4392, %v4391
    %v4450 = vpack.c.b16 %v4394, %v4393
    %v4451 = vpack.c.b16 %v4396, %v4395
    %v4452 = vpack.c.b16 %v4398, %v4397
    %v4453 = vpack.c.b16 %v4400, %v4399
    %v4454 = vpack.c.b16 %v4402, %v4401
    %v4455 = vpack.c.b16 %v4404, %v4403
    %v4456 = vpack.c.b16 %v4406, %v4405
    %v4457 = vpack.c.b16 %v4408, %v4407
    %v4458 = vpack.c.b16 %v4410, %v4409
    %v4459 = vpack.c.b16 %v4412, %v4411
    %v4460 = vpack.c.b16 %v4414, %v4413
    %v4461 = vpack.c.b16 %v4416, %v4415
    %v4462 = vpack.c.b16 %v4418, %v4417
    %v4463 = vpack.c.b16 %v4420, %v4419
    %v4464 = vpack.c.b16 %v4422, %v4421
    %v4465 = vpack.c.b16 %v4424, %v4423
    %v4466 = vpack.c.b16 %v4426, %v4425
    %v4467 = vpack.c.b16 %v4428, %v4427
    %v4468 = vpack.c.b16 %v4430, %v4429
    %v4469 = vpack.c.b16 %v4432, %v4431
    %v4470 = vpack.c.b16 %v4434, %v4433
    %v4471 = vpack.c.b16 %v4436, %v4435
    %v4472 = vpack.c.b16 %v4438, %v4437
    %v4473 = vpack.c.b16 %v4440, %v4439
    %v4474 = vpack.c.b16 %v4442, %v4441
    %4507 = vmatpush.bf16.msra.mxu0 %v4450
    %4508 = vmatpush.bf16.msra.mxu0 %v4449
    %4509 = vmatpush.bf16.msra.mxu0 %v4448
    %4510 = vmatpush.bf16.msra.mxu0 %v4447
    %4511 = vmatpush.bf16.msra.mxu0 %v4446
    %4512 = vmatpush.bf16.msra.mxu0 %v4445
    %4513 = vmatpush.bf16.msra.mxu0 %v4444
    %4514 = vmatpush.bf16.msra.mxu0 %v4443
    %4515 = vmatmul.bf16.gmra.mxu0 %v4246
    %v4516 = vpop.f32.mrf.mxu0
    %v4517 = vadd.f32 %v4314, %v4516
    %v4518 = vpop.f32.mrf.mxu0
    %4519 = vdwg.mxu0
    %4520 = vmatpush.bf16.msra.mxu0 %v4458
    %4521 = vmatpush.bf16.msra.mxu0 %v4457
    %4522 = vmatpush.bf16.msra.mxu0 %v4456
    %4523 = vmatpush.bf16.msra.mxu0 %v4455
    %4524 = vmatpush.bf16.msra.mxu0 %v4454
    %4525 = vmatpush.bf16.msra.mxu0 %v4453
    %4526 = vmatpush.bf16.msra.mxu0 %v4452
    %4527 = vmatpush.bf16.msra.mxu0 %v4451
    %4528 = vmatmul.bf16.gmra.mxu0 %v4247
    %v4529 = vpop.f32.mrf.mxu0
    %v4530 = vadd.f32 %v4517, %v4529
    %v4531 = vpop.f32.mrf.mxu0
    %4532 = vdwg.mxu0
    %4533 = vmatpush.bf16.msra.mxu0 %v4466
    %4534 = vmatpush.bf16.msra.mxu0 %v4465
    %4535 = vmatpush.bf16.msra.mxu0 %v4464
    %4536 = vmatpush.bf16.msra.mxu0 %v4463
    %4537 = vmatpush.bf16.msra.mxu0 %v4462
    %4538 = vmatpush.bf16.msra.mxu0 %v4461
    %4539 = vmatpush.bf16.msra.mxu0 %v4460
    %4540 = vmatpush.bf16.msra.mxu0 %v4459
    %4541 = vmatmul.bf16.gmra.mxu0 %v4248
    %v4542 = vpop.f32.mrf.mxu0
    %v4543 = vadd.f32 %v4530, %v4542
    %v4544 = vpop.f32.mrf.mxu0
    %4545 = vdwg.mxu0
    %4546 = vmatpush.bf16.msra.mxu0 %v4474
    %4547 = vmatpush.bf16.msra.mxu0 %v4473
    %4548 = vmatpush.bf16.msra.mxu0 %v4472
    %4549 = vmatpush.bf16.msra.mxu0 %v4471
    %4550 = vmatpush.bf16.msra.mxu0 %v4470
    %4551 = vmatpush.bf16.msra.mxu0 %v4469
    %4552 = vmatpush.bf16.msra.mxu0 %v4468
    %4553 = vmatpush.bf16.msra.mxu0 %v4467
    %4554 = vmatmul.bf16.gmra.mxu0 %v4249
    %v4555 = vpop.f32.mrf.mxu0
    %v4556 = vadd.f32 %v4543, %v4555
    %v4557 = vpop.f32.mrf.mxu0
    %4558 = vdwg.mxu0
    %v4559 = vxor.u32 %v4556, 2147483648
    %v4560 = vmul.f32 %v4559, 1.442695
    %v4561 = vpow.pop %v4560
    %v4562 = vadd.f32 %v4561, 1.0
    %v4563 = vrcp.pop %v4562
    %v4564 = vmul.f32 %v4562, %v4563
    %v4565 = vsub.f32 1.0, %v4564
    %v4566 = vmul.f32 %v4563, %v4565
    %v4567 = vadd.f32 %v4563, %v4566
    %vm4568 = vweird.f32 %v4562
    %vm4569 = vweird.f32 %v4563
    %vm4570 = vmor %vm4568, %vm4569
    %v4571 = vsel %vm4570, %v4563, %v4567
    %v4572 = vand.u32 2147483647, %v4562
    %vm4573 = vcmp.eq.f32.partialorder %v4572, 8.507059e+37
    %v4574 = vand.u32 %v4562, 2147483648
    %v4575 = vor.u32 1.1754944e-38, %v4574
    %v4576 = vsel %vm4573, %v4575, %v4571
    %v4577 = vmul.f32 1.0, %v4576
    %4578 = vst [vmem:[%s5] sm:$0xff] %v4577
    // Predicated region
    $region42: #{network_forward.1} parent=1 // pred_check
      _
    $region43: #{network_forward.1} parent=1 // pred_check_branch
      %4580 = sbr.rel (0) target = $region45
    $region44: #{network_forward.1} parent=1 // pred_region
      _
    $region45: #{network_forward.1} parent=1 // pred_fallthru
      _
    // Predicated region
    $region46: #{network_forward.1} parent=1 // pred_check
      _
    $region47: #{network_forward.1} parent=1 // pred_check_branch
      %4582 = sbr.rel (0) target = $region49
    $region48: #{network_forward.1} parent=1 // pred_region
      _
    $region49: #{network_forward.1} parent=1 // pred_fallthru
      _
    %4583 = vsyncpa [#allocation3], 1
    %4584 = vsyncpa [#allocation5], 1
    %4585 = vsyncpa [#allocation8], 1

</llo_original>
